<compile_context>
chip_gen: v7x
topology: tpu7x:2x2x1
jax: 0.10.0
libtpu: 0.0.40
codegen_flags: <defaults>
</compile_context>

<pallas_src>
import functools

import jax
import jax.numpy as jnp
import numpy as np
from jax import lax
from jax.experimental import pallas as pl
from jax.experimental.pallas import tpu as pltpu


def _const_spec(block_shape, index_map):
    """Grid-invariant input -> single-buffer it (halves its VMEM footprint).

    Falls back to the default (double-buffered) BlockSpec if this JAX build's
    BlockSpec does not take `pipeline_mode`.
    """
    try:
        return pl.BlockSpec(block_shape, index_map, pipeline_mode=pl.Buffered(1))
    except (TypeError, AttributeError):
        return pl.BlockSpec(block_shape, index_map)


# ---------------------------------------------------------------------------
# Pass 1: RMSNorm(ln1) -> q/k/v projections -> RoPE -> head-major K/V/Q tiles
# ---------------------------------------------------------------------------
def qkv_rope_kernel(x_ref, cos_ref, sin_ref, ln1_ref,
                    wq_ref, wk_ref, wv_ref,
                    q_out_ref, k_out_ref, v_out_ref, kb_out_ref, vb_out_ref,
                    *, n_head, n_kv_head, head_dim, eps):
    D = head_dim
    x = x_ref[...]                                     # (tq, C) f32
    gamma = ln1_ref[...]                               # (1, C)  f32
    var = jnp.mean(x * x, axis=-1, keepdims=True)
    y = x * lax.rsqrt(var + eps) * gamma               # RMSNorm in f32
    yb = y.astype(jnp.bfloat16)

    # Projections on the MXU (bf16 in, f32 accumulate).
    q = jnp.dot(yb, wq_ref[...], preferred_element_type=jnp.float32)   # (tq, H*D)
    k = jnp.dot(yb, wk_ref[...], preferred_element_type=jnp.float32)   # (tq, KV*D)
    v = jnp.dot(yb, wv_ref[...], preferred_element_type=jnp.float32)   # (tq, KV*D)

    cos = cos_ref[...]                                 # (tq, D) f32 (shared by all heads)
    sin = sin_ref[...]
    d2 = D // 2

    def rope2d(t):                                     # HF rotate_half RoPE, f32
        rot = jnp.concatenate([-t[:, d2:], t[:, :d2]], axis=-1)
        return t * cos + rot * sin

    # Layout-only per-head loops (slice + RoPE + store); all matmuls are above.
    # TODO(synk): with head_dim < 128 these D-minor stores are lane-sparse; a fully
    # lane-dense packed (tq, H*D) pipeline would change the module's (KV,T,D)
    # out_k/out_v contract, so the head-major layout is kept.
    for h in range(n_head):
        q_out_ref[h, :, :] = rope2d(q[:, h * D:(h + 1) * D]).astype(q_out_ref.dtype)
    for g in range(n_kv_head):
        kg = rope2d(k[:, g * D:(g + 1) * D])
        vg = v[:, g * D:(g + 1) * D]
        k_out_ref[g, :, :] = kg                                    # f32 module output
        v_out_ref[g, :, :] = vg                                    # f32 module output
        kb_out_ref[g, :, :] = kg.astype(kb_out_ref.dtype)          # bf16 for attention
        vb_out_ref[g, :, :] = vg.astype(vb_out_ref.dtype)          # bf16 for attention


# ---------------------------------------------------------------------------
# Pass 2: flash attention (online softmax, causal in-kernel mask, kv-tile skip)
#         + o_proj (H-way accumulating dot) + residual add 1
# ---------------------------------------------------------------------------
def attn_kernel(x_ref, q_ref, k_ref, v_ref, wo3_ref,
                out_ref, m_ref, l_ref, acc_ref,
                *, n_head, n_kv_head, head_dim, neg_inf):
    H, KV, D = n_head, n_kv_head, head_dim
    rep = H // KV
    tq = q_ref.shape[1]
    tk = k_ref.shape[1]
    i = pl.program_id(0)
    j = pl.program_id(1)

    @pl.when(j == 0)
    def _init():
        m_ref[...] = jnp.full(m_ref.shape, -jnp.inf, dtype=m_ref.dtype)
        l_ref[...] = jnp.zeros(l_ref.shape, l_ref.dtype)
        acc_ref[...] = jnp.zeros(acc_ref.shape, acc_ref.dtype)

    # Causal tile skip: kv tiles entirely above the diagonal contribute nothing.
    # (Their k/v index_map is clamped in the wrapper, so no DMA is issued either.)
    @pl.when(j * tk < (i + 1) * tq)
    def _update():
        # Grouped-GQA batched matmuls: fold the rep query heads of each KV group into
        # the row axis instead of materializing rep copies of K/V every kv step.
        q = q_ref[...].reshape(KV, rep * tq, D)              # bf16, leading-dim merge
        k = k_ref[...]                                        # (KV, tk, D) bf16
        v = v_ref[...]                                        # (KV, tk, D) bf16

        # NOTE: no 1/sqrt(D) scaling — the PyTorch module applies none.
        att = jnp.einsum('gtd,gsd->gts', q, k,
                         preferred_element_type=jnp.float32)  # (KV, rep*tq, tk) f32

        # In-kernel causal additive mask (module semantics: att + neg_inf fill);
        # replaces the O(T^2) f32 mask stream with a few VPU ops per tile.
        rows = i * tq + lax.broadcasted_iota(jnp.int32, (rep, tq, tk), 1)
        cols = j * tk + lax.broadcasted_iota(jnp.int32, (rep, tq, tk), 2)
        madd = jnp.where(cols <= rows, 0.0, neg_inf).reshape(rep * tq, tk)
        att = att + madd[None, :, :]

        # Online (flash) softmax update, f32.
        m_prev = m_ref[...]
        m_new = jnp.maximum(m_prev, jnp.max(att, axis=-1, keepdims=True))
        alpha = jnp.exp(m_prev - m_new)
        p = jnp.exp(att - m_new)
        l_ref[...] = alpha * l_ref[...] + jnp.sum(p, axis=-1, keepdims=True)
        acc_ref[...] = alpha * acc_ref[...] + jnp.einsum(
            'gts,gsd->gtd', p.astype(jnp.bfloat16), v,
            preferred_element_type=jnp.float32)
        m_ref[...] = m_new

    @pl.when(j == pl.num_programs(1) - 1)
    def _finalize():
        y = (acc_ref[...] * pl.reciprocal(l_ref[...], approx=True)
             ).reshape(H, tq, D)                              # (H, tq, D) f32
        # o_proj as an H-way accumulating dot against wo reshaped to (H, D, C):
        # pure MXU accumulation, no cross-lane head concat.
        o = jnp.zeros(x_ref.shape, jnp.float32)               # (tq, C)
        for h in range(H):
            o = o + jnp.dot(y[h].astype(jnp.bfloat16), wo3_ref[h],
                            preferred_element_type=jnp.float32)
        out_ref[...] = (x_ref[...] + o).astype(out_ref.dtype)  # residual add 1


# ---------------------------------------------------------------------------
# Pass 3: RMSNorm(ln2) + SwiGLU MLP chunked over I + residual add 2
# ---------------------------------------------------------------------------
def mlp_kernel(xr_ref, ln2_ref, w1_ref, w3_ref, w2_ref,
               out_ref, y2_ref, acc_ref, *, eps, act_fn):
    j = pl.program_id(1)

    @pl.when(j == 0)
    def _init():
        xr = xr_ref[...]                                       # (tm, C) f32
        var = jnp.mean(xr * xr, axis=-1, keepdims=True)
        y2 = xr * lax.rsqrt(var + eps) * ln2_ref[...]          # RMSNorm f32
        y2_ref[...] = y2.astype(y2_ref.dtype)                  # bf16 cache for all I chunks
        acc_ref[...] = jnp.zeros(acc_ref.shape, acc_ref.dtype)

    y2b = y2_ref[...]                                          # (tm, C) bf16
    h1 = jnp.dot(y2b, w1_ref[...], preferred_element_type=jnp.float32)  # (tm, ti)
    if act_fn == 'silu':
        h1 = h1 * jax.nn.sigmoid(h1)
    elif act_fn == 'gelu':
        h1 = jax.nn.gelu(h1, approximate=False)
    else:
        raise NotImplementedError(act_fn)
    h3 = jnp.dot(y2b, w3_ref[...], preferred_element_type=jnp.float32)  # (tm, ti)
    acc_ref[...] += jnp.dot((h1 * h3).astype(jnp.bfloat16), w2_ref[...],
                            preferred_element_type=jnp.float32)         # (tm, C)

    @pl.when(j == pl.num_programs(1) - 1)
    def _finalize():
        out_ref[...] = (xr_ref[...] + acc_ref[...]).astype(out_ref.dtype)  # residual add 2


# ---------------------------------------------------------------------------
# Wrapper
# ---------------------------------------------------------------------------
def sim_block(x, cos, sin, params, *,
              n_head, n_kv_head, head_dim, eps,
              neg_inf=-40000.0, act_fn='silu',
              block_q=256, block_kv=256, block_i=1024,
              vmem_limit_bytes=48 * 1024 * 1024):
    T, C = x.shape
    H, KV, D = n_head, n_kv_head, head_dim
    assert H % KV == 0 and H * D == C
    I = params["w1"].shape[1]

    # Sequence tiles: full-T when small, else multiples of 128 so every BlockSpec
    # satisfies TPU (8, 128) tiling rules.  On v6e/v7x keep tq=tk>=256 to fill the
    # 256-wide MXU; 128-256 suffices on v5e.
    tq = T if T <= block_q else block_q
    tk = T if T <= block_kv else block_kv
    assert T % tq == 0 and T % tk == 0
    # v7x has two TensorCores per chip: make sure the "parallel" q-tile axis has at
    # least 2 steps so both get work (no-op consideration on single-TC v5e/v6e).
    if T // tq < 2 and T % 2 == 0 and (T // 2) % 8 == 0:
        tq = T // 2

    # Intermediate-dim tile for the MLP pass: largest multiple-of-128 divisor of I
    # that is <= block_i (or full I when I is small).
    def _pick_i_tile(total, target):
        if total <= target:
            return total
        t = (target // 128) * 128
        while t >= 128:
            if total % t == 0:
                return t
            t -= 128
        return total
    ti = _pick_i_tile(I, block_i)

    f32, bf16 = jnp.float32, jnp.bfloat16
    ln1 = params["ln1"].reshape(1, C).astype(f32)
    ln2 = params["ln2"].reshape(1, C).astype(f32)
    # bf16 weights: halves HBM traffic / VMEM, full-rate MXU; f32 accumulation in-kernel.
    wq = params["wq"].astype(bf16)
    wk = params["wk"].astype(bf16)
    wv = params["wv"].astype(bf16)
    wo3 = params["wo"].reshape(H, D, C).astype(bf16)   # per-head o_proj slabs
    w1 = params["w1"].astype(bf16)
    w3 = params["w3"].astype(bf16)
    w2 = params["w2"].astype(bf16)

    # NOTE: 48 MiB leaves pipelining headroom on v7x's 64 MiB physical VMEM; on
    # 128 MiB parts (v5e/v6e) this can be raised toward 96-112 MiB with larger tiles.
    cparams_1d = pltpu.CompilerParams(
        dimension_semantics=("parallel",), vmem_limit_bytes=vmem_limit_bytes)
    cparams_2d = pltpu.CompilerParams(
        dimension_semantics=("parallel", "arbitrary"), vmem_limit_bytes=vmem_limit_bytes)

    # ---- pass 1: RMSNorm + QKV projection + RoPE ----
    q_rot, out_k, out_v, k_b16, v_b16 = pl.pallas_call(
        functools.partial(qkv_rope_kernel, n_head=H, n_kv_head=KV,
                          head_dim=D, eps=eps),
        out_shape=(jax.ShapeDtypeStruct((H, T, D), bf16),     # rotated Q (internal)
                   jax.ShapeDtypeStruct((KV, T, D), f32),     # out_k (module output)
                   jax.ShapeDtypeStruct((KV, T, D), f32),     # out_v (module output)
                   jax.ShapeDtypeStruct((KV, T, D), bf16),    # K bf16 (attention input)
                   jax.ShapeDtypeStruct((KV, T, D), bf16)),   # V bf16 (attention input)
        grid=(T // tq,),
        in_specs=[pl.BlockSpec((tq, C), lambda i: (i, 0)),
                  pl.BlockSpec((tq, D), lambda i: (i, 0)),
                  pl.BlockSpec((tq, D), lambda i: (i, 0)),
                  _const_spec((1, C), lambda i: (0, 0)),
                  _const_spec((C, H * D), lambda i: (0, 0)),
                  _const_spec((C, KV * D), lambda i: (0, 0)),
                  _const_spec((C, KV * D), lambda i: (0, 0))],
        out_specs=(pl.BlockSpec((H, tq, D), lambda i: (0, i, 0)),
                   pl.BlockSpec((KV, tq, D), lambda i: (0, i, 0)),
                   pl.BlockSpec((KV, tq, D), lambda i: (0, i, 0)),
                   pl.BlockSpec((KV, tq, D), lambda i: (0, i, 0)),
                   pl.BlockSpec((KV, tq, D), lambda i: (0, i, 0))),
        compiler_params=cparams_1d,
    )(x, cos, sin, ln1, wq, wk, wv)

    # ---- pass 2: flash attention + o_proj + residual add 1 ----
    # Clamp the kv block index to the last tile the causal mask can reach for this
    # q tile; skipped steps keep the same index so Pallas elides their DMA.
    def kv_map(i, j):
        jmax = ((i + 1) * tq - 1) // tk
        return (0, jnp.minimum(j, jmax), 0)

    xr = pl.pallas_call(
        functools.partial(attn_kernel, n_head=H, n_kv_head=KV,
                          head_dim=D, neg_inf=float(neg_inf)),
        out_shape=jax.ShapeDtypeStruct((T, C), f32),
        grid=(T // tq, T // tk),
        in_specs=[pl.BlockSpec((tq, C), lambda i, j: (i, 0)),          # x (residual)
                  pl.BlockSpec((H, tq, D), lambda i, j: (0, i, 0)),    # q_rot bf16
                  pl.BlockSpec((KV, tk, D), kv_map),                   # K bf16
                  pl.BlockSpec((KV, tk, D), kv_map),                   # V bf16
                  _const_spec((H, D, C), lambda i, j: (0, 0, 0))],     # wo (H,D,C)
        out_specs=pl.BlockSpec((tq, C), lambda i, j: (i, 0)),
        scratch_shapes=[pltpu.VMEM((KV, (H // KV) * tq, 1), f32),   # running max
                        pltpu.VMEM((KV, (H // KV) * tq, 1), f32),   # running denom
                        pltpu.VMEM((KV, (H // KV) * tq, D), f32)],  # output accumulator
        compiler_params=cparams_2d,
    )(x, q_rot, k_b16, v_b16, wo3)

    # ---- pass 3: RMSNorm(ln2) + SwiGLU MLP (chunked over I) + residual add 2 ----
    out_x = pl.pallas_call(
        functools.partial(mlp_kernel, eps=eps, act_fn=act_fn),
        out_shape=jax.ShapeDtypeStruct((T, C), f32),
        grid=(T // tq, I // ti),
        in_specs=[pl.BlockSpec((tq, C), lambda i, j: (i, 0)),          # xr (residual)
                  _const_spec((1, C), lambda i, j: (0, 0)),            # ln2
                  pl.BlockSpec((C, ti), lambda i, j: (0, j)),          # w1 chunk
                  pl.BlockSpec((C, ti), lambda i, j: (0, j)),          # w3 chunk
                  pl.BlockSpec((ti, C), lambda i, j: (j, 0))],         # w2 chunk
        out_specs=pl.BlockSpec((tq, C), lambda i, j: (i, 0)),
        scratch_shapes=[pltpu.VMEM((tq, C), bf16),    # cached RMSNorm output
                        pltpu.VMEM((tq, C), f32)],    # MLP accumulator
        compiler_params=cparams_2d,
    )(xr, ln2, w1, w3, w2)

    return out_x, out_k, out_v


# ---------------------------------------------------------------------------
# Pure-JAX reference mirroring the PyTorch SimBlock forward (f32 everywhere)
# ---------------------------------------------------------------------------
def sim_block_ref(x, mask, cos, sin, p, *, n_head, n_kv_head, head_dim, eps):
    H, KV, D = n_head, n_kv_head, head_dim
    rep = H // KV

    def rmsnorm(v, w):
        return v * lax.rsqrt(jnp.mean(v * v, -1, keepdims=True) + eps) * w

    def rotate_half(t):
        d2 = t.shape[-1] // 2
        return jnp.concatenate([-t[:, d2:], t[:, :d2]], axis=-1)

    def rope(t):
        return t * cos + rotate_half(t) * sin

    y = rmsnorm(x, p["ln1"])
    q, k, v = y @ p["wq"], y @ p["wk"], y @ p["wv"]
    k_heads = [rope(k[:, g * D:(g + 1) * D]) for g in range(KV)]
    v_heads = [v[:, g * D:(g + 1) * D] for g in range(KV)]
    ys = []
    for h in range(H):
        g = h // rep
        qh = rope(q[:, h * D:(h + 1) * D])
        att = qh @ k_heads[g].T + mask
        att = jax.nn.softmax(att, axis=-1)
        ys.append(att @ v_heads[g])
    x = x + jnp.concatenate(ys, -1) @ p["wo"]
    y2 = rmsnorm(x, p["ln2"])
    h1 = y2 @ p["w1"]
    h1 = h1 * jax.nn.sigmoid(h1)
    x = x + (h1 * (y2 @ p["w3"])) @ p["w2"]
    return x, jnp.stack(k_heads, 0), jnp.stack(v_heads, 0)


if __name__ == "__main__":
    # Small shapes consistent with the module (GQA, SwiGLU); T=256 with 128-wide
    # tiles exercises the multi-tile grid, the online-softmax kv loop and the
    # causal kv-tile skip (tile (i=0, j=1) is skipped).
    T, C, H, KV, I = 256, 32, 4, 2, 64
    D = C // H
    eps = 1e-5
    neg_inf = -40000.0

    key = jax.random.PRNGKey(0)
    ks = jax.random.split(key, 10)
    s = 0.05
    x = jax.random.normal(ks[0], (T, C), jnp.float32)
    params = {
        "ln1": 1.0 + 0.1 * jax.random.normal(ks[1], (1, C), jnp.float32),
        "ln2": 1.0 + 0.1 * jax.random.normal(ks[2], (1, C), jnp.float32),
        "wq": s * jax.random.normal(ks[3], (C, H * D), jnp.float32),
        "wk": s * jax.random.normal(ks[4], (C, KV * D), jnp.float32),
        "wv": s * jax.random.normal(ks[5], (C, KV * D), jnp.float32),
        "wo": s * jax.random.normal(ks[6], (C, C), jnp.float32),
        "w1": s * jax.random.normal(ks[7], (C, I), jnp.float32),
        "w3": s * jax.random.normal(ks[8], (C, I), jnp.float32),
        "w2": s * jax.random.normal(ks[9], (I, C), jnp.float32),
    }

    # RoPE tables (HF-LLaMA style), shape (T, D)
    inv_freq = 1.0 / (10000.0 ** (jnp.arange(0, D, 2, dtype=jnp.float32) / D))
    pos = jnp.arange(T, dtype=jnp.float32)
    freqs = jnp.outer(pos, inv_freq)
    emb = jnp.concatenate([freqs, freqs], axis=-1)
    cos, sin = jnp.cos(emb), jnp.sin(emb)

    # Reference additive causal mask (kernel generates the same mask in-kernel).
    causal = jnp.tril(jnp.ones((T, T), dtype=bool))
    mask = jnp.where(causal, 0.0, neg_inf).astype(jnp.float32)

    out_x, out_k, out_v = sim_block(
        x, cos, sin, params,
        n_head=H, n_kv_head=KV, head_dim=D, eps=eps,
        neg_inf=neg_inf, act_fn='silu',
        block_q=128, block_kv=128)
    jax.block_until_ready((out_x, out_k, out_v))

    ref_x, ref_k, ref_v = sim_block_ref(
        x, mask, cos, sin, params,
        n_head=H, n_kv_head=KV, head_dim=D, eps=eps)
    # bf16 matmul inputs (f32 accumulation) vs f32 reference -> 2e-2 tolerance.
    np.testing.assert_allclose(np.asarray(out_x), np.asarray(ref_x), rtol=2e-2, atol=2e-2)
    np.testing.assert_allclose(np.asarray(out_k), np.asarray(ref_k), rtol=2e-2, atol=2e-2)
    np.testing.assert_allclose(np.asarray(out_v), np.asarray(ref_v), rtol=2e-2, atol=2e-2)

    print("KERNEL_OK")
</pallas_src>

<mosaic_0001>
module attributes {stable_mosaic.version = 11 : i64} {
  func.func @qkv_rope_kernel(%arg0: i32, %arg1: memref<128x32xf32, #tpu.memory_space<vmem>>, %arg2: memref<128x8xf32, #tpu.memory_space<vmem>>, %arg3: memref<128x8xf32, #tpu.memory_space<vmem>>, %arg4: memref<1x32xf32, #tpu.memory_space<vmem>>, %arg5: memref<32x32xbf16, #tpu.memory_space<vmem>>, %arg6: memref<32x16xbf16, #tpu.memory_space<vmem>>, %arg7: memref<32x16xbf16, #tpu.memory_space<vmem>>, %arg8: memref<4x128x8xbf16, #tpu.memory_space<vmem>>, %arg9: memref<2x128x8xf32, #tpu.memory_space<vmem>>, %arg10: memref<2x128x8xf32, #tpu.memory_space<vmem>>, %arg11: memref<2x128x8xbf16, #tpu.memory_space<vmem>>, %arg12: memref<2x128x8xbf16, #tpu.memory_space<vmem>>) attributes {dimension_semantics = [#tpu.dimension_semantics<parallel>], iteration_bounds = array<i64: 2>, scalar_prefetch = 0 : i64, scratch_operands = 0 : i64, tpu.core_type = #tpu.core_type<tc>, window_params = [{transform_indices = @transform_0, window_bounds = array<i64: 128, 32>}, {transform_indices = @transform_1, window_bounds = array<i64: 128, 8>}, {transform_indices = @transform_2, window_bounds = array<i64: 128, 8>}, {pipeline_mode = #tpu.pipeline_mode<synchronous>, transform_indices = @transform_3, window_bounds = array<i64: 1, 32>}, {pipeline_mode = #tpu.pipeline_mode<synchronous>, transform_indices = @transform_4, window_bounds = array<i64: 32, 32>}, {pipeline_mode = #tpu.pipeline_mode<synchronous>, transform_indices = @transform_5, window_bounds = array<i64: 32, 16>}, {pipeline_mode = #tpu.pipeline_mode<synchronous>, transform_indices = @transform_6, window_bounds = array<i64: 32, 16>}, {transform_indices = @transform_7, window_bounds = array<i64: 4, 128, 8>}, {transform_indices = @transform_8, window_bounds = array<i64: 2, 128, 8>}, {transform_indices = @transform_9, window_bounds = array<i64: 2, 128, 8>}, {transform_indices = @transform_10, window_bounds = array<i64: 2, 128, 8>}, {transform_indices = @transform_11, window_bounds = array<i64: 2, 128, 8>}]} {
    %c0 = arith.constant 0 : index
    %c0_0 = arith.constant 0 : index
    %0 = vector.load %arg1[%c0, %c0_0] : memref<128x32xf32, #tpu.memory_space<vmem>>, vector<128x32xf32>
    %c0_1 = arith.constant 0 : index
    %c0_2 = arith.constant 0 : index
    %1 = vector.load %arg4[%c0_1, %c0_2] : memref<1x32xf32, #tpu.memory_space<vmem>>, vector<1x32xf32>
    %2 = arith.mulf %0, %0 : vector<128x32xf32>
    %cst = arith.constant dense<0.000000e+00> : vector<128xf32>
    %3 = vector.multi_reduction <add>, %2, %cst [1] : vector<128x32xf32> to vector<128xf32>
    %4 = vector.shape_cast %3 : vector<128xf32> to vector<128x1xf32>
    %cst_3 = arith.constant 3.200000e+01 : f32
    %5 = vector.broadcast %cst_3 : f32 to vector<128x1xf32>
    %6 = arith.divf %4, %5 : vector<128x1xf32>
    %cst_4 = arith.constant 9.99999974E-6 : f32
    %7 = vector.broadcast %cst_4 : f32 to vector<128x1xf32>
    %8 = arith.addf %6, %7 : vector<128x1xf32>
    %9 = math.rsqrt %8 : vector<128x1xf32>
    %10 = vector.broadcast %9 : vector<128x1xf32> to vector<128x32xf32>
    %11 = arith.mulf %0, %10 : vector<128x32xf32>
    %12 = vector.broadcast %1 : vector<1x32xf32> to vector<128x32xf32>
    %13 = arith.mulf %11, %12 : vector<128x32xf32>
    %14 = arith.truncf %13 : vector<128x32xf32> to vector<128x32xbf16>
    %c0_5 = arith.constant 0 : index
    %c0_6 = arith.constant 0 : index
    %15 = vector.load %arg5[%c0_5, %c0_6] : memref<32x32xbf16, #tpu.memory_space<vmem>>, vector<32x32xbf16>
    %cst_7 = arith.constant dense<0.000000e+00> : vector<128x32xf32>
    %16 = tpu.matmul %14, %15, %cst_7 {dimension_numbers = #tpu.dot_dimension_numbers<[1], [0], [0], [1], [0, 0, 1, 1], [], []>} : vector<128x32xbf16>, vector<32x32xbf16>, vector<128x32xf32> -> vector<128x32xf32>
    %c0_8 = arith.constant 0 : index
    %c0_9 = arith.constant 0 : index
    %17 = vector.load %arg6[%c0_8, %c0_9] : memref<32x16xbf16, #tpu.memory_space<vmem>>, vector<32x16xbf16>
    %cst_10 = arith.constant dense<0.000000e+00> : vector<128x16xf32>
    %18 = tpu.matmul %14, %17, %cst_10 {dimension_numbers = #tpu.dot_dimension_numbers<[1], [0], [0], [1], [0, 0, 1, 1], [], []>} : vector<128x32xbf16>, vector<32x16xbf16>, vector<128x16xf32> -> vector<128x16xf32>
    %c0_11 = arith.constant 0 : index
    %c0_12 = arith.constant 0 : index
    %19 = vector.load %arg7[%c0_11, %c0_12] : memref<32x16xbf16, #tpu.memory_space<vmem>>, vector<32x16xbf16>
    %cst_13 = arith.constant dense<0.000000e+00> : vector<128x16xf32>
    %20 = tpu.matmul %14, %19, %cst_13 {dimension_numbers = #tpu.dot_dimension_numbers<[1], [0], [0], [1], [0, 0, 1, 1], [], []>} : vector<128x32xbf16>, vector<32x16xbf16>, vector<128x16xf32> -> vector<128x16xf32>
    %c0_14 = arith.constant 0 : index
    %c0_15 = arith.constant 0 : index
    %21 = vector.load %arg2[%c0_14, %c0_15] : memref<128x8xf32, #tpu.memory_space<vmem>>, vector<128x8xf32>
    %c0_16 = arith.constant 0 : index
    %c0_17 = arith.constant 0 : index
    %22 = vector.load %arg3[%c0_16, %c0_17] : memref<128x8xf32, #tpu.memory_space<vmem>>, vector<128x8xf32>
    %23 = vector.extract_strided_slice %16 {offsets = [0, 0], sizes = [128, 8], strides = [1, 1]} : vector<128x32xf32> to vector<128x8xf32>
    %24 = vector.extract_strided_slice %23 {offsets = [0, 4], sizes = [128, 4], strides = [1, 1]} : vector<128x8xf32> to vector<128x4xf32>
    %cst_18 = arith.constant 0.000000e+00 : f32
    %25 = vector.broadcast %cst_18 : f32 to vector<128x4xf32>
    %26 = arith.subf %25, %24 : vector<128x4xf32>
    %27 = vector.extract_strided_slice %23 {offsets = [0, 0], sizes = [128, 4], strides = [1, 1]} : vector<128x8xf32> to vector<128x4xf32>
    %28 = tpu.concatenate %26, %27 in 1 : vector<128x4xf32>, vector<128x4xf32> -> vector<128x8xf32>
    %29 = arith.mulf %23, %21 : vector<128x8xf32>
    %30 = arith.mulf %28, %22 : vector<128x8xf32>
    %31 = arith.addf %29, %30 : vector<128x8xf32>
    %32 = arith.truncf %31 : vector<128x8xf32> to vector<128x8xbf16>
    %c0_19 = arith.constant 0 : index
    %c0_20 = arith.constant 0 : index
    %c0_21 = arith.constant 0 : index
    %33 = vector.load %arg8[%c0_19, %c0_20, %c0_21] : memref<4x128x8xbf16, #tpu.memory_space<vmem>>, vector<1x128x8xbf16>
    %34 = vector.shape_cast %33 : vector<1x128x8xbf16> to vector<128x8xbf16>
    %35 = vector.shape_cast %32 : vector<128x8xbf16> to vector<1x128x8xbf16>
    tpu.vector_store %arg8[%c0_19, %c0_20, %c0_21], %35 {strides = array<i32>} : memref<4x128x8xbf16, #tpu.memory_space<vmem>>, vector<1x128x8xbf16>,
    %36 = vector.extract_strided_slice %16 {offsets = [0, 8], sizes = [128, 8], strides = [1, 1]} : vector<128x32xf32> to vector<128x8xf32>
    %37 = vector.extract_strided_slice %36 {offsets = [0, 4], sizes = [128, 4], strides = [1, 1]} : vector<128x8xf32> to vector<128x4xf32>
    %cst_22 = arith.constant 0.000000e+00 : f32
    %38 = vector.broadcast %cst_22 : f32 to vector<128x4xf32>
    %39 = arith.subf %38, %37 : vector<128x4xf32>
    %40 = vector.extract_strided_slice %36 {offsets = [0, 0], sizes = [128, 4], strides = [1, 1]} : vector<128x8xf32> to vector<128x4xf32>
    %41 = tpu.concatenate %39, %40 in 1 : vector<128x4xf32>, vector<128x4xf32> -> vector<128x8xf32>
    %42 = arith.mulf %36, %21 : vector<128x8xf32>
    %43 = arith.mulf %41, %22 : vector<128x8xf32>
    %44 = arith.addf %42, %43 : vector<128x8xf32>
    %45 = arith.truncf %44 : vector<128x8xf32> to vector<128x8xbf16>
    %c1 = arith.constant 1 : index
    %c0_23 = arith.constant 0 : index
    %c0_24 = arith.constant 0 : index
    %46 = vector.load %arg8[%c1, %c0_23, %c0_24] : memref<4x128x8xbf16, #tpu.memory_space<vmem>>, vector<1x128x8xbf16>
    %47 = vector.shape_cast %46 : vector<1x128x8xbf16> to vector<128x8xbf16>
    %48 = vector.shape_cast %45 : vector<128x8xbf16> to vector<1x128x8xbf16>
    tpu.vector_store %arg8[%c1, %c0_23, %c0_24], %48 {strides = array<i32>} : memref<4x128x8xbf16, #tpu.memory_space<vmem>>, vector<1x128x8xbf16>,
    %49 = vector.extract_strided_slice %16 {offsets = [0, 16], sizes = [128, 8], strides = [1, 1]} : vector<128x32xf32> to vector<128x8xf32>
    %50 = vector.extract_strided_slice %49 {offsets = [0, 4], sizes = [128, 4], strides = [1, 1]} : vector<128x8xf32> to vector<128x4xf32>
    %cst_25 = arith.constant 0.000000e+00 : f32
    %51 = vector.broadcast %cst_25 : f32 to vector<128x4xf32>
    %52 = arith.subf %51, %50 : vector<128x4xf32>
    %53 = vector.extract_strided_slice %49 {offsets = [0, 0], sizes = [128, 4], strides = [1, 1]} : vector<128x8xf32> to vector<128x4xf32>
    %54 = tpu.concatenate %52, %53 in 1 : vector<128x4xf32>, vector<128x4xf32> -> vector<128x8xf32>
    %55 = arith.mulf %49, %21 : vector<128x8xf32>
    %56 = arith.mulf %54, %22 : vector<128x8xf32>
    %57 = arith.addf %55, %56 : vector<128x8xf32>
    %58 = arith.truncf %57 : vector<128x8xf32> to vector<128x8xbf16>
    %c2 = arith.constant 2 : index
    %c0_26 = arith.constant 0 : index
    %c0_27 = arith.constant 0 : index
    %59 = vector.load %arg8[%c2, %c0_26, %c0_27] : memref<4x128x8xbf16, #tpu.memory_space<vmem>>, vector<1x128x8xbf16>
    %60 = vector.shape_cast %59 : vector<1x128x8xbf16> to vector<128x8xbf16>
    %61 = vector.shape_cast %58 : vector<128x8xbf16> to vector<1x128x8xbf16>
    tpu.vector_store %arg8[%c2, %c0_26, %c0_27], %61 {strides = array<i32>} : memref<4x128x8xbf16, #tpu.memory_space<vmem>>, vector<1x128x8xbf16>,
    %62 = vector.extract_strided_slice %16 {offsets = [0, 24], sizes = [128, 8], strides = [1, 1]} : vector<128x32xf32> to vector<128x8xf32>
    %63 = vector.extract_strided_slice %62 {offsets = [0, 4], sizes = [128, 4], strides = [1, 1]} : vector<128x8xf32> to vector<128x4xf32>
    %cst_28 = arith.constant 0.000000e+00 : f32
    %64 = vector.broadcast %cst_28 : f32 to vector<128x4xf32>
    %65 = arith.subf %64, %63 : vector<128x4xf32>
    %66 = vector.extract_strided_slice %62 {offsets = [0, 0], sizes = [128, 4], strides = [1, 1]} : vector<128x8xf32> to vector<128x4xf32>
    %67 = tpu.concatenate %65, %66 in 1 : vector<128x4xf32>, vector<128x4xf32> -> vector<128x8xf32>
    %68 = arith.mulf %62, %21 : vector<128x8xf32>
    %69 = arith.mulf %67, %22 : vector<128x8xf32>
    %70 = arith.addf %68, %69 : vector<128x8xf32>
    %71 = arith.truncf %70 : vector<128x8xf32> to vector<128x8xbf16>
    %c3 = arith.constant 3 : index
    %c0_29 = arith.constant 0 : index
    %c0_30 = arith.constant 0 : index
    %72 = vector.load %arg8[%c3, %c0_29, %c0_30] : memref<4x128x8xbf16, #tpu.memory_space<vmem>>, vector<1x128x8xbf16>
    %73 = vector.shape_cast %72 : vector<1x128x8xbf16> to vector<128x8xbf16>
    %74 = vector.shape_cast %71 : vector<128x8xbf16> to vector<1x128x8xbf16>
    tpu.vector_store %arg8[%c3, %c0_29, %c0_30], %74 {strides = array<i32>} : memref<4x128x8xbf16, #tpu.memory_space<vmem>>, vector<1x128x8xbf16>,
    %75 = vector.extract_strided_slice %18 {offsets = [0, 0], sizes = [128, 8], strides = [1, 1]} : vector<128x16xf32> to vector<128x8xf32>
    %76 = vector.extract_strided_slice %75 {offsets = [0, 4], sizes = [128, 4], strides = [1, 1]} : vector<128x8xf32> to vector<128x4xf32>
    %cst_31 = arith.constant 0.000000e+00 : f32
    %77 = vector.broadcast %cst_31 : f32 to vector<128x4xf32>
    %78 = arith.subf %77, %76 : vector<128x4xf32>
    %79 = vector.extract_strided_slice %75 {offsets = [0, 0], sizes = [128, 4], strides = [1, 1]} : vector<128x8xf32> to vector<128x4xf32>
    %80 = tpu.concatenate %78, %79 in 1 : vector<128x4xf32>, vector<128x4xf32> -> vector<128x8xf32>
    %81 = arith.mulf %75, %21 : vector<128x8xf32>
    %82 = arith.mulf %80, %22 : vector<128x8xf32>
    %83 = arith.addf %81, %82 : vector<128x8xf32>
    %84 = vector.extract_strided_slice %20 {offsets = [0, 0], sizes = [128, 8], strides = [1, 1]} : vector<128x16xf32> to vector<128x8xf32>
    %c0_32 = arith.constant 0 : index
    %c0_33 = arith.constant 0 : index
    %c0_34 = arith.constant 0 : index
    %85 = vector.load %arg9[%c0_32, %c0_33, %c0_34] : memref<2x128x8xf32, #tpu.memory_space<vmem>>, vector<1x128x8xf32>
    %86 = vector.shape_cast %85 : vector<1x128x8xf32> to vector<128x8xf32>
    %87 = vector.shape_cast %83 : vector<128x8xf32> to vector<1x128x8xf32>
    tpu.vector_store %arg9[%c0_32, %c0_33, %c0_34], %87 {strides = array<i32>} : memref<2x128x8xf32, #tpu.memory_space<vmem>>, vector<1x128x8xf32>,
    %c0_35 = arith.constant 0 : index
    %c0_36 = arith.constant 0 : index
    %c0_37 = arith.constant 0 : index
    %88 = vector.load %arg10[%c0_35, %c0_36, %c0_37] : memref<2x128x8xf32, #tpu.memory_space<vmem>>, vector<1x128x8xf32>
    %89 = vector.shape_cast %88 : vector<1x128x8xf32> to vector<128x8xf32>
    %90 = vector.shape_cast %84 : vector<128x8xf32> to vector<1x128x8xf32>
    tpu.vector_store %arg10[%c0_35, %c0_36, %c0_37], %90 {strides = array<i32>} : memref<2x128x8xf32, #tpu.memory_space<vmem>>, vector<1x128x8xf32>,
    %91 = arith.truncf %83 : vector<128x8xf32> to vector<128x8xbf16>
    %c0_38 = arith.constant 0 : index
    %c0_39 = arith.constant 0 : index
    %c0_40 = arith.constant 0 : index
    %92 = vector.load %arg11[%c0_38, %c0_39, %c0_40] : memref<2x128x8xbf16, #tpu.memory_space<vmem>>, vector<1x128x8xbf16>
    %93 = vector.shape_cast %92 : vector<1x128x8xbf16> to vector<128x8xbf16>
    %94 = vector.shape_cast %91 : vector<128x8xbf16> to vector<1x128x8xbf16>
    tpu.vector_store %arg11[%c0_38, %c0_39, %c0_40], %94 {strides = array<i32>} : memref<2x128x8xbf16, #tpu.memory_space<vmem>>, vector<1x128x8xbf16>,
    %95 = arith.truncf %84 : vector<128x8xf32> to vector<128x8xbf16>
    %c0_41 = arith.constant 0 : index
    %c0_42 = arith.constant 0 : index
    %c0_43 = arith.constant 0 : index
    %96 = vector.load %arg12[%c0_41, %c0_42, %c0_43] : memref<2x128x8xbf16, #tpu.memory_space<vmem>>, vector<1x128x8xbf16>
    %97 = vector.shape_cast %96 : vector<1x128x8xbf16> to vector<128x8xbf16>
    %98 = vector.shape_cast %95 : vector<128x8xbf16> to vector<1x128x8xbf16>
    tpu.vector_store %arg12[%c0_41, %c0_42, %c0_43], %98 {strides = array<i32>} : memref<2x128x8xbf16, #tpu.memory_space<vmem>>, vector<1x128x8xbf16>,
    %99 = vector.extract_strided_slice %18 {offsets = [0, 8], sizes = [128, 8], strides = [1, 1]} : vector<128x16xf32> to vector<128x8xf32>
    %100 = vector.extract_strided_slice %99 {offsets = [0, 4], sizes = [128, 4], strides = [1, 1]} : vector<128x8xf32> to vector<128x4xf32>
    %cst_44 = arith.constant 0.000000e+00 : f32
    %101 = vector.broadcast %cst_44 : f32 to vector<128x4xf32>
    %102 = arith.subf %101, %100 : vector<128x4xf32>
    %103 = vector.extract_strided_slice %99 {offsets = [0, 0], sizes = [128, 4], strides = [1, 1]} : vector<128x8xf32> to vector<128x4xf32>
    %104 = tpu.concatenate %102, %103 in 1 : vector<128x4xf32>, vector<128x4xf32> -> vector<128x8xf32>
    %105 = arith.mulf %99, %21 : vector<128x8xf32>
    %106 = arith.mulf %104, %22 : vector<128x8xf32>
    %107 = arith.addf %105, %106 : vector<128x8xf32>
    %108 = vector.extract_strided_slice %20 {offsets = [0, 8], sizes = [128, 8], strides = [1, 1]} : vector<128x16xf32> to vector<128x8xf32>
    %c1_45 = arith.constant 1 : index
    %c0_46 = arith.constant 0 : index
    %c0_47 = arith.constant 0 : index
    %109 = vector.load %arg9[%c1_45, %c0_46, %c0_47] : memref<2x128x8xf32, #tpu.memory_space<vmem>>, vector<1x128x8xf32>
    %110 = vector.shape_cast %109 : vector<1x128x8xf32> to vector<128x8xf32>
    %111 = vector.shape_cast %107 : vector<128x8xf32> to vector<1x128x8xf32>
    tpu.vector_store %arg9[%c1_45, %c0_46, %c0_47], %111 {strides = array<i32>} : memref<2x128x8xf32, #tpu.memory_space<vmem>>, vector<1x128x8xf32>,
    %c1_48 = arith.constant 1 : index
    %c0_49 = arith.constant 0 : index
    %c0_50 = arith.constant 0 : index
    %112 = vector.load %arg10[%c1_48, %c0_49, %c0_50] : memref<2x128x8xf32, #tpu.memory_space<vmem>>, vector<1x128x8xf32>
    %113 = vector.shape_cast %112 : vector<1x128x8xf32> to vector<128x8xf32>
    %114 = vector.shape_cast %108 : vector<128x8xf32> to vector<1x128x8xf32>
    tpu.vector_store %arg10[%c1_48, %c0_49, %c0_50], %114 {strides = array<i32>} : memref<2x128x8xf32, #tpu.memory_space<vmem>>, vector<1x128x8xf32>,
    %115 = arith.truncf %107 : vector<128x8xf32> to vector<128x8xbf16>
    %c1_51 = arith.constant 1 : index
    %c0_52 = arith.constant 0 : index
    %c0_53 = arith.constant 0 : index
    %116 = vector.load %arg11[%c1_51, %c0_52, %c0_53] : memref<2x128x8xbf16, #tpu.memory_space<vmem>>, vector<1x128x8xbf16>
    %117 = vector.shape_cast %116 : vector<1x128x8xbf16> to vector<128x8xbf16>
    %118 = vector.shape_cast %115 : vector<128x8xbf16> to vector<1x128x8xbf16>
    tpu.vector_store %arg11[%c1_51, %c0_52, %c0_53], %118 {strides = array<i32>} : memref<2x128x8xbf16, #tpu.memory_space<vmem>>, vector<1x128x8xbf16>,
    %119 = arith.truncf %108 : vector<128x8xf32> to vector<128x8xbf16>
    %c1_54 = arith.constant 1 : index
    %c0_55 = arith.constant 0 : index
    %c0_56 = arith.constant 0 : index
    %120 = vector.load %arg12[%c1_54, %c0_55, %c0_56] : memref<2x128x8xbf16, #tpu.memory_space<vmem>>, vector<1x128x8xbf16>
    %121 = vector.shape_cast %120 : vector<1x128x8xbf16> to vector<128x8xbf16>
    %122 = vector.shape_cast %119 : vector<128x8xbf16> to vector<1x128x8xbf16>
    tpu.vector_store %arg12[%c1_54, %c0_55, %c0_56], %122 {strides = array<i32>} : memref<2x128x8xbf16, #tpu.memory_space<vmem>>, vector<1x128x8xbf16>,
    return
  }
  func.func @transform_0(%arg0: i32) -> (i32, i32) {
    %c0_i32 = arith.constant 0 : i32
    %c0_i32_0 = arith.constant 0 : i32
    return %arg0, %c0_i32 : i32, i32
  }
  func.func @transform_1(%arg0: i32) -> (i32, i32) {
    %c0_i32 = arith.constant 0 : i32
    %c0_i32_0 = arith.constant 0 : i32
    return %arg0, %c0_i32 : i32, i32
  }
  func.func @transform_2(%arg0: i32) -> (i32, i32) {
    %c0_i32 = arith.constant 0 : i32
    %c0_i32_0 = arith.constant 0 : i32
    return %arg0, %c0_i32 : i32, i32
  }
  func.func @transform_3(%arg0: i32) -> (i32, i32) {
    %c0_i32 = arith.constant 0 : i32
    %c0_i32_0 = arith.constant 0 : i32
    %c0_i32_1 = arith.constant 0 : i32
    return %c0_i32, %c0_i32_0 : i32, i32
  }
  func.func @transform_4(%arg0: i32) -> (i32, i32) {
    %c0_i32 = arith.constant 0 : i32
    %c0_i32_0 = arith.constant 0 : i32
    %c0_i32_1 = arith.constant 0 : i32
    return %c0_i32, %c0_i32_0 : i32, i32
  }
  func.func @transform_5(%arg0: i32) -> (i32, i32) {
    %c0_i32 = arith.constant 0 : i32
    %c0_i32_0 = arith.constant 0 : i32
    %c0_i32_1 = arith.constant 0 : i32
    return %c0_i32, %c0_i32_0 : i32, i32
  }
  func.func @transform_6(%arg0: i32) -> (i32, i32) {
    %c0_i32 = arith.constant 0 : i32
    %c0_i32_0 = arith.constant 0 : i32
    %c0_i32_1 = arith.constant 0 : i32
    return %c0_i32, %c0_i32_0 : i32, i32
  }
  func.func @transform_7(%arg0: i32) -> (i32, i32, i32) {
    %c0_i32 = arith.constant 0 : i32
    %c0_i32_0 = arith.constant 0 : i32
    %c0_i32_1 = arith.constant 0 : i32
    return %c0_i32, %arg0, %c0_i32_0 : i32, i32, i32
  }
  func.func @transform_8(%arg0: i32) -> (i32, i32, i32) {
    %c0_i32 = arith.constant 0 : i32
    %c0_i32_0 = arith.constant 0 : i32
    %c0_i32_1 = arith.constant 0 : i32
    return %c0_i32, %arg0, %c0_i32_0 : i32, i32, i32
  }
  func.func @transform_9(%arg0: i32) -> (i32, i32, i32) {
    %c0_i32 = arith.constant 0 : i32
    %c0_i32_0 = arith.constant 0 : i32
    %c0_i32_1 = arith.constant 0 : i32
    return %c0_i32, %arg0, %c0_i32_0 : i32, i32, i32
  }
  func.func @transform_10(%arg0: i32) -> (i32, i32, i32) {
    %c0_i32 = arith.constant 0 : i32
    %c0_i32_0 = arith.constant 0 : i32
    %c0_i32_1 = arith.constant 0 : i32
    return %c0_i32, %arg0, %c0_i32_0 : i32, i32, i32
  }
  func.func @transform_11(%arg0: i32) -> (i32, i32, i32) {
    %c0_i32 = arith.constant 0 : i32
    %c0_i32_0 = arith.constant 0 : i32
    %c0_i32_1 = arith.constant 0 : i32
    return %c0_i32, %arg0, %c0_i32_0 : i32, i32, i32
  }
}

</mosaic_0001>

<llo_original>
// kernel: tpu_custom_call.1
$region0: #{tpu_custom_call.1}
  #allocation0 [shape = 'u32[]', space=smem, size = 0x4, offset = 0x4, fixed_abs, tag = 'smem constant byte address 0x4 - core index']
  #allocation1 [shape = 'u32[144,128]{1,0:T(1,128)}', space=vmem, size = 0x12000, scoped, tag = 'internal scratch']
  %s0 = inlined_call_operand.vmem [shape: f32[256,32], index: 0, kind: input, shape index: {}]
  %s1 = inlined_call_operand.vmem [shape: f32[256,8], index: 1, kind: input, shape index: {}]
  %s2 = inlined_call_operand.vmem [shape: f32[256,8], index: 2, kind: input, shape index: {}]
  %s3 = inlined_call_operand.vmem [shape: f32[1,32], index: 3, kind: input, shape index: {}]
  %s4 = inlined_call_operand.vmem [shape: bf16[32,32], index: 4, kind: input, shape index: {}]
  %s5 = inlined_call_operand.vmem [shape: bf16[32,16], index: 5, kind: input, shape index: {}]
  %s6 = inlined_call_operand.vmem [shape: bf16[32,16], index: 6, kind: input, shape index: {}]
  %s7 = inlined_call_operand.vmem [shape: bf16[4,256,8], index: 7, kind: output, shape index: {0}]
  %s8 = inlined_call_operand.vmem [shape: f32[2,256,8], index: 8, kind: output, shape index: {1}]
  %s9 = inlined_call_operand.vmem [shape: f32[2,256,8], index: 9, kind: output, shape index: {2}]
  %s10 = inlined_call_operand.vmem [shape: bf16[2,256,8], index: 10, kind: output, shape index: {3}]
  %s11 = inlined_call_operand.vmem [shape: bf16[2,256,8], index: 11, kind: output, shape index: {4}]
  %12 = xla_tuple %s7, %s8, %s9, %s10, %s11
  %s13 = sld [smem:[#allocation0]]
  $region272: #{tpu_custom_call.1} parent=0
    _
  %s15 = ssub.s32 1, %s13
  %s16 = scalar_select 0, %s15, %s13
  $region1: #{tpu_custom_call.1} parent=0
    #allocation2 [shape = 'u8[262144]{0}', space=vmem, size = 0x40000, scoped, tag = 'output window, operand 0']
    #allocation3 [shape = 'u8[262144]{0}', space=vmem, size = 0x40000, scoped, tag = 'output window, operand 1']
    #allocation4 [shape = 'u8[262144]{0}', space=vmem, size = 0x40000, scoped, tag = 'output window, operand 2']
    #allocation5 [shape = 'u8[131072]{0}', space=vmem, size = 0x20000, scoped, tag = 'output window, operand 3']
    #allocation6 [shape = 'u8[131072]{0}', space=vmem, size = 0x20000, scoped, tag = 'output window, operand 4']
    loop: start=0, step=1, limit=4
    $region2: #{tpu_custom_call.1} parent=1 // loop_pre_header
      _
    $region3: #{tpu_custom_call.1} parent=1 // loop_header
      %s18 = sphi 0, %s22
      %p19 = scmp.ge.s32.totalorder %s18, 4
      %s28 = sphi 0, %s30
      %s31 = sphi 0, %s28
      %s32 = sphi 0, %s31
      %s48 = sphi 0, %s32
      %s54 = sphi 0, %s56
      %s57 = sphi 0, %s54
      %s58 = sphi 0, %s57
      %s74 = sphi 0, %s58
      %s80 = sphi 0, %s82
      %s83 = sphi 0, %s80
      %s84 = sphi 0, %s83
      %s100 = sphi 0, %s84
      %s104 = sphi 0, %s104
      %s106 = sphi 0, %s104
      %s107 = sphi 0, %s106
      %s121 = sphi 0, %s107
      %s125 = sphi 0, %s125
      %s127 = sphi 0, %s125
      %s128 = sphi 0, %s127
      %s142 = sphi 0, %s128
      %s146 = sphi 0, %s146
      %s148 = sphi 0, %s146
      %s149 = sphi 0, %s148
      %s163 = sphi 0, %s149
      %s167 = sphi 0, %s167
      %s169 = sphi 0, %s167
      %s170 = sphi 0, %s169
      %s184 = sphi 0, %s170
      %s190 = sphi 0, %s192
      %s193 = sphi 0, %s190
      %s194 = sphi 0, %s193
      %s210 = sphi 0, %s194
      %s216 = sphi 0, %s218
      %s219 = sphi 0, %s216
      %s220 = sphi 0, %s219
      %s236 = sphi 0, %s220
      %s242 = sphi 0, %s244
      %s245 = sphi 0, %s242
      %s246 = sphi 0, %s245
      %s262 = sphi 0, %s246
      %s268 = sphi 0, %s270
      %s271 = sphi 0, %s268
      %s272 = sphi 0, %s271
      %s288 = sphi 0, %s272
      %s294 = sphi 0, %s296
      %s297 = sphi 0, %s294
      %s298 = sphi 0, %s297
      %s314 = sphi 0, %s298
    $region4: #{tpu_custom_call.1} parent=1 // loop_header_branch
      %21 = sbr.rel (%p19) target = $region8
    $region5: #{tpu_custom_call.1} parent=1 // loop_body
      %s23 = ssub.s32 %s18, 1
      %s24 = ssub.s32 %s18, 2
      %s25 = sadd.s32 %s18, 1
      %s26 = ssub.s32 %s18, %s25
      %p27 = scmp.eq.s32.totalorder %s26, 0
      %s29 = sadd.s32 %s28, 1
      %s30 = scalar_select %p27, %s28, %s29
      %p33 = pneg %p27
      %p34 = scmp.eq.s32.totalorder %s18, 1
      %p35 = por %p33, %p34
      %p36 = scmp.ne.s32.totalorder %s28, %s31
      %p37 = scmp.eq.s32.totalorder %s18, 0
      %p38 = por %p36, %p37
      %p39 = scmp.ne.s32.totalorder %s28, %s31
      %p40 = scmp.eq.s32.totalorder %s23, 1
      %p41 = por %p39, %p40
      %p42 = scmp.ne.s32.totalorder %s31, %s32
      %p43 = scmp.eq.s32.totalorder %s23, 0
      %p44 = por %p42, %p43
      %p45 = scmp.ne.s32.totalorder %s31, %s32
      %p46 = scmp.eq.s32.totalorder %s24, 1
      %p47 = por %p45, %p46
      %p49 = scmp.ne.s32.totalorder %s32, %s48
      %p50 = scmp.eq.s32.totalorder %s24, 0
      %p51 = por %p49, %p50
      %s52 = ssub.s32 %s18, %s25
      %p53 = scmp.eq.s32.totalorder %s52, 0
      %s55 = sadd.s32 %s54, 1
      %s56 = scalar_select %p53, %s54, %s55
      %p59 = pneg %p53
      %p60 = scmp.eq.s32.totalorder %s18, 1
      %p61 = por %p59, %p60
      %p62 = scmp.ne.s32.totalorder %s54, %s57
      %p63 = scmp.eq.s32.totalorder %s18, 0
      %p64 = por %p62, %p63
      %p65 = scmp.ne.s32.totalorder %s54, %s57
      %p66 = scmp.eq.s32.totalorder %s23, 1
      %p67 = por %p65, %p66
      %p68 = scmp.ne.s32.totalorder %s57, %s58
      %p69 = scmp.eq.s32.totalorder %s23, 0
      %p70 = por %p68, %p69
      %p71 = scmp.ne.s32.totalorder %s57, %s58
      %p72 = scmp.eq.s32.totalorder %s24, 1
      %p73 = por %p71, %p72
      %p75 = scmp.ne.s32.totalorder %s58, %s74
      %p76 = scmp.eq.s32.totalorder %s24, 0
      %p77 = por %p75, %p76
      %s78 = ssub.s32 %s18, %s25
      %p79 = scmp.eq.s32.totalorder %s78, 0
      %s81 = sadd.s32 %s80, 1
      %s82 = scalar_select %p79, %s80, %s81
      %p85 = pneg %p79
      %p86 = scmp.eq.s32.totalorder %s18, 1
      %p87 = por %p85, %p86
      %p88 = scmp.ne.s32.totalorder %s80, %s83
      %p89 = scmp.eq.s32.totalorder %s18, 0
      %p90 = por %p88, %p89
      %p91 = scmp.ne.s32.totalorder %s80, %s83
      %p92 = scmp.eq.s32.totalorder %s23, 1
      %p93 = por %p91, %p92
      %p94 = scmp.ne.s32.totalorder %s83, %s84
      %p95 = scmp.eq.s32.totalorder %s23, 0
      %p96 = por %p94, %p95
      %p97 = scmp.ne.s32.totalorder %s83, %s84
      %p98 = scmp.eq.s32.totalorder %s24, 1
      %p99 = por %p97, %p98
      %p101 = scmp.ne.s32.totalorder %s84, %s100
      %p102 = scmp.eq.s32.totalorder %s24, 0
      %p103 = por %p101, %p102
      %s105 = sadd.s32 %s104, 1
      %p108 = scmp.eq.s32.totalorder %s18, 1
      %p109 = scmp.ne.s32.totalorder %s104, %s106
      %p110 = scmp.eq.s32.totalorder %s18, 0
      %p111 = por %p109, %p110
      %p112 = scmp.ne.s32.totalorder %s104, %s106
      %p113 = scmp.eq.s32.totalorder %s23, 1
      %p114 = por %p112, %p113
      %p115 = scmp.ne.s32.totalorder %s106, %s107
      %p116 = scmp.eq.s32.totalorder %s23, 0
      %p117 = por %p115, %p116
      %p118 = scmp.ne.s32.totalorder %s106, %s107
      %p119 = scmp.eq.s32.totalorder %s24, 1
      %p120 = por %p118, %p119
      %p122 = scmp.ne.s32.totalorder %s107, %s121
      %p123 = scmp.eq.s32.totalorder %s24, 0
      %p124 = por %p122, %p123
      %s126 = sadd.s32 %s125, 1
      %p129 = scmp.eq.s32.totalorder %s18, 1
      %p130 = scmp.ne.s32.totalorder %s125, %s127
      %p131 = scmp.eq.s32.totalorder %s18, 0
      %p132 = por %p130, %p131
      %p133 = scmp.ne.s32.totalorder %s125, %s127
      %p134 = scmp.eq.s32.totalorder %s23, 1
      %p135 = por %p133, %p134
      %p136 = scmp.ne.s32.totalorder %s127, %s128
      %p137 = scmp.eq.s32.totalorder %s23, 0
      %p138 = por %p136, %p137
      %p139 = scmp.ne.s32.totalorder %s127, %s128
      %p140 = scmp.eq.s32.totalorder %s24, 1
      %p141 = por %p139, %p140
      %p143 = scmp.ne.s32.totalorder %s128, %s142
      %p144 = scmp.eq.s32.totalorder %s24, 0
      %p145 = por %p143, %p144
      %s147 = sadd.s32 %s146, 1
      %p150 = scmp.eq.s32.totalorder %s18, 1
      %p151 = scmp.ne.s32.totalorder %s146, %s148
      %p152 = scmp.eq.s32.totalorder %s18, 0
      %p153 = por %p151, %p152
      %p154 = scmp.ne.s32.totalorder %s146, %s148
      %p155 = scmp.eq.s32.totalorder %s23, 1
      %p156 = por %p154, %p155
      %p157 = scmp.ne.s32.totalorder %s148, %s149
      %p158 = scmp.eq.s32.totalorder %s23, 0
      %p159 = por %p157, %p158
      %p160 = scmp.ne.s32.totalorder %s148, %s149
      %p161 = scmp.eq.s32.totalorder %s24, 1
      %p162 = por %p160, %p161
      %p164 = scmp.ne.s32.totalorder %s149, %s163
      %p165 = scmp.eq.s32.totalorder %s24, 0
      %p166 = por %p164, %p165
      %s168 = sadd.s32 %s167, 1
      %p171 = scmp.eq.s32.totalorder %s18, 1
      %p172 = scmp.ne.s32.totalorder %s167, %s169
      %p173 = scmp.eq.s32.totalorder %s18, 0
      %p174 = por %p172, %p173
      %p175 = scmp.ne.s32.totalorder %s167, %s169
      %p176 = scmp.eq.s32.totalorder %s23, 1
      %p177 = por %p175, %p176
      %p178 = scmp.ne.s32.totalorder %s169, %s170
      %p179 = scmp.eq.s32.totalorder %s23, 0
      %p180 = por %p178, %p179
      %p181 = scmp.ne.s32.totalorder %s169, %s170
      %p182 = scmp.eq.s32.totalorder %s24, 1
      %p183 = por %p181, %p182
      %p185 = scmp.ne.s32.totalorder %s170, %s184
      %p186 = scmp.eq.s32.totalorder %s24, 0
      %p187 = por %p185, %p186
      %s188 = ssub.s32 %s18, %s25
      %p189 = scmp.eq.s32.totalorder %s188, 0
      %s191 = sadd.s32 %s190, 1
      %s192 = scalar_select %p189, %s190, %s191
      %p195 = pneg %p189
      %p196 = scmp.eq.s32.totalorder %s18, 1
      %p197 = por %p195, %p196
      %p198 = scmp.ne.s32.totalorder %s190, %s193
      %p199 = scmp.eq.s32.totalorder %s18, 0
      %p200 = por %p198, %p199
      %p201 = scmp.ne.s32.totalorder %s190, %s193
      %p202 = scmp.eq.s32.totalorder %s23, 1
      %p203 = por %p201, %p202
      %p204 = scmp.ne.s32.totalorder %s193, %s194
      %p205 = scmp.eq.s32.totalorder %s23, 0
      %p206 = por %p204, %p205
      %p207 = scmp.ne.s32.totalorder %s193, %s194
      %p208 = scmp.eq.s32.totalorder %s24, 1
      %p209 = por %p207, %p208
      %p211 = scmp.ne.s32.totalorder %s194, %s210
      %p212 = scmp.eq.s32.totalorder %s24, 0
      %p213 = por %p211, %p212
      %s214 = ssub.s32 %s18, %s25
      %p215 = scmp.eq.s32.totalorder %s214, 0
      %s217 = sadd.s32 %s216, 1
      %s218 = scalar_select %p215, %s216, %s217
      %p221 = pneg %p215
      %p222 = scmp.eq.s32.totalorder %s18, 1
      %p223 = por %p221, %p222
      %p224 = scmp.ne.s32.totalorder %s216, %s219
      %p225 = scmp.eq.s32.totalorder %s18, 0
      %p226 = por %p224, %p225
      %p227 = scmp.ne.s32.totalorder %s216, %s219
      %p228 = scmp.eq.s32.totalorder %s23, 1
      %p229 = por %p227, %p228
      %p230 = scmp.ne.s32.totalorder %s219, %s220
      %p231 = scmp.eq.s32.totalorder %s23, 0
      %p232 = por %p230, %p231
      %p233 = scmp.ne.s32.totalorder %s219, %s220
      %p234 = scmp.eq.s32.totalorder %s24, 1
      %p235 = por %p233, %p234
      %p237 = scmp.ne.s32.totalorder %s220, %s236
      %p238 = scmp.eq.s32.totalorder %s24, 0
      %p239 = por %p237, %p238
      %s240 = ssub.s32 %s18, %s25
      %p241 = scmp.eq.s32.totalorder %s240, 0
      %s243 = sadd.s32 %s242, 1
      %s244 = scalar_select %p241, %s242, %s243
      %p247 = pneg %p241
      %p248 = scmp.eq.s32.totalorder %s18, 1
      %p249 = por %p247, %p248
      %p250 = scmp.ne.s32.totalorder %s242, %s245
      %p251 = scmp.eq.s32.totalorder %s18, 0
      %p252 = por %p250, %p251
      %p253 = scmp.ne.s32.totalorder %s242, %s245
      %p254 = scmp.eq.s32.totalorder %s23, 1
      %p255 = por %p253, %p254
      %p256 = scmp.ne.s32.totalorder %s245, %s246
      %p257 = scmp.eq.s32.totalorder %s23, 0
      %p258 = por %p256, %p257
      %p259 = scmp.ne.s32.totalorder %s245, %s246
      %p260 = scmp.eq.s32.totalorder %s24, 1
      %p261 = por %p259, %p260
      %p263 = scmp.ne.s32.totalorder %s246, %s262
      %p264 = scmp.eq.s32.totalorder %s24, 0
      %p265 = por %p263, %p264
      %s266 = ssub.s32 %s18, %s25
      %p267 = scmp.eq.s32.totalorder %s266, 0
      %s269 = sadd.s32 %s268, 1
      %s270 = scalar_select %p267, %s268, %s269
      %p273 = pneg %p267
      %p274 = scmp.eq.s32.totalorder %s18, 1
      %p275 = por %p273, %p274
      %p276 = scmp.ne.s32.totalorder %s268, %s271
      %p277 = scmp.eq.s32.totalorder %s18, 0
      %p278 = por %p276, %p277
      %p279 = scmp.ne.s32.totalorder %s268, %s271
      %p280 = scmp.eq.s32.totalorder %s23, 1
      %p281 = por %p279, %p280
      %p282 = scmp.ne.s32.totalorder %s271, %s272
      %p283 = scmp.eq.s32.totalorder %s23, 0
      %p284 = por %p282, %p283
      %p285 = scmp.ne.s32.totalorder %s271, %s272
      %p286 = scmp.eq.s32.totalorder %s24, 1
      %p287 = por %p285, %p286
      %p289 = scmp.ne.s32.totalorder %s272, %s288
      %p290 = scmp.eq.s32.totalorder %s24, 0
      %p291 = por %p289, %p290
      %s292 = ssub.s32 %s18, %s25
      %p293 = scmp.eq.s32.totalorder %s292, 0
      %s295 = sadd.s32 %s294, 1
      %s296 = scalar_select %p293, %s294, %s295
      %p299 = pneg %p293
      %p300 = scmp.eq.s32.totalorder %s18, 1
      %p301 = por %p299, %p300
      %p302 = scmp.ne.s32.totalorder %s294, %s297
      %p303 = scmp.eq.s32.totalorder %s18, 0
      %p304 = por %p302, %p303
      %p305 = scmp.ne.s32.totalorder %s294, %s297
      %p306 = scmp.eq.s32.totalorder %s23, 1
      %p307 = por %p305, %p306
      %p308 = scmp.ne.s32.totalorder %s297, %s298
      %p309 = scmp.eq.s32.totalorder %s23, 0
      %p310 = por %p308, %p309
      %p311 = scmp.ne.s32.totalorder %s297, %s298
      %p312 = scmp.eq.s32.totalorder %s24, 1
      %p313 = por %p311, %p312
      %p315 = scmp.ne.s32.totalorder %s298, %s314
      %p316 = scmp.eq.s32.totalorder %s24, 0
      %p317 = por %p315, %p316
      %p318 = scmp.le.s32.totalorder 1, %s18
      %p319 = scmp.lt.s32.totalorder %s18, 3
      %p320 = pnand %p318, %p319
      %p321 = pneg %p320
      // Predicated region
      $region9: #{tpu_custom_call.1} parent=5 // pred_check
        _
      $region10: #{tpu_custom_call.1} parent=5 // pred_check_branch
        %323 = sbr.rel (%p320) target = $region12
      $region11: #{tpu_custom_call.1} parent=5 // pred_region
        %s324 = ssub.s32 %s18, 1
        // Predicated region
        $region13: #{tpu_custom_call.1} parent=11 // pred_check
          %p325 = pneg %p117
        $region14: #{tpu_custom_call.1} parent=11 // pred_check_branch
          %327 = sbr.rel (%p325) target = $region16
        $region15: #{tpu_custom_call.1} parent=11 // pred_region
          _
        $region16: #{tpu_custom_call.1} parent=11 // pred_fallthru
          _
        // Predicated region
        $region17: #{tpu_custom_call.1} parent=11 // pred_check
          %p328 = pneg %p138
        $region18: #{tpu_custom_call.1} parent=11 // pred_check_branch
          %330 = sbr.rel (%p328) target = $region20
        $region19: #{tpu_custom_call.1} parent=11 // pred_region
          _
        $region20: #{tpu_custom_call.1} parent=11 // pred_fallthru
          _
        // Predicated region
        $region21: #{tpu_custom_call.1} parent=11 // pred_check
          %p331 = pneg %p159
        $region22: #{tpu_custom_call.1} parent=11 // pred_check_branch
          %333 = sbr.rel (%p331) target = $region24
        $region23: #{tpu_custom_call.1} parent=11 // pred_region
          _
        $region24: #{tpu_custom_call.1} parent=11 // pred_fallthru
          _
        // Predicated region
        $region25: #{tpu_custom_call.1} parent=11 // pred_check
          %p334 = pneg %p180
        $region26: #{tpu_custom_call.1} parent=11 // pred_check_branch
          %336 = sbr.rel (%p334) target = $region28
        $region27: #{tpu_custom_call.1} parent=11 // pred_region
          _
        $region28: #{tpu_custom_call.1} parent=11 // pred_fallthru
          _
      $region12: #{tpu_custom_call.1} parent=5 // pred_fallthru
        _
      %p337 = scmp.lt.s32.totalorder %s18, 2
      // Predicated region
      $region29: #{tpu_custom_call.1} parent=5 // pred_check
        %p338 = pneg %p337
      $region30: #{tpu_custom_call.1} parent=5 // pred_check_branch
        %340 = sbr.rel (%p338) target = $region32
      $region31: #{tpu_custom_call.1} parent=5 // pred_region
        // Predicated region
        $region33: #{tpu_custom_call.1} parent=31 // pred_check
          %p341 = pneg %p38
        $region34: #{tpu_custom_call.1} parent=31 // pred_check_branch
          %343 = sbr.rel (%p341) target = $region36
        $region35: #{tpu_custom_call.1} parent=31 // pred_region
          %s344 = smul.u32 16, %s18
          %p345 = scmp.lt.s32.totalorder %s344, 31
          %s346 = scalar_select %p345, %s344, 31
          %s347 = smul.addr %s346, 8
          %s348 = scalar_lea.vmem %s0, %s347
          %s349 = smul.u32 16, %s18
        $region36: #{tpu_custom_call.1} parent=31 // pred_fallthru
          _
        // Predicated region
        $region37: #{tpu_custom_call.1} parent=31 // pred_check
          %p350 = pneg %p64
        $region38: #{tpu_custom_call.1} parent=31 // pred_check_branch
          %352 = sbr.rel (%p350) target = $region40
        $region39: #{tpu_custom_call.1} parent=31 // pred_region
          %s353 = smul.u32 16, %s18
          %p354 = scmp.lt.s32.totalorder %s353, 31
          %s355 = scalar_select %p354, %s353, 31
          %s356 = smul.addr %s355, 8
          %s357 = scalar_lea.vmem %s1, %s356
          %s358 = smul.u32 16, %s18
        $region40: #{tpu_custom_call.1} parent=31 // pred_fallthru
          _
        // Predicated region
        $region41: #{tpu_custom_call.1} parent=31 // pred_check
          %p359 = pneg %p90
        $region42: #{tpu_custom_call.1} parent=31 // pred_check_branch
          %361 = sbr.rel (%p359) target = $region44
        $region43: #{tpu_custom_call.1} parent=31 // pred_region
          %s362 = smul.u32 16, %s18
          %p363 = scmp.lt.s32.totalorder %s362, 31
          %s364 = scalar_select %p363, %s362, 31
          %s365 = smul.addr %s364, 8
          %s366 = scalar_lea.vmem %s2, %s365
          %s367 = smul.u32 16, %s18
        $region44: #{tpu_custom_call.1} parent=31 // pred_fallthru
          _
      $region32: #{tpu_custom_call.1} parent=5 // pred_fallthru
        _
      %p368 = scmp.le.s32.totalorder 1, %s18
      %p369 = scmp.lt.s32.totalorder %s18, 3
      %p370 = pnand %p368, %p369
      %p371 = pneg %p370
      // Predicated region
      $region45: #{tpu_custom_call.1} parent=5 // pred_check
        _
      $region46: #{tpu_custom_call.1} parent=5 // pred_check_branch
        %373 = sbr.rel (%p370) target = $region48
      $region47: #{tpu_custom_call.1} parent=5 // pred_region
        %s374 = ssub.s32 %s18, 1
        %s375 = smul.u32 16, %s23
        %p376 = scmp.lt.s32.totalorder %s375, 31
        %s377 = scalar_select %p376, %s375, 31
        %s378 = smul.addr %s377, 8
        %s379 = scalar_lea.vmem %s0, %s378
        %p380 = pneg %p44
        %p381 = pneg %p41
        %s382 = smul.u32 16, %s23
        %p383 = scmp.lt.s32.totalorder %s382, 31
        %s384 = scalar_select %p383, %s382, 31
        %s385 = smul.addr %s384, 8
        %s386 = scalar_lea.vmem %s1, %s385
        %p387 = pneg %p70
        %p388 = pneg %p67
        %s389 = smul.u32 16, %s23
        %p390 = scmp.lt.s32.totalorder %s389, 31
        %s391 = scalar_select %p390, %s389, 31
        %s392 = smul.addr %s391, 8
        %s393 = scalar_lea.vmem %s2, %s392
        %p394 = pneg %p96
        %p395 = pneg %p93
        %p396 = pneg %p117
        %p397 = pneg %p114
        %p398 = pneg %p138
        %p399 = pneg %p135
        %p400 = pneg %p159
        %p401 = pneg %p156
        %p402 = pneg %p180
        %p403 = pneg %p177
        %p404 = pneg %p206
        %p405 = pneg %p203
        %s406 = sand.u32 %s193, 1
        %s407 = sand.u32 %s193, 1
        %s408 = smul.addr %s407, 256
        %s409 = scalar_lea.vmem [#allocation2], %s408
        %p410 = pneg %p232
        %p411 = pneg %p229
        %s412 = sand.u32 %s219, 1
        %s413 = sand.u32 %s219, 1
        %s414 = smul.addr %s413, 256
        %s415 = scalar_lea.vmem [#allocation3], %s414
        %p416 = pneg %p258
        %p417 = pneg %p255
        %s418 = sand.u32 %s245, 1
        %s419 = sand.u32 %s245, 1
        %s420 = smul.addr %s419, 256
        %s421 = scalar_lea.vmem [#allocation4], %s420
        %p422 = pneg %p284
        %p423 = pneg %p281
        %s424 = sand.u32 %s271, 1
        %s425 = sand.u32 %s271, 1
        %s426 = smul.addr %s425, 128
        %s427 = scalar_lea.vmem [#allocation5], %s426
        %p428 = pneg %p310
        %p429 = pneg %p307
        %s430 = sand.u32 %s297, 1
        %s431 = sand.u32 %s297, 1
        %s432 = smul.addr %s431, 128
        %s433 = scalar_lea.vmem [#allocation6], %s432
        %s434 = smul.u32 16, %s23
        %p435 = scmp.lt.s32.totalorder %s434, 31
        %s436 = scalar_select %p435, %s434, 31
        %s437 = smul.addr %s436, 8
        %s438 = scalar_lea.vmem %s0, %s437
        %s439 = smul.u32 16, %s23
        %s440 = smul.u32 16, %s23
        %p441 = scmp.lt.s32.totalorder %s440, 31
        %s442 = scalar_select %p441, %s440, 31
        %s443 = smul.addr %s442, 8
        %s444 = scalar_lea.vmem %s1, %s443
        %s445 = smul.u32 16, %s23
        %s446 = smul.u32 16, %s23
        %p447 = scmp.lt.s32.totalorder %s446, 31
        %s448 = scalar_select %p447, %s446, 31
        %s449 = smul.addr %s448, 8
        %s450 = scalar_lea.vmem %s2, %s449
        %s451 = smul.u32 16, %s23
        %s452 = smul.u32 16, %s23
        %s453 = smul.u32 16, %s23
        %s454 = smul.u32 16, %s23
        %s455 = smul.u32 16, %s23
        %s456 = smul.u32 16, %s23
        %v458 = vld [vmem:[%s438] sm:$0xff]
        %v459 = vld [vmem:[%s438 + $0x8] sm:$0xff]
        %v460 = vld [vmem:[%s438 + $0x10] sm:$0xff]
        %v461 = vld [vmem:[%s438 + $0x18] sm:$0xff]
        %v462 = vld [vmem:[%s438 + $0x20] sm:$0xff]
        %v463 = vld [vmem:[%s438 + $0x28] sm:$0xff]
        %v464 = vld [vmem:[%s438 + $0x30] sm:$0xff]
        %v465 = vld [vmem:[%s438 + $0x38] sm:$0xff]
        %v466 = vld [vmem:[%s438 + $0x40] sm:$0xff]
        %v467 = vld [vmem:[%s438 + $0x48] sm:$0xff]
        %v468 = vld [vmem:[%s438 + $0x50] sm:$0xff]
        %v469 = vld [vmem:[%s438 + $0x58] sm:$0xff]
        %v470 = vld [vmem:[%s438 + $0x60] sm:$0xff]
        %v471 = vld [vmem:[%s438 + $0x68] sm:$0xff]
        %v472 = vld [vmem:[%s438 + $0x70] sm:$0xff]
        %v473 = vld [vmem:[%s438 + $0x78] sm:$0xff]
        %v474 = vld [vmem:[%s3] sm:$0x1]
        %v475 = vmul.f32 %v458, %v458
        %v476 = vmul.f32 %v459, %v459
        %v477 = vmul.f32 %v460, %v460
        %v478 = vmul.f32 %v461, %v461
        %v479 = vmul.f32 %v462, %v462
        %v480 = vmul.f32 %v463, %v463
        %v481 = vmul.f32 %v464, %v464
        %v482 = vmul.f32 %v465, %v465
        %v483 = vmul.f32 %v466, %v466
        %v484 = vmul.f32 %v467, %v467
        %v485 = vmul.f32 %v468, %v468
        %v486 = vmul.f32 %v469, %v469
        %v487 = vmul.f32 %v470, %v470
        %v488 = vmul.f32 %v471, %v471
        %v489 = vmul.f32 %v472, %v472
        %v490 = vmul.f32 %v473, %v473
        %vm491 = vcmask 261120
        %v492 = vsel %vm491, %v475, 0.0
        %493 = vadd.xlane.f32.xlu0 %v492
        %v494 = vpop.xlane.xlu0 %493
        %v495 = vsel %vm491, %v476, 0.0
        %496 = vadd.xlane.f32.xlu0 %v495
        %v497 = vpop.xlane.xlu0 %496
        %v498 = vsel %vm491, %v477, 0.0
        %499 = vadd.xlane.f32.xlu0 %v498
        %v500 = vpop.xlane.xlu0 %499
        %v501 = vsel %vm491, %v478, 0.0
        %502 = vadd.xlane.f32.xlu0 %v501
        %v503 = vpop.xlane.xlu0 %502
        %v504 = vsel %vm491, %v479, 0.0
        %505 = vadd.xlane.f32.xlu0 %v504
        %v506 = vpop.xlane.xlu0 %505
        %v507 = vsel %vm491, %v480, 0.0
        %508 = vadd.xlane.f32.xlu0 %v507
        %v509 = vpop.xlane.xlu0 %508
        %v510 = vsel %vm491, %v481, 0.0
        %511 = vadd.xlane.f32.xlu0 %v510
        %v512 = vpop.xlane.xlu0 %511
        %v513 = vsel %vm491, %v482, 0.0
        %514 = vadd.xlane.f32.xlu0 %v513
        %v515 = vpop.xlane.xlu0 %514
        %v516 = vsel %vm491, %v483, 0.0
        %517 = vadd.xlane.f32.xlu0 %v516
        %v518 = vpop.xlane.xlu0 %517
        %v519 = vsel %vm491, %v484, 0.0
        %520 = vadd.xlane.f32.xlu0 %v519
        %v521 = vpop.xlane.xlu0 %520
        %v522 = vsel %vm491, %v485, 0.0
        %523 = vadd.xlane.f32.xlu0 %v522
        %v524 = vpop.xlane.xlu0 %523
        %v525 = vsel %vm491, %v486, 0.0
        %526 = vadd.xlane.f32.xlu0 %v525
        %v527 = vpop.xlane.xlu0 %526
        %v528 = vsel %vm491, %v487, 0.0
        %529 = vadd.xlane.f32.xlu0 %v528
        %v530 = vpop.xlane.xlu0 %529
        %v531 = vsel %vm491, %v488, 0.0
        %532 = vadd.xlane.f32.xlu0 %v531
        %v533 = vpop.xlane.xlu0 %532
        %v534 = vsel %vm491, %v489, 0.0
        %535 = vadd.xlane.f32.xlu0 %v534
        %v536 = vpop.xlane.xlu0 %535
        %v537 = vsel %vm491, %v490, 0.0
        %538 = vadd.xlane.f32.xlu0 %v537
        %v539 = vpop.xlane.xlu0 %538
        %v540 = vrcp.pop 32.0
        %v541 = vmul.f32 %v494, %v540
        %v542 = vmul.f32 %v497, %v540
        %v543 = vmul.f32 %v500, %v540
        %v544 = vmul.f32 %v503, %v540
        %v545 = vmul.f32 %v506, %v540
        %v546 = vmul.f32 %v509, %v540
        %v547 = vmul.f32 %v512, %v540
        %v548 = vmul.f32 %v515, %v540
        %v549 = vmul.f32 %v518, %v540
        %v550 = vmul.f32 %v521, %v540
        %v551 = vmul.f32 %v524, %v540
        %v552 = vmul.f32 %v527, %v540
        %v553 = vmul.f32 %v530, %v540
        %v554 = vmul.f32 %v533, %v540
        %v555 = vmul.f32 %v536, %v540
        %v556 = vmul.f32 %v539, %v540
        %v557 = vadd.f32 %v541, 1e-05
        %v558 = vadd.f32 %v542, 1e-05
        %v559 = vadd.f32 %v543, 1e-05
        %v560 = vadd.f32 %v544, 1e-05
        %v561 = vadd.f32 %v545, 1e-05
        %v562 = vadd.f32 %v546, 1e-05
        %v563 = vadd.f32 %v547, 1e-05
        %v564 = vadd.f32 %v548, 1e-05
        %v565 = vadd.f32 %v549, 1e-05
        %v566 = vadd.f32 %v550, 1e-05
        %v567 = vadd.f32 %v551, 1e-05
        %v568 = vadd.f32 %v552, 1e-05
        %v569 = vadd.f32 %v553, 1e-05
        %v570 = vadd.f32 %v554, 1e-05
        %v571 = vadd.f32 %v555, 1e-05
        %v572 = vadd.f32 %v556, 1e-05
        %v573 = vrsqrt.pop %v557
        %v574 = vrsqrt.pop %v558
        %v575 = vrsqrt.pop %v559
        %v576 = vrsqrt.pop %v560
        %v577 = vrsqrt.pop %v561
        %v578 = vrsqrt.pop %v562
        %v579 = vrsqrt.pop %v563
        %v580 = vrsqrt.pop %v564
        %v581 = vrsqrt.pop %v565
        %v582 = vrsqrt.pop %v566
        %v583 = vrsqrt.pop %v567
        %v584 = vrsqrt.pop %v568
        %v585 = vrsqrt.pop %v569
        %v586 = vrsqrt.pop %v570
        %v587 = vrsqrt.pop %v571
        %v588 = vrsqrt.pop %v572
        %v589 = vmul.f32 %v458, %v573
        %v590 = vmul.f32 %v459, %v574
        %v591 = vmul.f32 %v460, %v575
        %v592 = vmul.f32 %v461, %v576
        %v593 = vmul.f32 %v462, %v577
        %v594 = vmul.f32 %v463, %v578
        %v595 = vmul.f32 %v464, %v579
        %v596 = vmul.f32 %v465, %v580
        %v597 = vmul.f32 %v466, %v581
        %v598 = vmul.f32 %v467, %v582
        %v599 = vmul.f32 %v468, %v583
        %v600 = vmul.f32 %v469, %v584
        %v601 = vmul.f32 %v470, %v585
        %v602 = vmul.f32 %v471, %v586
        %v603 = vmul.f32 %v472, %v587
        %v604 = vmul.f32 %v473, %v588
        %v606 = vlaneseq
        %v607 = vshrl.u32 %v606, 7
        %v608 = vsub.s32 0, %v607
        %v609 = vrot.slane %v474, %v608
        %v611 = vmul.f32 %v589, %v609
        %v612 = vmul.f32 %v590, %v609
        %v613 = vmul.f32 %v591, %v609
        %v614 = vmul.f32 %v592, %v609
        %v615 = vmul.f32 %v593, %v609
        %v616 = vmul.f32 %v594, %v609
        %v617 = vmul.f32 %v595, %v609
        %v618 = vmul.f32 %v596, %v609
        %v619 = vmul.f32 %v597, %v609
        %v620 = vmul.f32 %v598, %v609
        %v621 = vmul.f32 %v599, %v609
        %v622 = vmul.f32 %v600, %v609
        %v623 = vmul.f32 %v601, %v609
        %v624 = vmul.f32 %v602, %v609
        %v625 = vmul.f32 %v603, %v609
        %v626 = vmul.f32 %v604, %v609
        %v627 = vpack.c.bf16 %v612, %v611
        %v628 = vpack.c.bf16 %v614, %v613
        %v629 = vpack.c.bf16 %v616, %v615
        %v630 = vpack.c.bf16 %v618, %v617
        %v631 = vpack.c.bf16 %v620, %v619
        %v632 = vpack.c.bf16 %v622, %v621
        %v633 = vpack.c.bf16 %v624, %v623
        %v634 = vpack.c.bf16 %v626, %v625
        %v635 = vld [vmem:[%s4] sm:$0xf]
        %v636 = vld [vmem:[%s4 + $0x4] sm:$0xf]
        %v637 = vld [vmem:[%s4 + $0x8] sm:$0xf]
        %v638 = vld [vmem:[%s4 + $0xc] sm:$0xf]
        %v643 = vunpack.c.l.b16 %v635
        %v644 = vunpack.c.l.b16 %v636
        %v645 = vunpack.c.l.b16 %v637
        %v646 = vunpack.c.l.b16 %v638
        %v647 = vpack.c.b16 %v644, %v643
        %v648 = vpack.c.b16 %v646, %v645
        %v652 = vsel %vm491, %v627, 0
        %v655 = vsel %vm491, %v628, 0
        %v658 = vsel %vm491, %v629, 0
        %v661 = vsel %vm491, %v630, 0
        %v664 = vsel %vm491, %v631, 0
        %v667 = vsel %vm491, %v632, 0
        %v670 = vsel %vm491, %v633, 0
        %v673 = vsel %vm491, %v634, 0
        %675 = vmatprep.subr.bf16.mxu0 0
        %676 = vmatpush1.bf16.msra.mxu0 %v647
        %677 = vmatprep.subr.bf16.mxu0 0
        %678 = vmatpush1.bf16.msra.mxu0 %v648
        %679 = vmatprep.subr.bf16.mxu0 0
        %680 = vmatpush1.bf16.msra.mxu0 0
        %681 = vmatprep.subr.bf16.mxu0 0
        %682 = vmatpush1.bf16.msra.mxu0 0
        %683 = vmatprep.subr.bf16.mxu0 0
        %684 = vmatpush1.bf16.msra.mxu0 0
        %685 = vmatprep.subr.bf16.mxu0 0
        %686 = vmatpush1.bf16.msra.mxu0 0
        %687 = vmatprep.subr.bf16.mxu0 0
        %688 = vmatpush1.bf16.msra.mxu0 0
        %689 = vmatprep.subr.bf16.mxu0 0
        %690 = vmatpush1.bf16.msra.mxu0 0
        %691 = vmatprep.subr.bf16.mxu0 0
        %692 = vmatpush1.bf16.msra.mxu0 0
        %693 = vmatprep.subr.bf16.mxu0 0
        %694 = vmatpush1.bf16.msra.mxu0 0
        %695 = vmatprep.subr.bf16.mxu0 0
        %696 = vmatpush1.bf16.msra.mxu0 0
        %697 = vmatprep.subr.bf16.mxu0 0
        %698 = vmatpush1.bf16.msra.mxu0 0
        %699 = vmatprep.subr.bf16.mxu0 0
        %700 = vmatpush1.bf16.msra.mxu0 0
        %701 = vmatprep.subr.bf16.mxu0 0
        %702 = vmatpush1.bf16.msra.mxu0 0
        %703 = vmatprep.subr.bf16.mxu0 0
        %704 = vmatpush1.bf16.msra.mxu0 0
        %705 = vmatprep.subr.bf16.mxu0 0
        %706 = vmatpush1.bf16.msra.mxu0 0
        %707 = vmatprep.mubr.bf16.mxu0 0
        %708 = vmatmul.mubr.bf16.gmra.mrb[0].mxu0 %v652
        %v709 = vpop.f32.mrb[0].mxu0
        %v710 = vadd.f32 0.0, %v709
        %v711 = vpop.f32.mrb[0].mxu0
        %v712 = vpop.f32.mrb[0].mxu0
        %v713 = vadd.f32 0.0, %v712
        %v714 = vpop.f32.mrb[0].mxu0
        %715 = vmatprep.mubr.bf16.mxu0 0
        %716 = vmatmul.mubr.bf16.gmra.mrb[0].mxu0 %v655
        %v717 = vpop.f32.mrb[0].mxu0
        %v718 = vadd.f32 0.0, %v717
        %v719 = vpop.f32.mrb[0].mxu0
        %v720 = vpop.f32.mrb[0].mxu0
        %v721 = vadd.f32 0.0, %v720
        %v722 = vpop.f32.mrb[0].mxu0
        %723 = vmatprep.mubr.bf16.mxu0 0
        %724 = vmatmul.mubr.bf16.gmra.mrb[0].mxu0 %v658
        %v725 = vpop.f32.mrb[0].mxu0
        %v726 = vadd.f32 0.0, %v725
        %v727 = vpop.f32.mrb[0].mxu0
        %v728 = vpop.f32.mrb[0].mxu0
        %v729 = vadd.f32 0.0, %v728
        %v730 = vpop.f32.mrb[0].mxu0
        %731 = vmatprep.mubr.bf16.mxu0 0
        %732 = vmatmul.mubr.bf16.gmra.mrb[0].mxu0 %v661
        %v733 = vpop.f32.mrb[0].mxu0
        %v734 = vadd.f32 0.0, %v733
        %v735 = vpop.f32.mrb[0].mxu0
        %v736 = vpop.f32.mrb[0].mxu0
        %v737 = vadd.f32 0.0, %v736
        %v738 = vpop.f32.mrb[0].mxu0
        %739 = vmatprep.mubr.bf16.mxu0 0
        %740 = vmatmul.mubr.bf16.gmra.mrb[0].mxu0 %v664
        %v741 = vpop.f32.mrb[0].mxu0
        %v742 = vadd.f32 0.0, %v741
        %v743 = vpop.f32.mrb[0].mxu0
        %v744 = vpop.f32.mrb[0].mxu0
        %v745 = vadd.f32 0.0, %v744
        %v746 = vpop.f32.mrb[0].mxu0
        %747 = vmatprep.mubr.bf16.mxu0 0
        %748 = vmatmul.mubr.bf16.gmra.mrb[0].mxu0 %v667
        %v749 = vpop.f32.mrb[0].mxu0
        %v750 = vadd.f32 0.0, %v749
        %v751 = vpop.f32.mrb[0].mxu0
        %v752 = vpop.f32.mrb[0].mxu0
        %v753 = vadd.f32 0.0, %v752
        %v754 = vpop.f32.mrb[0].mxu0
        %755 = vmatprep.mubr.bf16.mxu0 0
        %756 = vmatmul.mubr.bf16.gmra.mrb[0].mxu0 %v670
        %v757 = vpop.f32.mrb[0].mxu0
        %v758 = vadd.f32 0.0, %v757
        %v759 = vpop.f32.mrb[0].mxu0
        %v760 = vpop.f32.mrb[0].mxu0
        %v761 = vadd.f32 0.0, %v760
        %v762 = vpop.f32.mrb[0].mxu0
        %763 = vmatprep.mubr.bf16.mxu0 0
        %764 = vmatmul.mubr.bf16.gmra.mrb[0].mxu0 %v673
        %v765 = vpop.f32.mrb[0].mxu0
        %v766 = vadd.f32 0.0, %v765
        %v767 = vpop.f32.mrb[0].mxu0
        %v768 = vpop.f32.mrb[0].mxu0
        %v769 = vadd.f32 0.0, %v768
        %v770 = vpop.f32.mrb[0].mxu0
        %771 = vdwg.mxu0
        %v772 = vld [vmem:[%s5] sm:$0xf]
        %v773 = vld [vmem:[%s5 + $0x4] sm:$0xf]
        %v774 = vld [vmem:[%s5 + $0x8] sm:$0xf]
        %v775 = vld [vmem:[%s5 + $0xc] sm:$0xf]
        %v780 = vunpack.c.l.b16 %v772
        %v781 = vunpack.c.l.b16 %v773
        %v782 = vunpack.c.l.b16 %v774
        %v783 = vunpack.c.l.b16 %v775
        %v784 = vpack.c.b16 %v781, %v780
        %v785 = vpack.c.b16 %v783, %v782
        %788 = vmatprep.subr.bf16.mxu0 0
        %789 = vmatpush1.bf16.msra.mxu0 %v784
        %790 = vmatprep.subr.bf16.mxu0 0
        %791 = vmatpush1.bf16.msra.mxu0 %v785
        %792 = vmatprep.subr.bf16.mxu0 0
        %793 = vmatpush1.bf16.msra.mxu0 0
        %794 = vmatprep.subr.bf16.mxu0 0
        %795 = vmatpush1.bf16.msra.mxu0 0
        %796 = vmatprep.subr.bf16.mxu0 0
        %797 = vmatpush1.bf16.msra.mxu0 0
        %798 = vmatprep.subr.bf16.mxu0 0
        %799 = vmatpush1.bf16.msra.mxu0 0
        %800 = vmatprep.subr.bf16.mxu0 0
        %801 = vmatpush1.bf16.msra.mxu0 0
        %802 = vmatprep.subr.bf16.mxu0 0
        %803 = vmatpush1.bf16.msra.mxu0 0
        %804 = vmatprep.subr.bf16.mxu0 0
        %805 = vmatpush1.bf16.msra.mxu0 0
        %806 = vmatprep.subr.bf16.mxu0 0
        %807 = vmatpush1.bf16.msra.mxu0 0
        %808 = vmatprep.subr.bf16.mxu0 0
        %809 = vmatpush1.bf16.msra.mxu0 0
        %810 = vmatprep.subr.bf16.mxu0 0
        %811 = vmatpush1.bf16.msra.mxu0 0
        %812 = vmatprep.subr.bf16.mxu0 0
        %813 = vmatpush1.bf16.msra.mxu0 0
        %814 = vmatprep.subr.bf16.mxu0 0
        %815 = vmatpush1.bf16.msra.mxu0 0
        %816 = vmatprep.subr.bf16.mxu0 0
        %817 = vmatpush1.bf16.msra.mxu0 0
        %818 = vmatprep.subr.bf16.mxu0 0
        %819 = vmatpush1.bf16.msra.mxu0 0
        %820 = vmatprep.mubr.bf16.mxu0 0
        %821 = vmatmul.mubr.bf16.gmra.mrb[0].mxu0 %v652
        %v822 = vpop.f32.mrb[0].mxu0
        %v823 = vadd.f32 0.0, %v822
        %v824 = vpop.f32.mrb[0].mxu0
        %v825 = vpop.f32.mrb[0].mxu0
        %v826 = vadd.f32 0.0, %v825
        %v827 = vpop.f32.mrb[0].mxu0
        %828 = vmatprep.mubr.bf16.mxu0 0
        %829 = vmatmul.mubr.bf16.gmra.mrb[0].mxu0 %v655
        %v830 = vpop.f32.mrb[0].mxu0
        %v831 = vadd.f32 0.0, %v830
        %v832 = vpop.f32.mrb[0].mxu0
        %v833 = vpop.f32.mrb[0].mxu0
        %v834 = vadd.f32 0.0, %v833
        %v835 = vpop.f32.mrb[0].mxu0
        %836 = vmatprep.mubr.bf16.mxu0 0
        %837 = vmatmul.mubr.bf16.gmra.mrb[0].mxu0 %v658
        %v838 = vpop.f32.mrb[0].mxu0
        %v839 = vadd.f32 0.0, %v838
        %v840 = vpop.f32.mrb[0].mxu0
        %v841 = vpop.f32.mrb[0].mxu0
        %v842 = vadd.f32 0.0, %v841
        %v843 = vpop.f32.mrb[0].mxu0
        %844 = vmatprep.mubr.bf16.mxu0 0
        %845 = vmatmul.mubr.bf16.gmra.mrb[0].mxu0 %v661
        %v846 = vpop.f32.mrb[0].mxu0
        %v847 = vadd.f32 0.0, %v846
        %v848 = vpop.f32.mrb[0].mxu0
        %v849 = vpop.f32.mrb[0].mxu0
        %v850 = vadd.f32 0.0, %v849
        %v851 = vpop.f32.mrb[0].mxu0
        %852 = vmatprep.mubr.bf16.mxu0 0
        %853 = vmatmul.mubr.bf16.gmra.mrb[0].mxu0 %v664
        %v854 = vpop.f32.mrb[0].mxu0
        %v855 = vadd.f32 0.0, %v854
        %v856 = vpop.f32.mrb[0].mxu0
        %v857 = vpop.f32.mrb[0].mxu0
        %v858 = vadd.f32 0.0, %v857
        %v859 = vpop.f32.mrb[0].mxu0
        %860 = vmatprep.mubr.bf16.mxu0 0
        %861 = vmatmul.mubr.bf16.gmra.mrb[0].mxu0 %v667
        %v862 = vpop.f32.mrb[0].mxu0
        %v863 = vadd.f32 0.0, %v862
        %v864 = vpop.f32.mrb[0].mxu0
        %v865 = vpop.f32.mrb[0].mxu0
        %v866 = vadd.f32 0.0, %v865
        %v867 = vpop.f32.mrb[0].mxu0
        %868 = vmatprep.mubr.bf16.mxu0 0
        %869 = vmatmul.mubr.bf16.gmra.mrb[0].mxu0 %v670
        %v870 = vpop.f32.mrb[0].mxu0
        %v871 = vadd.f32 0.0, %v870
        %v872 = vpop.f32.mrb[0].mxu0
        %v873 = vpop.f32.mrb[0].mxu0
        %v874 = vadd.f32 0.0, %v873
        %v875 = vpop.f32.mrb[0].mxu0
        %876 = vmatprep.mubr.bf16.mxu0 0
        %877 = vmatmul.mubr.bf16.gmra.mrb[0].mxu0 %v673
        %v878 = vpop.f32.mrb[0].mxu0
        %v879 = vadd.f32 0.0, %v878
        %v880 = vpop.f32.mrb[0].mxu0
        %v881 = vpop.f32.mrb[0].mxu0
        %v882 = vadd.f32 0.0, %v881
        %v883 = vpop.f32.mrb[0].mxu0
        %884 = vdwg.mxu0
        %v885 = vld [vmem:[%s6] sm:$0xf]
        %v886 = vld [vmem:[%s6 + $0x4] sm:$0xf]
        %v887 = vld [vmem:[%s6 + $0x8] sm:$0xf]
        %v888 = vld [vmem:[%s6 + $0xc] sm:$0xf]
        %v893 = vunpack.c.l.b16 %v885
        %v894 = vunpack.c.l.b16 %v886
        %v895 = vunpack.c.l.b16 %v887
        %v896 = vunpack.c.l.b16 %v888
        %v897 = vpack.c.b16 %v894, %v893
        %v898 = vpack.c.b16 %v896, %v895
        %901 = vmatprep.subr.bf16.mxu0 0
        %902 = vmatpush1.bf16.msra.mxu0 %v897
        %903 = vmatprep.subr.bf16.mxu0 0
        %904 = vmatpush1.bf16.msra.mxu0 %v898
        %905 = vmatprep.subr.bf16.mxu0 0
        %906 = vmatpush1.bf16.msra.mxu0 0
        %907 = vmatprep.subr.bf16.mxu0 0
        %908 = vmatpush1.bf16.msra.mxu0 0
        %909 = vmatprep.subr.bf16.mxu0 0
        %910 = vmatpush1.bf16.msra.mxu0 0
        %911 = vmatprep.subr.bf16.mxu0 0
        %912 = vmatpush1.bf16.msra.mxu0 0
        %913 = vmatprep.subr.bf16.mxu0 0
        %914 = vmatpush1.bf16.msra.mxu0 0
        %915 = vmatprep.subr.bf16.mxu0 0
        %916 = vmatpush1.bf16.msra.mxu0 0
        %917 = vmatprep.subr.bf16.mxu0 0
        %918 = vmatpush1.bf16.msra.mxu0 0
        %919 = vmatprep.subr.bf16.mxu0 0
        %920 = vmatpush1.bf16.msra.mxu0 0
        %921 = vmatprep.subr.bf16.mxu0 0
        %922 = vmatpush1.bf16.msra.mxu0 0
        %923 = vmatprep.subr.bf16.mxu0 0
        %924 = vmatpush1.bf16.msra.mxu0 0
        %925 = vmatprep.subr.bf16.mxu0 0
        %926 = vmatpush1.bf16.msra.mxu0 0
        %927 = vmatprep.subr.bf16.mxu0 0
        %928 = vmatpush1.bf16.msra.mxu0 0
        %929 = vmatprep.subr.bf16.mxu0 0
        %930 = vmatpush1.bf16.msra.mxu0 0
        %931 = vmatprep.subr.bf16.mxu0 0
        %932 = vmatpush1.bf16.msra.mxu0 0
        %933 = vmatprep.mubr.bf16.mxu0 0
        %934 = vmatmul.mubr.bf16.gmra.mrb[0].mxu0 %v652
        %v935 = vpop.f32.mrb[0].mxu0
        %v936 = vadd.f32 0.0, %v935
        %v937 = vpop.f32.mrb[0].mxu0
        %v938 = vpop.f32.mrb[0].mxu0
        %v939 = vadd.f32 0.0, %v938
        %v940 = vpop.f32.mrb[0].mxu0
        %941 = vmatprep.mubr.bf16.mxu0 0
        %942 = vmatmul.mubr.bf16.gmra.mrb[0].mxu0 %v655
        %v943 = vpop.f32.mrb[0].mxu0
        %v944 = vadd.f32 0.0, %v943
        %v945 = vpop.f32.mrb[0].mxu0
        %v946 = vpop.f32.mrb[0].mxu0
        %v947 = vadd.f32 0.0, %v946
        %v948 = vpop.f32.mrb[0].mxu0
        %949 = vmatprep.mubr.bf16.mxu0 0
        %950 = vmatmul.mubr.bf16.gmra.mrb[0].mxu0 %v658
        %v951 = vpop.f32.mrb[0].mxu0
        %v952 = vadd.f32 0.0, %v951
        %v953 = vpop.f32.mrb[0].mxu0
        %v954 = vpop.f32.mrb[0].mxu0
        %v955 = vadd.f32 0.0, %v954
        %v956 = vpop.f32.mrb[0].mxu0
        %957 = vmatprep.mubr.bf16.mxu0 0
        %958 = vmatmul.mubr.bf16.gmra.mrb[0].mxu0 %v661
        %v959 = vpop.f32.mrb[0].mxu0
        %v960 = vadd.f32 0.0, %v959
        %v961 = vpop.f32.mrb[0].mxu0
        %v962 = vpop.f32.mrb[0].mxu0
        %v963 = vadd.f32 0.0, %v962
        %v964 = vpop.f32.mrb[0].mxu0
        %965 = vmatprep.mubr.bf16.mxu0 0
        %966 = vmatmul.mubr.bf16.gmra.mrb[0].mxu0 %v664
        %v967 = vpop.f32.mrb[0].mxu0
        %v968 = vadd.f32 0.0, %v967
        %v969 = vpop.f32.mrb[0].mxu0
        %v970 = vpop.f32.mrb[0].mxu0
        %v971 = vadd.f32 0.0, %v970
        %v972 = vpop.f32.mrb[0].mxu0
        %973 = vmatprep.mubr.bf16.mxu0 0
        %974 = vmatmul.mubr.bf16.gmra.mrb[0].mxu0 %v667
        %v975 = vpop.f32.mrb[0].mxu0
        %v976 = vadd.f32 0.0, %v975
        %v977 = vpop.f32.mrb[0].mxu0
        %v978 = vpop.f32.mrb[0].mxu0
        %v979 = vadd.f32 0.0, %v978
        %v980 = vpop.f32.mrb[0].mxu0
        %981 = vmatprep.mubr.bf16.mxu0 0
        %982 = vmatmul.mubr.bf16.gmra.mrb[0].mxu0 %v670
        %v983 = vpop.f32.mrb[0].mxu0
        %v984 = vadd.f32 0.0, %v983
        %v985 = vpop.f32.mrb[0].mxu0
        %v986 = vpop.f32.mrb[0].mxu0
        %v987 = vadd.f32 0.0, %v986
        %v988 = vpop.f32.mrb[0].mxu0
        %989 = vmatprep.mubr.bf16.mxu0 0
        %990 = vmatmul.mubr.bf16.gmra.mrb[0].mxu0 %v673
        %v991 = vpop.f32.mrb[0].mxu0
        %v992 = vadd.f32 0.0, %v991
        %v993 = vpop.f32.mrb[0].mxu0
        %v994 = vpop.f32.mrb[0].mxu0
        %v995 = vadd.f32 0.0, %v994
        %v996 = vpop.f32.mrb[0].mxu0
        %997 = vdwg.mxu0
        %v998 = vld [vmem:[%s444] sm:$0xff]
        %v999 = vld [vmem:[%s444 + $0x8] sm:$0xff]
        %v1000 = vld [vmem:[%s444 + $0x10] sm:$0xff]
        %v1001 = vld [vmem:[%s444 + $0x18] sm:$0xff]
        %v1002 = vld [vmem:[%s444 + $0x20] sm:$0xff]
        %v1003 = vld [vmem:[%s444 + $0x28] sm:$0xff]
        %v1004 = vld [vmem:[%s444 + $0x30] sm:$0xff]
        %v1005 = vld [vmem:[%s444 + $0x38] sm:$0xff]
        %v1006 = vld [vmem:[%s444 + $0x40] sm:$0xff]
        %v1007 = vld [vmem:[%s444 + $0x48] sm:$0xff]
        %v1008 = vld [vmem:[%s444 + $0x50] sm:$0xff]
        %v1009 = vld [vmem:[%s444 + $0x58] sm:$0xff]
        %v1010 = vld [vmem:[%s444 + $0x60] sm:$0xff]
        %v1011 = vld [vmem:[%s444 + $0x68] sm:$0xff]
        %v1012 = vld [vmem:[%s444 + $0x70] sm:$0xff]
        %v1013 = vld [vmem:[%s444 + $0x78] sm:$0xff]
        %v1014 = vld [vmem:[%s450] sm:$0xff]
        %v1015 = vld [vmem:[%s450 + $0x8] sm:$0xff]
        %v1016 = vld [vmem:[%s450 + $0x10] sm:$0xff]
        %v1017 = vld [vmem:[%s450 + $0x18] sm:$0xff]
        %v1018 = vld [vmem:[%s450 + $0x20] sm:$0xff]
        %v1019 = vld [vmem:[%s450 + $0x28] sm:$0xff]
        %v1020 = vld [vmem:[%s450 + $0x30] sm:$0xff]
        %v1021 = vld [vmem:[%s450 + $0x38] sm:$0xff]
        %v1022 = vld [vmem:[%s450 + $0x40] sm:$0xff]
        %v1023 = vld [vmem:[%s450 + $0x48] sm:$0xff]
        %v1024 = vld [vmem:[%s450 + $0x50] sm:$0xff]
        %v1025 = vld [vmem:[%s450 + $0x58] sm:$0xff]
        %v1026 = vld [vmem:[%s450 + $0x60] sm:$0xff]
        %v1027 = vld [vmem:[%s450 + $0x68] sm:$0xff]
        %v1028 = vld [vmem:[%s450 + $0x70] sm:$0xff]
        %v1029 = vld [vmem:[%s450 + $0x78] sm:$0xff]
        %v1030 = vsub.f32 0.0, %v710
        %v1031 = vsub.f32 0.0, %v713
        %v1032 = vsub.f32 0.0, %v718
        %v1033 = vsub.f32 0.0, %v721
        %v1034 = vsub.f32 0.0, %v726
        %v1035 = vsub.f32 0.0, %v729
        %v1036 = vsub.f32 0.0, %v734
        %v1037 = vsub.f32 0.0, %v737
        %v1038 = vsub.f32 0.0, %v742
        %v1039 = vsub.f32 0.0, %v745
        %v1040 = vsub.f32 0.0, %v750
        %v1041 = vsub.f32 0.0, %v753
        %v1042 = vsub.f32 0.0, %v758
        %v1043 = vsub.f32 0.0, %v761
        %v1044 = vsub.f32 0.0, %v766
        %v1045 = vsub.f32 0.0, %v769
        %1062 = vrot.lane.b32.xlu0 %v1030, 124
        %v1063 = vpop.permute.xlu0 %1062
        %1064 = vrot.lane.b32.xlu0 %v1031, 124
        %v1065 = vpop.permute.xlu0 %1064
        %1066 = vrot.lane.b32.xlu0 %v1032, 124
        %v1067 = vpop.permute.xlu0 %1066
        %1068 = vrot.lane.b32.xlu0 %v1033, 124
        %v1069 = vpop.permute.xlu0 %1068
        %1070 = vrot.lane.b32.xlu0 %v1034, 124
        %v1071 = vpop.permute.xlu0 %1070
        %1072 = vrot.lane.b32.xlu0 %v1035, 124
        %v1073 = vpop.permute.xlu0 %1072
        %1074 = vrot.lane.b32.xlu0 %v1036, 124
        %v1075 = vpop.permute.xlu0 %1074
        %1076 = vrot.lane.b32.xlu0 %v1037, 124
        %v1077 = vpop.permute.xlu0 %1076
        %1078 = vrot.lane.b32.xlu0 %v1038, 124
        %v1079 = vpop.permute.xlu0 %1078
        %1080 = vrot.lane.b32.xlu0 %v1039, 124
        %v1081 = vpop.permute.xlu0 %1080
        %1082 = vrot.lane.b32.xlu0 %v1040, 124
        %v1083 = vpop.permute.xlu0 %1082
        %1084 = vrot.lane.b32.xlu0 %v1041, 124
        %v1085 = vpop.permute.xlu0 %1084
        %1086 = vrot.lane.b32.xlu0 %v1042, 124
        %v1087 = vpop.permute.xlu0 %1086
        %1088 = vrot.lane.b32.xlu0 %v1043, 124
        %v1089 = vpop.permute.xlu0 %1088
        %1090 = vrot.lane.b32.xlu0 %v1044, 124
        %v1091 = vpop.permute.xlu0 %1090
        %1092 = vrot.lane.b32.xlu0 %v1045, 124
        %v1093 = vpop.permute.xlu0 %1092
        %1126 = vrot.lane.b32.xlu0 %v710, 4
        %v1127 = vpop.permute.xlu0 %1126
        %1128 = vrot.lane.b32.xlu0 %v713, 4
        %v1129 = vpop.permute.xlu0 %1128
        %1130 = vrot.lane.b32.xlu0 %v718, 4
        %v1131 = vpop.permute.xlu0 %1130
        %1132 = vrot.lane.b32.xlu0 %v721, 4
        %v1133 = vpop.permute.xlu0 %1132
        %1134 = vrot.lane.b32.xlu0 %v726, 4
        %v1135 = vpop.permute.xlu0 %1134
        %1136 = vrot.lane.b32.xlu0 %v729, 4
        %v1137 = vpop.permute.xlu0 %1136
        %1138 = vrot.lane.b32.xlu0 %v734, 4
        %v1139 = vpop.permute.xlu0 %1138
        %1140 = vrot.lane.b32.xlu0 %v737, 4
        %v1141 = vpop.permute.xlu0 %1140
        %1142 = vrot.lane.b32.xlu0 %v742, 4
        %v1143 = vpop.permute.xlu0 %1142
        %1144 = vrot.lane.b32.xlu0 %v745, 4
        %v1145 = vpop.permute.xlu0 %1144
        %1146 = vrot.lane.b32.xlu0 %v750, 4
        %v1147 = vpop.permute.xlu0 %1146
        %1148 = vrot.lane.b32.xlu0 %v753, 4
        %v1149 = vpop.permute.xlu0 %1148
        %1150 = vrot.lane.b32.xlu0 %v758, 4
        %v1151 = vpop.permute.xlu0 %1150
        %1152 = vrot.lane.b32.xlu0 %v761, 4
        %v1153 = vpop.permute.xlu0 %1152
        %1154 = vrot.lane.b32.xlu0 %v766, 4
        %v1155 = vpop.permute.xlu0 %1154
        %1156 = vrot.lane.b32.xlu0 %v769, 4
        %v1157 = vpop.permute.xlu0 %1156
        %vm1174 = vcmask 31744
        %v1175 = vsel %vm1174, %v1063, %v1127
        %v1176 = vsel %vm1174, %v1065, %v1129
        %v1177 = vsel %vm1174, %v1067, %v1131
        %v1178 = vsel %vm1174, %v1069, %v1133
        %v1179 = vsel %vm1174, %v1071, %v1135
        %v1180 = vsel %vm1174, %v1073, %v1137
        %v1181 = vsel %vm1174, %v1075, %v1139
        %v1182 = vsel %vm1174, %v1077, %v1141
        %v1183 = vsel %vm1174, %v1079, %v1143
        %v1184 = vsel %vm1174, %v1081, %v1145
        %v1185 = vsel %vm1174, %v1083, %v1147
        %v1186 = vsel %vm1174, %v1085, %v1149
        %v1187 = vsel %vm1174, %v1087, %v1151
        %v1188 = vsel %vm1174, %v1089, %v1153
        %v1189 = vsel %vm1174, %v1091, %v1155
        %v1190 = vsel %vm1174, %v1093, %v1157
        %v1191 = vmul.f32 %v710, %v998
        %v1192 = vmul.f32 %v713, %v999
        %v1193 = vmul.f32 %v718, %v1000
        %v1194 = vmul.f32 %v721, %v1001
        %v1195 = vmul.f32 %v726, %v1002
        %v1196 = vmul.f32 %v729, %v1003
        %v1197 = vmul.f32 %v734, %v1004
        %v1198 = vmul.f32 %v737, %v1005
        %v1199 = vmul.f32 %v742, %v1006
        %v1200 = vmul.f32 %v745, %v1007
        %v1201 = vmul.f32 %v750, %v1008
        %v1202 = vmul.f32 %v753, %v1009
        %v1203 = vmul.f32 %v758, %v1010
        %v1204 = vmul.f32 %v761, %v1011
        %v1205 = vmul.f32 %v766, %v1012
        %v1206 = vmul.f32 %v769, %v1013
        %v1207 = vmul.f32 %v1175, %v1014
        %v1208 = vmul.f32 %v1176, %v1015
        %v1209 = vmul.f32 %v1177, %v1016
        %v1210 = vmul.f32 %v1178, %v1017
        %v1211 = vmul.f32 %v1179, %v1018
        %v1212 = vmul.f32 %v1180, %v1019
        %v1213 = vmul.f32 %v1181, %v1020
        %v1214 = vmul.f32 %v1182, %v1021
        %v1215 = vmul.f32 %v1183, %v1022
        %v1216 = vmul.f32 %v1184, %v1023
        %v1217 = vmul.f32 %v1185, %v1024
        %v1218 = vmul.f32 %v1186, %v1025
        %v1219 = vmul.f32 %v1187, %v1026
        %v1220 = vmul.f32 %v1188, %v1027
        %v1221 = vmul.f32 %v1189, %v1028
        %v1222 = vmul.f32 %v1190, %v1029
        %v1223 = vadd.f32 %v1191, %v1207
        %v1224 = vadd.f32 %v1192, %v1208
        %v1225 = vadd.f32 %v1193, %v1209
        %v1226 = vadd.f32 %v1194, %v1210
        %v1227 = vadd.f32 %v1195, %v1211
        %v1228 = vadd.f32 %v1196, %v1212
        %v1229 = vadd.f32 %v1197, %v1213
        %v1230 = vadd.f32 %v1198, %v1214
        %v1231 = vadd.f32 %v1199, %v1215
        %v1232 = vadd.f32 %v1200, %v1216
        %v1233 = vadd.f32 %v1201, %v1217
        %v1234 = vadd.f32 %v1202, %v1218
        %v1235 = vadd.f32 %v1203, %v1219
        %v1236 = vadd.f32 %v1204, %v1220
        %v1237 = vadd.f32 %v1205, %v1221
        %v1238 = vadd.f32 %v1206, %v1222
        %v1239 = vpack.c.bf16 %v1224, %v1223
        %v1240 = vpack.c.bf16 %v1226, %v1225
        %v1241 = vpack.c.bf16 %v1228, %v1227
        %v1242 = vpack.c.bf16 %v1230, %v1229
        %v1243 = vpack.c.bf16 %v1232, %v1231
        %v1244 = vpack.c.bf16 %v1234, %v1233
        %v1245 = vpack.c.bf16 %v1236, %v1235
        %v1246 = vpack.c.bf16 %v1238, %v1237
        %v1255 = vunpack.c.l.b16 %v1239
        %v1256 = vunpack.c.h.b16 %v1239
        %v1257 = vunpack.c.l.b16 %v1240
        %v1258 = vunpack.c.h.b16 %v1240
        %v1259 = vunpack.c.l.b16 %v1241
        %v1260 = vunpack.c.h.b16 %v1241
        %v1261 = vunpack.c.l.b16 %v1242
        %v1262 = vunpack.c.h.b16 %v1242
        %v1263 = vunpack.c.l.b16 %v1243
        %v1264 = vunpack.c.h.b16 %v1243
        %v1265 = vunpack.c.l.b16 %v1244
        %v1266 = vunpack.c.h.b16 %v1244
        %v1267 = vunpack.c.l.b16 %v1245
        %v1268 = vunpack.c.h.b16 %v1245
        %v1269 = vunpack.c.l.b16 %v1246
        %v1270 = vunpack.c.h.b16 %v1246
        %v1271 = vpack.c.b16 %v1255, %v1255
        %v1272 = vpack.c.b16 %v1256, %v1256
        %v1273 = vpack.c.b16 %v1257, %v1257
        %v1274 = vpack.c.b16 %v1258, %v1258
        %v1275 = vpack.c.b16 %v1259, %v1259
        %v1276 = vpack.c.b16 %v1260, %v1260
        %v1277 = vpack.c.b16 %v1261, %v1261
        %v1278 = vpack.c.b16 %v1262, %v1262
        %v1279 = vpack.c.b16 %v1263, %v1263
        %v1280 = vpack.c.b16 %v1264, %v1264
        %v1281 = vpack.c.b16 %v1265, %v1265
        %v1282 = vpack.c.b16 %v1266, %v1266
        %v1283 = vpack.c.b16 %v1267, %v1267
        %v1284 = vpack.c.b16 %v1268, %v1268
        %v1285 = vpack.c.b16 %v1269, %v1269
        %v1286 = vpack.c.b16 %v1270, %v1270
        %vm1303 = vcmask 60416
        %1304 = vst.msk [vmem:[%s409] sm:$0xf] %vm1303, %v1271
        %1305 = vst.msk [vmem:[%s409 + $0x4] sm:$0xf] %vm1303, %v1272
        %1306 = vst.msk [vmem:[%s409 + $0x8] sm:$0xf] %vm1303, %v1273
        %1307 = vst.msk [vmem:[%s409 + $0xc] sm:$0xf] %vm1303, %v1274
        %1308 = vst.msk [vmem:[%s409 + $0x10] sm:$0xf] %vm1303, %v1275
        %1309 = vst.msk [vmem:[%s409 + $0x14] sm:$0xf] %vm1303, %v1276
        %1310 = vst.msk [vmem:[%s409 + $0x18] sm:$0xf] %vm1303, %v1277
        %1311 = vst.msk [vmem:[%s409 + $0x1c] sm:$0xf] %vm1303, %v1278
        %1312 = vst.msk [vmem:[%s409 + $0x20] sm:$0xf] %vm1303, %v1279
        %1313 = vst.msk [vmem:[%s409 + $0x24] sm:$0xf] %vm1303, %v1280
        %1314 = vst.msk [vmem:[%s409 + $0x28] sm:$0xf] %vm1303, %v1281
        %1315 = vst.msk [vmem:[%s409 + $0x2c] sm:$0xf] %vm1303, %v1282
        %1316 = vst.msk [vmem:[%s409 + $0x30] sm:$0xf] %vm1303, %v1283
        %1317 = vst.msk [vmem:[%s409 + $0x34] sm:$0xf] %vm1303, %v1284
        %1318 = vst.msk [vmem:[%s409 + $0x38] sm:$0xf] %vm1303, %v1285
        %1319 = vst.msk [vmem:[%s409 + $0x3c] sm:$0xf] %vm1303, %v1286
        %1320 = vrot.lane.b32.xlu0 %v1030, 116
        %v1321 = vpop.permute.xlu0 %1320
        %1322 = vrot.lane.b32.xlu0 %v1031, 116
        %v1323 = vpop.permute.xlu0 %1322
        %1324 = vrot.lane.b32.xlu0 %v1032, 116
        %v1325 = vpop.permute.xlu0 %1324
        %1326 = vrot.lane.b32.xlu0 %v1033, 116
        %v1327 = vpop.permute.xlu0 %1326
        %1328 = vrot.lane.b32.xlu0 %v1034, 116
        %v1329 = vpop.permute.xlu0 %1328
        %1330 = vrot.lane.b32.xlu0 %v1035, 116
        %v1331 = vpop.permute.xlu0 %1330
        %1332 = vrot.lane.b32.xlu0 %v1036, 116
        %v1333 = vpop.permute.xlu0 %1332
        %1334 = vrot.lane.b32.xlu0 %v1037, 116
        %v1335 = vpop.permute.xlu0 %1334
        %1336 = vrot.lane.b32.xlu0 %v1038, 116
        %v1337 = vpop.permute.xlu0 %1336
        %1338 = vrot.lane.b32.xlu0 %v1039, 116
        %v1339 = vpop.permute.xlu0 %1338
        %1340 = vrot.lane.b32.xlu0 %v1040, 116
        %v1341 = vpop.permute.xlu0 %1340
        %1342 = vrot.lane.b32.xlu0 %v1041, 116
        %v1343 = vpop.permute.xlu0 %1342
        %1344 = vrot.lane.b32.xlu0 %v1042, 116
        %v1345 = vpop.permute.xlu0 %1344
        %1346 = vrot.lane.b32.xlu0 %v1043, 116
        %v1347 = vpop.permute.xlu0 %1346
        %1348 = vrot.lane.b32.xlu0 %v1044, 116
        %v1349 = vpop.permute.xlu0 %1348
        %1350 = vrot.lane.b32.xlu0 %v1045, 116
        %v1351 = vpop.permute.xlu0 %1350
        %1368 = vrot.lane.b32.xlu0 %v710, 124
        %v1369 = vpop.permute.xlu0 %1368
        %1370 = vrot.lane.b32.xlu0 %v713, 124
        %v1371 = vpop.permute.xlu0 %1370
        %1372 = vrot.lane.b32.xlu0 %v718, 124
        %v1373 = vpop.permute.xlu0 %1372
        %1374 = vrot.lane.b32.xlu0 %v721, 124
        %v1375 = vpop.permute.xlu0 %1374
        %1376 = vrot.lane.b32.xlu0 %v726, 124
        %v1377 = vpop.permute.xlu0 %1376
        %1378 = vrot.lane.b32.xlu0 %v729, 124
        %v1379 = vpop.permute.xlu0 %1378
        %1380 = vrot.lane.b32.xlu0 %v734, 124
        %v1381 = vpop.permute.xlu0 %1380
        %1382 = vrot.lane.b32.xlu0 %v737, 124
        %v1383 = vpop.permute.xlu0 %1382
        %1384 = vrot.lane.b32.xlu0 %v742, 124
        %v1385 = vpop.permute.xlu0 %1384
        %1386 = vrot.lane.b32.xlu0 %v745, 124
        %v1387 = vpop.permute.xlu0 %1386
        %1388 = vrot.lane.b32.xlu0 %v750, 124
        %v1389 = vpop.permute.xlu0 %1388
        %1390 = vrot.lane.b32.xlu0 %v753, 124
        %v1391 = vpop.permute.xlu0 %1390
        %1392 = vrot.lane.b32.xlu0 %v758, 124
        %v1393 = vpop.permute.xlu0 %1392
        %1394 = vrot.lane.b32.xlu0 %v761, 124
        %v1395 = vpop.permute.xlu0 %1394
        %1396 = vrot.lane.b32.xlu0 %v766, 124
        %v1397 = vpop.permute.xlu0 %1396
        %1398 = vrot.lane.b32.xlu0 %v769, 124
        %v1399 = vpop.permute.xlu0 %1398
        %v1416 = vsel %vm1174, %v1321, %v1369
        %v1417 = vsel %vm1174, %v1323, %v1371
        %v1418 = vsel %vm1174, %v1325, %v1373
        %v1419 = vsel %vm1174, %v1327, %v1375
        %v1420 = vsel %vm1174, %v1329, %v1377
        %v1421 = vsel %vm1174, %v1331, %v1379
        %v1422 = vsel %vm1174, %v1333, %v1381
        %v1423 = vsel %vm1174, %v1335, %v1383
        %v1424 = vsel %vm1174, %v1337, %v1385
        %v1425 = vsel %vm1174, %v1339, %v1387
        %v1426 = vsel %vm1174, %v1341, %v1389
        %v1427 = vsel %vm1174, %v1343, %v1391
        %v1428 = vsel %vm1174, %v1345, %v1393
        %v1429 = vsel %vm1174, %v1347, %v1395
        %v1430 = vsel %vm1174, %v1349, %v1397
        %v1431 = vsel %vm1174, %v1351, %v1399
        %1448 = vrot.lane.b32.xlu0 %v998, 8
        %v1449 = vpop.permute.xlu0 %1448
        %1450 = vrot.lane.b32.xlu0 %v999, 8
        %v1451 = vpop.permute.xlu0 %1450
        %1452 = vrot.lane.b32.xlu0 %v1000, 8
        %v1453 = vpop.permute.xlu0 %1452
        %1454 = vrot.lane.b32.xlu0 %v1001, 8
        %v1455 = vpop.permute.xlu0 %1454
        %1456 = vrot.lane.b32.xlu0 %v1002, 8
        %v1457 = vpop.permute.xlu0 %1456
        %1458 = vrot.lane.b32.xlu0 %v1003, 8
        %v1459 = vpop.permute.xlu0 %1458
        %1460 = vrot.lane.b32.xlu0 %v1004, 8
        %v1461 = vpop.permute.xlu0 %1460
        %1462 = vrot.lane.b32.xlu0 %v1005, 8
        %v1463 = vpop.permute.xlu0 %1462
        %1464 = vrot.lane.b32.xlu0 %v1006, 8
        %v1465 = vpop.permute.xlu0 %1464
        %1466 = vrot.lane.b32.xlu0 %v1007, 8
        %v1467 = vpop.permute.xlu0 %1466
        %1468 = vrot.lane.b32.xlu0 %v1008, 8
        %v1469 = vpop.permute.xlu0 %1468
        %1470 = vrot.lane.b32.xlu0 %v1009, 8
        %v1471 = vpop.permute.xlu0 %1470
        %1472 = vrot.lane.b32.xlu0 %v1010, 8
        %v1473 = vpop.permute.xlu0 %1472
        %1474 = vrot.lane.b32.xlu0 %v1011, 8
        %v1475 = vpop.permute.xlu0 %1474
        %1476 = vrot.lane.b32.xlu0 %v1012, 8
        %v1477 = vpop.permute.xlu0 %1476
        %1478 = vrot.lane.b32.xlu0 %v1013, 8
        %v1479 = vpop.permute.xlu0 %1478
        %v1496 = vmul.f32 %v710, %v1449
        %v1497 = vmul.f32 %v713, %v1451
        %v1498 = vmul.f32 %v718, %v1453
        %v1499 = vmul.f32 %v721, %v1455
        %v1500 = vmul.f32 %v726, %v1457
        %v1501 = vmul.f32 %v729, %v1459
        %v1502 = vmul.f32 %v734, %v1461
        %v1503 = vmul.f32 %v737, %v1463
        %v1504 = vmul.f32 %v742, %v1465
        %v1505 = vmul.f32 %v745, %v1467
        %v1506 = vmul.f32 %v750, %v1469
        %v1507 = vmul.f32 %v753, %v1471
        %v1508 = vmul.f32 %v758, %v1473
        %v1509 = vmul.f32 %v761, %v1475
        %v1510 = vmul.f32 %v766, %v1477
        %v1511 = vmul.f32 %v769, %v1479
        %v1512 = vmul.f32 %v1416, %v1014
        %v1513 = vmul.f32 %v1417, %v1015
        %v1514 = vmul.f32 %v1418, %v1016
        %v1515 = vmul.f32 %v1419, %v1017
        %v1516 = vmul.f32 %v1420, %v1018
        %v1517 = vmul.f32 %v1421, %v1019
        %v1518 = vmul.f32 %v1422, %v1020
        %v1519 = vmul.f32 %v1423, %v1021
        %v1520 = vmul.f32 %v1424, %v1022
        %v1521 = vmul.f32 %v1425, %v1023
        %v1522 = vmul.f32 %v1426, %v1024
        %v1523 = vmul.f32 %v1427, %v1025
        %v1524 = vmul.f32 %v1428, %v1026
        %v1525 = vmul.f32 %v1429, %v1027
        %v1526 = vmul.f32 %v1430, %v1028
        %v1527 = vmul.f32 %v1431, %v1029
        %1544 = vrot.lane.b32.xlu0 %v1512, 8
        %v1545 = vpop.permute.xlu0 %1544
        %1546 = vrot.lane.b32.xlu0 %v1513, 8
        %v1547 = vpop.permute.xlu0 %1546
        %1548 = vrot.lane.b32.xlu0 %v1514, 8
        %v1549 = vpop.permute.xlu0 %1548
        %1550 = vrot.lane.b32.xlu0 %v1515, 8
        %v1551 = vpop.permute.xlu0 %1550
        %1552 = vrot.lane.b32.xlu0 %v1516, 8
        %v1553 = vpop.permute.xlu0 %1552
        %1554 = vrot.lane.b32.xlu0 %v1517, 8
        %v1555 = vpop.permute.xlu0 %1554
        %1556 = vrot.lane.b32.xlu0 %v1518, 8
        %v1557 = vpop.permute.xlu0 %1556
        %1558 = vrot.lane.b32.xlu0 %v1519, 8
        %v1559 = vpop.permute.xlu0 %1558
        %1560 = vrot.lane.b32.xlu0 %v1520, 8
        %v1561 = vpop.permute.xlu0 %1560
        %1562 = vrot.lane.b32.xlu0 %v1521, 8
        %v1563 = vpop.permute.xlu0 %1562
        %1564 = vrot.lane.b32.xlu0 %v1522, 8
        %v1565 = vpop.permute.xlu0 %1564
        %1566 = vrot.lane.b32.xlu0 %v1523, 8
        %v1567 = vpop.permute.xlu0 %1566
        %1568 = vrot.lane.b32.xlu0 %v1524, 8
        %v1569 = vpop.permute.xlu0 %1568
        %1570 = vrot.lane.b32.xlu0 %v1525, 8
        %v1571 = vpop.permute.xlu0 %1570
        %1572 = vrot.lane.b32.xlu0 %v1526, 8
        %v1573 = vpop.permute.xlu0 %1572
        %1574 = vrot.lane.b32.xlu0 %v1527, 8
        %v1575 = vpop.permute.xlu0 %1574
        %v1592 = vadd.f32 %v1496, %v1545
        %v1593 = vadd.f32 %v1497, %v1547
        %v1594 = vadd.f32 %v1498, %v1549
        %v1595 = vadd.f32 %v1499, %v1551
        %v1596 = vadd.f32 %v1500, %v1553
        %v1597 = vadd.f32 %v1501, %v1555
        %v1598 = vadd.f32 %v1502, %v1557
        %v1599 = vadd.f32 %v1503, %v1559
        %v1600 = vadd.f32 %v1504, %v1561
        %v1601 = vadd.f32 %v1505, %v1563
        %v1602 = vadd.f32 %v1506, %v1565
        %v1603 = vadd.f32 %v1507, %v1567
        %v1604 = vadd.f32 %v1508, %v1569
        %v1605 = vadd.f32 %v1509, %v1571
        %v1606 = vadd.f32 %v1510, %v1573
        %v1607 = vadd.f32 %v1511, %v1575
        %v1608 = vpack.c.bf16 %v1593, %v1592
        %v1609 = vpack.c.bf16 %v1595, %v1594
        %v1610 = vpack.c.bf16 %v1597, %v1596
        %v1611 = vpack.c.bf16 %v1599, %v1598
        %v1612 = vpack.c.bf16 %v1601, %v1600
        %v1613 = vpack.c.bf16 %v1603, %v1602
        %v1614 = vpack.c.bf16 %v1605, %v1604
        %v1615 = vpack.c.bf16 %v1607, %v1606
        %v1624 = vunpack.c.l.b16 %v1608
        %v1625 = vunpack.c.h.b16 %v1608
        %v1626 = vunpack.c.l.b16 %v1609
        %v1627 = vunpack.c.h.b16 %v1609
        %v1628 = vunpack.c.l.b16 %v1610
        %v1629 = vunpack.c.h.b16 %v1610
        %v1630 = vunpack.c.l.b16 %v1611
        %v1631 = vunpack.c.h.b16 %v1611
        %v1632 = vunpack.c.l.b16 %v1612
        %v1633 = vunpack.c.h.b16 %v1612
        %v1634 = vunpack.c.l.b16 %v1613
        %v1635 = vunpack.c.h.b16 %v1613
        %v1636 = vunpack.c.l.b16 %v1614
        %v1637 = vunpack.c.h.b16 %v1614
        %v1638 = vunpack.c.l.b16 %v1615
        %v1639 = vunpack.c.h.b16 %v1615
        %v1640 = vpack.c.b16 %v1624, %v1624
        %v1641 = vpack.c.b16 %v1625, %v1625
        %v1642 = vpack.c.b16 %v1626, %v1626
        %v1643 = vpack.c.b16 %v1627, %v1627
        %v1644 = vpack.c.b16 %v1628, %v1628
        %v1645 = vpack.c.b16 %v1629, %v1629
        %v1646 = vpack.c.b16 %v1630, %v1630
        %v1647 = vpack.c.b16 %v1631, %v1631
        %v1648 = vpack.c.b16 %v1632, %v1632
        %v1649 = vpack.c.b16 %v1633, %v1633
        %v1650 = vpack.c.b16 %v1634, %v1634
        %v1651 = vpack.c.b16 %v1635, %v1635
        %v1652 = vpack.c.b16 %v1636, %v1636
        %v1653 = vpack.c.b16 %v1637, %v1637
        %v1654 = vpack.c.b16 %v1638, %v1638
        %v1655 = vpack.c.b16 %v1639, %v1639
        %1656 = vrot.lane.b32.xlu0 %v1640, 120
        %v1657 = vpop.permute.xlu0 %1656
        %1658 = vrot.lane.b32.xlu0 %v1641, 120
        %v1659 = vpop.permute.xlu0 %1658
        %1660 = vrot.lane.b32.xlu0 %v1642, 120
        %v1661 = vpop.permute.xlu0 %1660
        %1662 = vrot.lane.b32.xlu0 %v1643, 120
        %v1663 = vpop.permute.xlu0 %1662
        %1664 = vrot.lane.b32.xlu0 %v1644, 120
        %v1665 = vpop.permute.xlu0 %1664
        %1666 = vrot.lane.b32.xlu0 %v1645, 120
        %v1667 = vpop.permute.xlu0 %1666
        %1668 = vrot.lane.b32.xlu0 %v1646, 120
        %v1669 = vpop.permute.xlu0 %1668
        %1670 = vrot.lane.b32.xlu0 %v1647, 120
        %v1671 = vpop.permute.xlu0 %1670
        %1672 = vrot.lane.b32.xlu0 %v1648, 120
        %v1673 = vpop.permute.xlu0 %1672
        %1674 = vrot.lane.b32.xlu0 %v1649, 120
        %v1675 = vpop.permute.xlu0 %1674
        %1676 = vrot.lane.b32.xlu0 %v1650, 120
        %v1677 = vpop.permute.xlu0 %1676
        %1678 = vrot.lane.b32.xlu0 %v1651, 120
        %v1679 = vpop.permute.xlu0 %1678
        %1680 = vrot.lane.b32.xlu0 %v1652, 120
        %v1681 = vpop.permute.xlu0 %1680
        %1682 = vrot.lane.b32.xlu0 %v1653, 120
        %v1683 = vpop.permute.xlu0 %1682
        %1684 = vrot.lane.b32.xlu0 %v1654, 120
        %v1685 = vpop.permute.xlu0 %1684
        %1686 = vrot.lane.b32.xlu0 %v1655, 120
        %v1687 = vpop.permute.xlu0 %1686
        %s1704 = scalar_lea.vmem %s409, 64 [#allocation2]
        %1705 = vst.msk [vmem:[%s1704] sm:$0xf] %vm1303, %v1657
        %1706 = vst.msk [vmem:[%s1704 + $0x4] sm:$0xf] %vm1303, %v1659
        %1707 = vst.msk [vmem:[%s1704 + $0x8] sm:$0xf] %vm1303, %v1661
        %1708 = vst.msk [vmem:[%s1704 + $0xc] sm:$0xf] %vm1303, %v1663
        %1709 = vst.msk [vmem:[%s1704 + $0x10] sm:$0xf] %vm1303, %v1665
        %1710 = vst.msk [vmem:[%s1704 + $0x14] sm:$0xf] %vm1303, %v1667
        %1711 = vst.msk [vmem:[%s1704 + $0x18] sm:$0xf] %vm1303, %v1669
        %1712 = vst.msk [vmem:[%s1704 + $0x1c] sm:$0xf] %vm1303, %v1671
        %1713 = vst.msk [vmem:[%s1704 + $0x20] sm:$0xf] %vm1303, %v1673
        %1714 = vst.msk [vmem:[%s1704 + $0x24] sm:$0xf] %vm1303, %v1675
        %1715 = vst.msk [vmem:[%s1704 + $0x28] sm:$0xf] %vm1303, %v1677
        %1716 = vst.msk [vmem:[%s1704 + $0x2c] sm:$0xf] %vm1303, %v1679
        %1717 = vst.msk [vmem:[%s1704 + $0x30] sm:$0xf] %vm1303, %v1681
        %1718 = vst.msk [vmem:[%s1704 + $0x34] sm:$0xf] %vm1303, %v1683
        %1719 = vst.msk [vmem:[%s1704 + $0x38] sm:$0xf] %vm1303, %v1685
        %1720 = vst.msk [vmem:[%s1704 + $0x3c] sm:$0xf] %vm1303, %v1687
        %1721 = vrot.lane.b32.xlu0 %v1030, 108
        %v1722 = vpop.permute.xlu0 %1721
        %1723 = vrot.lane.b32.xlu0 %v1031, 108
        %v1724 = vpop.permute.xlu0 %1723
        %1725 = vrot.lane.b32.xlu0 %v1032, 108
        %v1726 = vpop.permute.xlu0 %1725
        %1727 = vrot.lane.b32.xlu0 %v1033, 108
        %v1728 = vpop.permute.xlu0 %1727
        %1729 = vrot.lane.b32.xlu0 %v1034, 108
        %v1730 = vpop.permute.xlu0 %1729
        %1731 = vrot.lane.b32.xlu0 %v1035, 108
        %v1732 = vpop.permute.xlu0 %1731
        %1733 = vrot.lane.b32.xlu0 %v1036, 108
        %v1734 = vpop.permute.xlu0 %1733
        %1735 = vrot.lane.b32.xlu0 %v1037, 108
        %v1736 = vpop.permute.xlu0 %1735
        %1737 = vrot.lane.b32.xlu0 %v1038, 108
        %v1738 = vpop.permute.xlu0 %1737
        %1739 = vrot.lane.b32.xlu0 %v1039, 108
        %v1740 = vpop.permute.xlu0 %1739
        %1741 = vrot.lane.b32.xlu0 %v1040, 108
        %v1742 = vpop.permute.xlu0 %1741
        %1743 = vrot.lane.b32.xlu0 %v1041, 108
        %v1744 = vpop.permute.xlu0 %1743
        %1745 = vrot.lane.b32.xlu0 %v1042, 108
        %v1746 = vpop.permute.xlu0 %1745
        %1747 = vrot.lane.b32.xlu0 %v1043, 108
        %v1748 = vpop.permute.xlu0 %1747
        %1749 = vrot.lane.b32.xlu0 %v1044, 108
        %v1750 = vpop.permute.xlu0 %1749
        %1751 = vrot.lane.b32.xlu0 %v1045, 108
        %v1752 = vpop.permute.xlu0 %1751
        %1769 = vrot.lane.b32.xlu0 %v710, 116
        %v1770 = vpop.permute.xlu0 %1769
        %1771 = vrot.lane.b32.xlu0 %v713, 116
        %v1772 = vpop.permute.xlu0 %1771
        %1773 = vrot.lane.b32.xlu0 %v718, 116
        %v1774 = vpop.permute.xlu0 %1773
        %1775 = vrot.lane.b32.xlu0 %v721, 116
        %v1776 = vpop.permute.xlu0 %1775
        %1777 = vrot.lane.b32.xlu0 %v726, 116
        %v1778 = vpop.permute.xlu0 %1777
        %1779 = vrot.lane.b32.xlu0 %v729, 116
        %v1780 = vpop.permute.xlu0 %1779
        %1781 = vrot.lane.b32.xlu0 %v734, 116
        %v1782 = vpop.permute.xlu0 %1781
        %1783 = vrot.lane.b32.xlu0 %v737, 116
        %v1784 = vpop.permute.xlu0 %1783
        %1785 = vrot.lane.b32.xlu0 %v742, 116
        %v1786 = vpop.permute.xlu0 %1785
        %1787 = vrot.lane.b32.xlu0 %v745, 116
        %v1788 = vpop.permute.xlu0 %1787
        %1789 = vrot.lane.b32.xlu0 %v750, 116
        %v1790 = vpop.permute.xlu0 %1789
        %1791 = vrot.lane.b32.xlu0 %v753, 116
        %v1792 = vpop.permute.xlu0 %1791
        %1793 = vrot.lane.b32.xlu0 %v758, 116
        %v1794 = vpop.permute.xlu0 %1793
        %1795 = vrot.lane.b32.xlu0 %v761, 116
        %v1796 = vpop.permute.xlu0 %1795
        %1797 = vrot.lane.b32.xlu0 %v766, 116
        %v1798 = vpop.permute.xlu0 %1797
        %1799 = vrot.lane.b32.xlu0 %v769, 116
        %v1800 = vpop.permute.xlu0 %1799
        %v1817 = vsel %vm1174, %v1722, %v1770
        %v1818 = vsel %vm1174, %v1724, %v1772
        %v1819 = vsel %vm1174, %v1726, %v1774
        %v1820 = vsel %vm1174, %v1728, %v1776
        %v1821 = vsel %vm1174, %v1730, %v1778
        %v1822 = vsel %vm1174, %v1732, %v1780
        %v1823 = vsel %vm1174, %v1734, %v1782
        %v1824 = vsel %vm1174, %v1736, %v1784
        %v1825 = vsel %vm1174, %v1738, %v1786
        %v1826 = vsel %vm1174, %v1740, %v1788
        %v1827 = vsel %vm1174, %v1742, %v1790
        %v1828 = vsel %vm1174, %v1744, %v1792
        %v1829 = vsel %vm1174, %v1746, %v1794
        %v1830 = vsel %vm1174, %v1748, %v1796
        %v1831 = vsel %vm1174, %v1750, %v1798
        %v1832 = vsel %vm1174, %v1752, %v1800
        %1833 = vrot.lane.b32.xlu0 %v998, 16
        %v1834 = vpop.permute.xlu0 %1833
        %1835 = vrot.lane.b32.xlu0 %v999, 16
        %v1836 = vpop.permute.xlu0 %1835
        %1837 = vrot.lane.b32.xlu0 %v1000, 16
        %v1838 = vpop.permute.xlu0 %1837
        %1839 = vrot.lane.b32.xlu0 %v1001, 16
        %v1840 = vpop.permute.xlu0 %1839
        %1841 = vrot.lane.b32.xlu0 %v1002, 16
        %v1842 = vpop.permute.xlu0 %1841
        %1843 = vrot.lane.b32.xlu0 %v1003, 16
        %v1844 = vpop.permute.xlu0 %1843
        %1845 = vrot.lane.b32.xlu0 %v1004, 16
        %v1846 = vpop.permute.xlu0 %1845
        %1847 = vrot.lane.b32.xlu0 %v1005, 16
        %v1848 = vpop.permute.xlu0 %1847
        %1849 = vrot.lane.b32.xlu0 %v1006, 16
        %v1850 = vpop.permute.xlu0 %1849
        %1851 = vrot.lane.b32.xlu0 %v1007, 16
        %v1852 = vpop.permute.xlu0 %1851
        %1853 = vrot.lane.b32.xlu0 %v1008, 16
        %v1854 = vpop.permute.xlu0 %1853
        %1855 = vrot.lane.b32.xlu0 %v1009, 16
        %v1856 = vpop.permute.xlu0 %1855
        %1857 = vrot.lane.b32.xlu0 %v1010, 16
        %v1858 = vpop.permute.xlu0 %1857
        %1859 = vrot.lane.b32.xlu0 %v1011, 16
        %v1860 = vpop.permute.xlu0 %1859
        %1861 = vrot.lane.b32.xlu0 %v1012, 16
        %v1862 = vpop.permute.xlu0 %1861
        %1863 = vrot.lane.b32.xlu0 %v1013, 16
        %v1864 = vpop.permute.xlu0 %1863
        %v1881 = vmul.f32 %v710, %v1834
        %v1882 = vmul.f32 %v713, %v1836
        %v1883 = vmul.f32 %v718, %v1838
        %v1884 = vmul.f32 %v721, %v1840
        %v1885 = vmul.f32 %v726, %v1842
        %v1886 = vmul.f32 %v729, %v1844
        %v1887 = vmul.f32 %v734, %v1846
        %v1888 = vmul.f32 %v737, %v1848
        %v1889 = vmul.f32 %v742, %v1850
        %v1890 = vmul.f32 %v745, %v1852
        %v1891 = vmul.f32 %v750, %v1854
        %v1892 = vmul.f32 %v753, %v1856
        %v1893 = vmul.f32 %v758, %v1858
        %v1894 = vmul.f32 %v761, %v1860
        %v1895 = vmul.f32 %v766, %v1862
        %v1896 = vmul.f32 %v769, %v1864
        %v1897 = vmul.f32 %v1817, %v1014
        %v1898 = vmul.f32 %v1818, %v1015
        %v1899 = vmul.f32 %v1819, %v1016
        %v1900 = vmul.f32 %v1820, %v1017
        %v1901 = vmul.f32 %v1821, %v1018
        %v1902 = vmul.f32 %v1822, %v1019
        %v1903 = vmul.f32 %v1823, %v1020
        %v1904 = vmul.f32 %v1824, %v1021
        %v1905 = vmul.f32 %v1825, %v1022
        %v1906 = vmul.f32 %v1826, %v1023
        %v1907 = vmul.f32 %v1827, %v1024
        %v1908 = vmul.f32 %v1828, %v1025
        %v1909 = vmul.f32 %v1829, %v1026
        %v1910 = vmul.f32 %v1830, %v1027
        %v1911 = vmul.f32 %v1831, %v1028
        %v1912 = vmul.f32 %v1832, %v1029
        %1929 = vrot.lane.b32.xlu0 %v1897, 16
        %v1930 = vpop.permute.xlu0 %1929
        %1931 = vrot.lane.b32.xlu0 %v1898, 16
        %v1932 = vpop.permute.xlu0 %1931
        %1933 = vrot.lane.b32.xlu0 %v1899, 16
        %v1934 = vpop.permute.xlu0 %1933
        %1935 = vrot.lane.b32.xlu0 %v1900, 16
        %v1936 = vpop.permute.xlu0 %1935
        %1937 = vrot.lane.b32.xlu0 %v1901, 16
        %v1938 = vpop.permute.xlu0 %1937
        %1939 = vrot.lane.b32.xlu0 %v1902, 16
        %v1940 = vpop.permute.xlu0 %1939
        %1941 = vrot.lane.b32.xlu0 %v1903, 16
        %v1942 = vpop.permute.xlu0 %1941
        %1943 = vrot.lane.b32.xlu0 %v1904, 16
        %v1944 = vpop.permute.xlu0 %1943
        %1945 = vrot.lane.b32.xlu0 %v1905, 16
        %v1946 = vpop.permute.xlu0 %1945
        %1947 = vrot.lane.b32.xlu0 %v1906, 16
        %v1948 = vpop.permute.xlu0 %1947
        %1949 = vrot.lane.b32.xlu0 %v1907, 16
        %v1950 = vpop.permute.xlu0 %1949
        %1951 = vrot.lane.b32.xlu0 %v1908, 16
        %v1952 = vpop.permute.xlu0 %1951
        %1953 = vrot.lane.b32.xlu0 %v1909, 16
        %v1954 = vpop.permute.xlu0 %1953
        %1955 = vrot.lane.b32.xlu0 %v1910, 16
        %v1956 = vpop.permute.xlu0 %1955
        %1957 = vrot.lane.b32.xlu0 %v1911, 16
        %v1958 = vpop.permute.xlu0 %1957
        %1959 = vrot.lane.b32.xlu0 %v1912, 16
        %v1960 = vpop.permute.xlu0 %1959
        %v1977 = vadd.f32 %v1881, %v1930
        %v1978 = vadd.f32 %v1882, %v1932
        %v1979 = vadd.f32 %v1883, %v1934
        %v1980 = vadd.f32 %v1884, %v1936
        %v1981 = vadd.f32 %v1885, %v1938
        %v1982 = vadd.f32 %v1886, %v1940
        %v1983 = vadd.f32 %v1887, %v1942
        %v1984 = vadd.f32 %v1888, %v1944
        %v1985 = vadd.f32 %v1889, %v1946
        %v1986 = vadd.f32 %v1890, %v1948
        %v1987 = vadd.f32 %v1891, %v1950
        %v1988 = vadd.f32 %v1892, %v1952
        %v1989 = vadd.f32 %v1893, %v1954
        %v1990 = vadd.f32 %v1894, %v1956
        %v1991 = vadd.f32 %v1895, %v1958
        %v1992 = vadd.f32 %v1896, %v1960
        %v1993 = vpack.c.bf16 %v1978, %v1977
        %v1994 = vpack.c.bf16 %v1980, %v1979
        %v1995 = vpack.c.bf16 %v1982, %v1981
        %v1996 = vpack.c.bf16 %v1984, %v1983
        %v1997 = vpack.c.bf16 %v1986, %v1985
        %v1998 = vpack.c.bf16 %v1988, %v1987
        %v1999 = vpack.c.bf16 %v1990, %v1989
        %v2000 = vpack.c.bf16 %v1992, %v1991
        %v2009 = vunpack.c.l.b16 %v1993
        %v2010 = vunpack.c.h.b16 %v1993
        %v2011 = vunpack.c.l.b16 %v1994
        %v2012 = vunpack.c.h.b16 %v1994
        %v2013 = vunpack.c.l.b16 %v1995
        %v2014 = vunpack.c.h.b16 %v1995
        %v2015 = vunpack.c.l.b16 %v1996
        %v2016 = vunpack.c.h.b16 %v1996
        %v2017 = vunpack.c.l.b16 %v1997
        %v2018 = vunpack.c.h.b16 %v1997
        %v2019 = vunpack.c.l.b16 %v1998
        %v2020 = vunpack.c.h.b16 %v1998
        %v2021 = vunpack.c.l.b16 %v1999
        %v2022 = vunpack.c.h.b16 %v1999
        %v2023 = vunpack.c.l.b16 %v2000
        %v2024 = vunpack.c.h.b16 %v2000
        %v2025 = vpack.c.b16 %v2009, %v2009
        %v2026 = vpack.c.b16 %v2010, %v2010
        %v2027 = vpack.c.b16 %v2011, %v2011
        %v2028 = vpack.c.b16 %v2012, %v2012
        %v2029 = vpack.c.b16 %v2013, %v2013
        %v2030 = vpack.c.b16 %v2014, %v2014
        %v2031 = vpack.c.b16 %v2015, %v2015
        %v2032 = vpack.c.b16 %v2016, %v2016
        %v2033 = vpack.c.b16 %v2017, %v2017
        %v2034 = vpack.c.b16 %v2018, %v2018
        %v2035 = vpack.c.b16 %v2019, %v2019
        %v2036 = vpack.c.b16 %v2020, %v2020
        %v2037 = vpack.c.b16 %v2021, %v2021
        %v2038 = vpack.c.b16 %v2022, %v2022
        %v2039 = vpack.c.b16 %v2023, %v2023
        %v2040 = vpack.c.b16 %v2024, %v2024
        %2041 = vrot.lane.b32.xlu0 %v2025, 112
        %v2042 = vpop.permute.xlu0 %2041
        %2043 = vrot.lane.b32.xlu0 %v2026, 112
        %v2044 = vpop.permute.xlu0 %2043
        %2045 = vrot.lane.b32.xlu0 %v2027, 112
        %v2046 = vpop.permute.xlu0 %2045
        %2047 = vrot.lane.b32.xlu0 %v2028, 112
        %v2048 = vpop.permute.xlu0 %2047
        %2049 = vrot.lane.b32.xlu0 %v2029, 112
        %v2050 = vpop.permute.xlu0 %2049
        %2051 = vrot.lane.b32.xlu0 %v2030, 112
        %v2052 = vpop.permute.xlu0 %2051
        %2053 = vrot.lane.b32.xlu0 %v2031, 112
        %v2054 = vpop.permute.xlu0 %2053
        %2055 = vrot.lane.b32.xlu0 %v2032, 112
        %v2056 = vpop.permute.xlu0 %2055
        %2057 = vrot.lane.b32.xlu0 %v2033, 112
        %v2058 = vpop.permute.xlu0 %2057
        %2059 = vrot.lane.b32.xlu0 %v2034, 112
        %v2060 = vpop.permute.xlu0 %2059
        %2061 = vrot.lane.b32.xlu0 %v2035, 112
        %v2062 = vpop.permute.xlu0 %2061
        %2063 = vrot.lane.b32.xlu0 %v2036, 112
        %v2064 = vpop.permute.xlu0 %2063
        %2065 = vrot.lane.b32.xlu0 %v2037, 112
        %v2066 = vpop.permute.xlu0 %2065
        %2067 = vrot.lane.b32.xlu0 %v2038, 112
        %v2068 = vpop.permute.xlu0 %2067
        %2069 = vrot.lane.b32.xlu0 %v2039, 112
        %v2070 = vpop.permute.xlu0 %2069
        %2071 = vrot.lane.b32.xlu0 %v2040, 112
        %v2072 = vpop.permute.xlu0 %2071
        %s2089 = scalar_lea.vmem %s409, 128 [#allocation2]
        %2090 = vst.msk [vmem:[%s2089] sm:$0xf] %vm1303, %v2042
        %2091 = vst.msk [vmem:[%s2089 + $0x4] sm:$0xf] %vm1303, %v2044
        %2092 = vst.msk [vmem:[%s2089 + $0x8] sm:$0xf] %vm1303, %v2046
        %2093 = vst.msk [vmem:[%s2089 + $0xc] sm:$0xf] %vm1303, %v2048
        %2094 = vst.msk [vmem:[%s2089 + $0x10] sm:$0xf] %vm1303, %v2050
        %2095 = vst.msk [vmem:[%s2089 + $0x14] sm:$0xf] %vm1303, %v2052
        %2096 = vst.msk [vmem:[%s2089 + $0x18] sm:$0xf] %vm1303, %v2054
        %2097 = vst.msk [vmem:[%s2089 + $0x1c] sm:$0xf] %vm1303, %v2056
        %2098 = vst.msk [vmem:[%s2089 + $0x20] sm:$0xf] %vm1303, %v2058
        %2099 = vst.msk [vmem:[%s2089 + $0x24] sm:$0xf] %vm1303, %v2060
        %2100 = vst.msk [vmem:[%s2089 + $0x28] sm:$0xf] %vm1303, %v2062
        %2101 = vst.msk [vmem:[%s2089 + $0x2c] sm:$0xf] %vm1303, %v2064
        %2102 = vst.msk [vmem:[%s2089 + $0x30] sm:$0xf] %vm1303, %v2066
        %2103 = vst.msk [vmem:[%s2089 + $0x34] sm:$0xf] %vm1303, %v2068
        %2104 = vst.msk [vmem:[%s2089 + $0x38] sm:$0xf] %vm1303, %v2070
        %2105 = vst.msk [vmem:[%s2089 + $0x3c] sm:$0xf] %vm1303, %v2072
        %2106 = vrot.lane.b32.xlu0 %v1030, 100
        %v2107 = vpop.permute.xlu0 %2106
        %2108 = vrot.lane.b32.xlu0 %v1031, 100
        %v2109 = vpop.permute.xlu0 %2108
        %2110 = vrot.lane.b32.xlu0 %v1032, 100
        %v2111 = vpop.permute.xlu0 %2110
        %2112 = vrot.lane.b32.xlu0 %v1033, 100
        %v2113 = vpop.permute.xlu0 %2112
        %2114 = vrot.lane.b32.xlu0 %v1034, 100
        %v2115 = vpop.permute.xlu0 %2114
        %2116 = vrot.lane.b32.xlu0 %v1035, 100
        %v2117 = vpop.permute.xlu0 %2116
        %2118 = vrot.lane.b32.xlu0 %v1036, 100
        %v2119 = vpop.permute.xlu0 %2118
        %2120 = vrot.lane.b32.xlu0 %v1037, 100
        %v2121 = vpop.permute.xlu0 %2120
        %2122 = vrot.lane.b32.xlu0 %v1038, 100
        %v2123 = vpop.permute.xlu0 %2122
        %2124 = vrot.lane.b32.xlu0 %v1039, 100
        %v2125 = vpop.permute.xlu0 %2124
        %2126 = vrot.lane.b32.xlu0 %v1040, 100
        %v2127 = vpop.permute.xlu0 %2126
        %2128 = vrot.lane.b32.xlu0 %v1041, 100
        %v2129 = vpop.permute.xlu0 %2128
        %2130 = vrot.lane.b32.xlu0 %v1042, 100
        %v2131 = vpop.permute.xlu0 %2130
        %2132 = vrot.lane.b32.xlu0 %v1043, 100
        %v2133 = vpop.permute.xlu0 %2132
        %2134 = vrot.lane.b32.xlu0 %v1044, 100
        %v2135 = vpop.permute.xlu0 %2134
        %2136 = vrot.lane.b32.xlu0 %v1045, 100
        %v2137 = vpop.permute.xlu0 %2136
        %2154 = vrot.lane.b32.xlu0 %v710, 108
        %v2155 = vpop.permute.xlu0 %2154
        %2156 = vrot.lane.b32.xlu0 %v713, 108
        %v2157 = vpop.permute.xlu0 %2156
        %2158 = vrot.lane.b32.xlu0 %v718, 108
        %v2159 = vpop.permute.xlu0 %2158
        %2160 = vrot.lane.b32.xlu0 %v721, 108
        %v2161 = vpop.permute.xlu0 %2160
        %2162 = vrot.lane.b32.xlu0 %v726, 108
        %v2163 = vpop.permute.xlu0 %2162
        %2164 = vrot.lane.b32.xlu0 %v729, 108
        %v2165 = vpop.permute.xlu0 %2164
        %2166 = vrot.lane.b32.xlu0 %v734, 108
        %v2167 = vpop.permute.xlu0 %2166
        %2168 = vrot.lane.b32.xlu0 %v737, 108
        %v2169 = vpop.permute.xlu0 %2168
        %2170 = vrot.lane.b32.xlu0 %v742, 108
        %v2171 = vpop.permute.xlu0 %2170
        %2172 = vrot.lane.b32.xlu0 %v745, 108
        %v2173 = vpop.permute.xlu0 %2172
        %2174 = vrot.lane.b32.xlu0 %v750, 108
        %v2175 = vpop.permute.xlu0 %2174
        %2176 = vrot.lane.b32.xlu0 %v753, 108
        %v2177 = vpop.permute.xlu0 %2176
        %2178 = vrot.lane.b32.xlu0 %v758, 108
        %v2179 = vpop.permute.xlu0 %2178
        %2180 = vrot.lane.b32.xlu0 %v761, 108
        %v2181 = vpop.permute.xlu0 %2180
        %2182 = vrot.lane.b32.xlu0 %v766, 108
        %v2183 = vpop.permute.xlu0 %2182
        %2184 = vrot.lane.b32.xlu0 %v769, 108
        %v2185 = vpop.permute.xlu0 %2184
        %v2202 = vsel %vm1174, %v2107, %v2155
        %v2203 = vsel %vm1174, %v2109, %v2157
        %v2204 = vsel %vm1174, %v2111, %v2159
        %v2205 = vsel %vm1174, %v2113, %v2161
        %v2206 = vsel %vm1174, %v2115, %v2163
        %v2207 = vsel %vm1174, %v2117, %v2165
        %v2208 = vsel %vm1174, %v2119, %v2167
        %v2209 = vsel %vm1174, %v2121, %v2169
        %v2210 = vsel %vm1174, %v2123, %v2171
        %v2211 = vsel %vm1174, %v2125, %v2173
        %v2212 = vsel %vm1174, %v2127, %v2175
        %v2213 = vsel %vm1174, %v2129, %v2177
        %v2214 = vsel %vm1174, %v2131, %v2179
        %v2215 = vsel %vm1174, %v2133, %v2181
        %v2216 = vsel %vm1174, %v2135, %v2183
        %v2217 = vsel %vm1174, %v2137, %v2185
        %2218 = vrot.lane.b32.xlu0 %v998, 24
        %v2219 = vpop.permute.xlu0 %2218
        %2220 = vrot.lane.b32.xlu0 %v999, 24
        %v2221 = vpop.permute.xlu0 %2220
        %2222 = vrot.lane.b32.xlu0 %v1000, 24
        %v2223 = vpop.permute.xlu0 %2222
        %2224 = vrot.lane.b32.xlu0 %v1001, 24
        %v2225 = vpop.permute.xlu0 %2224
        %2226 = vrot.lane.b32.xlu0 %v1002, 24
        %v2227 = vpop.permute.xlu0 %2226
        %2228 = vrot.lane.b32.xlu0 %v1003, 24
        %v2229 = vpop.permute.xlu0 %2228
        %2230 = vrot.lane.b32.xlu0 %v1004, 24
        %v2231 = vpop.permute.xlu0 %2230
        %2232 = vrot.lane.b32.xlu0 %v1005, 24
        %v2233 = vpop.permute.xlu0 %2232
        %2234 = vrot.lane.b32.xlu0 %v1006, 24
        %v2235 = vpop.permute.xlu0 %2234
        %2236 = vrot.lane.b32.xlu0 %v1007, 24
        %v2237 = vpop.permute.xlu0 %2236
        %2238 = vrot.lane.b32.xlu0 %v1008, 24
        %v2239 = vpop.permute.xlu0 %2238
        %2240 = vrot.lane.b32.xlu0 %v1009, 24
        %v2241 = vpop.permute.xlu0 %2240
        %2242 = vrot.lane.b32.xlu0 %v1010, 24
        %v2243 = vpop.permute.xlu0 %2242
        %2244 = vrot.lane.b32.xlu0 %v1011, 24
        %v2245 = vpop.permute.xlu0 %2244
        %2246 = vrot.lane.b32.xlu0 %v1012, 24
        %v2247 = vpop.permute.xlu0 %2246
        %2248 = vrot.lane.b32.xlu0 %v1013, 24
        %v2249 = vpop.permute.xlu0 %2248
        %v2266 = vmul.f32 %v710, %v2219
        %v2267 = vmul.f32 %v713, %v2221
        %v2268 = vmul.f32 %v718, %v2223
        %v2269 = vmul.f32 %v721, %v2225
        %v2270 = vmul.f32 %v726, %v2227
        %v2271 = vmul.f32 %v729, %v2229
        %v2272 = vmul.f32 %v734, %v2231
        %v2273 = vmul.f32 %v737, %v2233
        %v2274 = vmul.f32 %v742, %v2235
        %v2275 = vmul.f32 %v745, %v2237
        %v2276 = vmul.f32 %v750, %v2239
        %v2277 = vmul.f32 %v753, %v2241
        %v2278 = vmul.f32 %v758, %v2243
        %v2279 = vmul.f32 %v761, %v2245
        %v2280 = vmul.f32 %v766, %v2247
        %v2281 = vmul.f32 %v769, %v2249
        %v2282 = vmul.f32 %v2202, %v1014
        %v2283 = vmul.f32 %v2203, %v1015
        %v2284 = vmul.f32 %v2204, %v1016
        %v2285 = vmul.f32 %v2205, %v1017
        %v2286 = vmul.f32 %v2206, %v1018
        %v2287 = vmul.f32 %v2207, %v1019
        %v2288 = vmul.f32 %v2208, %v1020
        %v2289 = vmul.f32 %v2209, %v1021
        %v2290 = vmul.f32 %v2210, %v1022
        %v2291 = vmul.f32 %v2211, %v1023
        %v2292 = vmul.f32 %v2212, %v1024
        %v2293 = vmul.f32 %v2213, %v1025
        %v2294 = vmul.f32 %v2214, %v1026
        %v2295 = vmul.f32 %v2215, %v1027
        %v2296 = vmul.f32 %v2216, %v1028
        %v2297 = vmul.f32 %v2217, %v1029
        %2314 = vrot.lane.b32.xlu0 %v2282, 24
        %v2315 = vpop.permute.xlu0 %2314
        %2316 = vrot.lane.b32.xlu0 %v2283, 24
        %v2317 = vpop.permute.xlu0 %2316
        %2318 = vrot.lane.b32.xlu0 %v2284, 24
        %v2319 = vpop.permute.xlu0 %2318
        %2320 = vrot.lane.b32.xlu0 %v2285, 24
        %v2321 = vpop.permute.xlu0 %2320
        %2322 = vrot.lane.b32.xlu0 %v2286, 24
        %v2323 = vpop.permute.xlu0 %2322
        %2324 = vrot.lane.b32.xlu0 %v2287, 24
        %v2325 = vpop.permute.xlu0 %2324
        %2326 = vrot.lane.b32.xlu0 %v2288, 24
        %v2327 = vpop.permute.xlu0 %2326
        %2328 = vrot.lane.b32.xlu0 %v2289, 24
        %v2329 = vpop.permute.xlu0 %2328
        %2330 = vrot.lane.b32.xlu0 %v2290, 24
        %v2331 = vpop.permute.xlu0 %2330
        %2332 = vrot.lane.b32.xlu0 %v2291, 24
        %v2333 = vpop.permute.xlu0 %2332
        %2334 = vrot.lane.b32.xlu0 %v2292, 24
        %v2335 = vpop.permute.xlu0 %2334
        %2336 = vrot.lane.b32.xlu0 %v2293, 24
        %v2337 = vpop.permute.xlu0 %2336
        %2338 = vrot.lane.b32.xlu0 %v2294, 24
        %v2339 = vpop.permute.xlu0 %2338
        %2340 = vrot.lane.b32.xlu0 %v2295, 24
        %v2341 = vpop.permute.xlu0 %2340
        %2342 = vrot.lane.b32.xlu0 %v2296, 24
        %v2343 = vpop.permute.xlu0 %2342
        %2344 = vrot.lane.b32.xlu0 %v2297, 24
        %v2345 = vpop.permute.xlu0 %2344
        %v2362 = vadd.f32 %v2266, %v2315
        %v2363 = vadd.f32 %v2267, %v2317
        %v2364 = vadd.f32 %v2268, %v2319
        %v2365 = vadd.f32 %v2269, %v2321
        %v2366 = vadd.f32 %v2270, %v2323
        %v2367 = vadd.f32 %v2271, %v2325
        %v2368 = vadd.f32 %v2272, %v2327
        %v2369 = vadd.f32 %v2273, %v2329
        %v2370 = vadd.f32 %v2274, %v2331
        %v2371 = vadd.f32 %v2275, %v2333
        %v2372 = vadd.f32 %v2276, %v2335
        %v2373 = vadd.f32 %v2277, %v2337
        %v2374 = vadd.f32 %v2278, %v2339
        %v2375 = vadd.f32 %v2279, %v2341
        %v2376 = vadd.f32 %v2280, %v2343
        %v2377 = vadd.f32 %v2281, %v2345
        %v2378 = vpack.c.bf16 %v2363, %v2362
        %v2379 = vpack.c.bf16 %v2365, %v2364
        %v2380 = vpack.c.bf16 %v2367, %v2366
        %v2381 = vpack.c.bf16 %v2369, %v2368
        %v2382 = vpack.c.bf16 %v2371, %v2370
        %v2383 = vpack.c.bf16 %v2373, %v2372
        %v2384 = vpack.c.bf16 %v2375, %v2374
        %v2385 = vpack.c.bf16 %v2377, %v2376
        %v2394 = vunpack.c.l.b16 %v2378
        %v2395 = vunpack.c.h.b16 %v2378
        %v2396 = vunpack.c.l.b16 %v2379
        %v2397 = vunpack.c.h.b16 %v2379
        %v2398 = vunpack.c.l.b16 %v2380
        %v2399 = vunpack.c.h.b16 %v2380
        %v2400 = vunpack.c.l.b16 %v2381
        %v2401 = vunpack.c.h.b16 %v2381
        %v2402 = vunpack.c.l.b16 %v2382
        %v2403 = vunpack.c.h.b16 %v2382
        %v2404 = vunpack.c.l.b16 %v2383
        %v2405 = vunpack.c.h.b16 %v2383
        %v2406 = vunpack.c.l.b16 %v2384
        %v2407 = vunpack.c.h.b16 %v2384
        %v2408 = vunpack.c.l.b16 %v2385
        %v2409 = vunpack.c.h.b16 %v2385
        %v2410 = vpack.c.b16 %v2394, %v2394
        %v2411 = vpack.c.b16 %v2395, %v2395
        %v2412 = vpack.c.b16 %v2396, %v2396
        %v2413 = vpack.c.b16 %v2397, %v2397
        %v2414 = vpack.c.b16 %v2398, %v2398
        %v2415 = vpack.c.b16 %v2399, %v2399
        %v2416 = vpack.c.b16 %v2400, %v2400
        %v2417 = vpack.c.b16 %v2401, %v2401
        %v2418 = vpack.c.b16 %v2402, %v2402
        %v2419 = vpack.c.b16 %v2403, %v2403
        %v2420 = vpack.c.b16 %v2404, %v2404
        %v2421 = vpack.c.b16 %v2405, %v2405
        %v2422 = vpack.c.b16 %v2406, %v2406
        %v2423 = vpack.c.b16 %v2407, %v2407
        %v2424 = vpack.c.b16 %v2408, %v2408
        %v2425 = vpack.c.b16 %v2409, %v2409
        %2426 = vrot.lane.b32.xlu0 %v2410, 104
        %v2427 = vpop.permute.xlu0 %2426
        %2428 = vrot.lane.b32.xlu0 %v2411, 104
        %v2429 = vpop.permute.xlu0 %2428
        %2430 = vrot.lane.b32.xlu0 %v2412, 104
        %v2431 = vpop.permute.xlu0 %2430
        %2432 = vrot.lane.b32.xlu0 %v2413, 104
        %v2433 = vpop.permute.xlu0 %2432
        %2434 = vrot.lane.b32.xlu0 %v2414, 104
        %v2435 = vpop.permute.xlu0 %2434
        %2436 = vrot.lane.b32.xlu0 %v2415, 104
        %v2437 = vpop.permute.xlu0 %2436
        %2438 = vrot.lane.b32.xlu0 %v2416, 104
        %v2439 = vpop.permute.xlu0 %2438
        %2440 = vrot.lane.b32.xlu0 %v2417, 104
        %v2441 = vpop.permute.xlu0 %2440
        %2442 = vrot.lane.b32.xlu0 %v2418, 104
        %v2443 = vpop.permute.xlu0 %2442
        %2444 = vrot.lane.b32.xlu0 %v2419, 104
        %v2445 = vpop.permute.xlu0 %2444
        %2446 = vrot.lane.b32.xlu0 %v2420, 104
        %v2447 = vpop.permute.xlu0 %2446
        %2448 = vrot.lane.b32.xlu0 %v2421, 104
        %v2449 = vpop.permute.xlu0 %2448
        %2450 = vrot.lane.b32.xlu0 %v2422, 104
        %v2451 = vpop.permute.xlu0 %2450
        %2452 = vrot.lane.b32.xlu0 %v2423, 104
        %v2453 = vpop.permute.xlu0 %2452
        %2454 = vrot.lane.b32.xlu0 %v2424, 104
        %v2455 = vpop.permute.xlu0 %2454
        %2456 = vrot.lane.b32.xlu0 %v2425, 104
        %v2457 = vpop.permute.xlu0 %2456
        %s2474 = scalar_lea.vmem %s409, 192 [#allocation2]
        %2475 = vst.msk [vmem:[%s2474] sm:$0xf] %vm1303, %v2427
        %2476 = vst.msk [vmem:[%s2474 + $0x4] sm:$0xf] %vm1303, %v2429
        %2477 = vst.msk [vmem:[%s2474 + $0x8] sm:$0xf] %vm1303, %v2431
        %2478 = vst.msk [vmem:[%s2474 + $0xc] sm:$0xf] %vm1303, %v2433
        %2479 = vst.msk [vmem:[%s2474 + $0x10] sm:$0xf] %vm1303, %v2435
        %2480 = vst.msk [vmem:[%s2474 + $0x14] sm:$0xf] %vm1303, %v2437
        %2481 = vst.msk [vmem:[%s2474 + $0x18] sm:$0xf] %vm1303, %v2439
        %2482 = vst.msk [vmem:[%s2474 + $0x1c] sm:$0xf] %vm1303, %v2441
        %2483 = vst.msk [vmem:[%s2474 + $0x20] sm:$0xf] %vm1303, %v2443
        %2484 = vst.msk [vmem:[%s2474 + $0x24] sm:$0xf] %vm1303, %v2445
        %2485 = vst.msk [vmem:[%s2474 + $0x28] sm:$0xf] %vm1303, %v2447
        %2486 = vst.msk [vmem:[%s2474 + $0x2c] sm:$0xf] %vm1303, %v2449
        %2487 = vst.msk [vmem:[%s2474 + $0x30] sm:$0xf] %vm1303, %v2451
        %2488 = vst.msk [vmem:[%s2474 + $0x34] sm:$0xf] %vm1303, %v2453
        %2489 = vst.msk [vmem:[%s2474 + $0x38] sm:$0xf] %vm1303, %v2455
        %2490 = vst.msk [vmem:[%s2474 + $0x3c] sm:$0xf] %vm1303, %v2457
        %v2491 = vsub.f32 0.0, %v823
        %v2492 = vsub.f32 0.0, %v826
        %v2493 = vsub.f32 0.0, %v831
        %v2494 = vsub.f32 0.0, %v834
        %v2495 = vsub.f32 0.0, %v839
        %v2496 = vsub.f32 0.0, %v842
        %v2497 = vsub.f32 0.0, %v847
        %v2498 = vsub.f32 0.0, %v850
        %v2499 = vsub.f32 0.0, %v855
        %v2500 = vsub.f32 0.0, %v858
        %v2501 = vsub.f32 0.0, %v863
        %v2502 = vsub.f32 0.0, %v866
        %v2503 = vsub.f32 0.0, %v871
        %v2504 = vsub.f32 0.0, %v874
        %v2505 = vsub.f32 0.0, %v879
        %v2506 = vsub.f32 0.0, %v882
        %2523 = vrot.lane.b32.xlu0 %v2491, 124
        %v2524 = vpop.permute.xlu0 %2523
        %2525 = vrot.lane.b32.xlu0 %v2492, 124
        %v2526 = vpop.permute.xlu0 %2525
        %2527 = vrot.lane.b32.xlu0 %v2493, 124
        %v2528 = vpop.permute.xlu0 %2527
        %2529 = vrot.lane.b32.xlu0 %v2494, 124
        %v2530 = vpop.permute.xlu0 %2529
        %2531 = vrot.lane.b32.xlu0 %v2495, 124
        %v2532 = vpop.permute.xlu0 %2531
        %2533 = vrot.lane.b32.xlu0 %v2496, 124
        %v2534 = vpop.permute.xlu0 %2533
        %2535 = vrot.lane.b32.xlu0 %v2497, 124
        %v2536 = vpop.permute.xlu0 %2535
        %2537 = vrot.lane.b32.xlu0 %v2498, 124
        %v2538 = vpop.permute.xlu0 %2537
        %2539 = vrot.lane.b32.xlu0 %v2499, 124
        %v2540 = vpop.permute.xlu0 %2539
        %2541 = vrot.lane.b32.xlu0 %v2500, 124
        %v2542 = vpop.permute.xlu0 %2541
        %2543 = vrot.lane.b32.xlu0 %v2501, 124
        %v2544 = vpop.permute.xlu0 %2543
        %2545 = vrot.lane.b32.xlu0 %v2502, 124
        %v2546 = vpop.permute.xlu0 %2545
        %2547 = vrot.lane.b32.xlu0 %v2503, 124
        %v2548 = vpop.permute.xlu0 %2547
        %2549 = vrot.lane.b32.xlu0 %v2504, 124
        %v2550 = vpop.permute.xlu0 %2549
        %2551 = vrot.lane.b32.xlu0 %v2505, 124
        %v2552 = vpop.permute.xlu0 %2551
        %2553 = vrot.lane.b32.xlu0 %v2506, 124
        %v2554 = vpop.permute.xlu0 %2553
        %2587 = vrot.lane.b32.xlu0 %v823, 4
        %v2588 = vpop.permute.xlu0 %2587
        %2589 = vrot.lane.b32.xlu0 %v826, 4
        %v2590 = vpop.permute.xlu0 %2589
        %2591 = vrot.lane.b32.xlu0 %v831, 4
        %v2592 = vpop.permute.xlu0 %2591
        %2593 = vrot.lane.b32.xlu0 %v834, 4
        %v2594 = vpop.permute.xlu0 %2593
        %2595 = vrot.lane.b32.xlu0 %v839, 4
        %v2596 = vpop.permute.xlu0 %2595
        %2597 = vrot.lane.b32.xlu0 %v842, 4
        %v2598 = vpop.permute.xlu0 %2597
        %2599 = vrot.lane.b32.xlu0 %v847, 4
        %v2600 = vpop.permute.xlu0 %2599
        %2601 = vrot.lane.b32.xlu0 %v850, 4
        %v2602 = vpop.permute.xlu0 %2601
        %2603 = vrot.lane.b32.xlu0 %v855, 4
        %v2604 = vpop.permute.xlu0 %2603
        %2605 = vrot.lane.b32.xlu0 %v858, 4
        %v2606 = vpop.permute.xlu0 %2605
        %2607 = vrot.lane.b32.xlu0 %v863, 4
        %v2608 = vpop.permute.xlu0 %2607
        %2609 = vrot.lane.b32.xlu0 %v866, 4
        %v2610 = vpop.permute.xlu0 %2609
        %2611 = vrot.lane.b32.xlu0 %v871, 4
        %v2612 = vpop.permute.xlu0 %2611
        %2613 = vrot.lane.b32.xlu0 %v874, 4
        %v2614 = vpop.permute.xlu0 %2613
        %2615 = vrot.lane.b32.xlu0 %v879, 4
        %v2616 = vpop.permute.xlu0 %2615
        %2617 = vrot.lane.b32.xlu0 %v882, 4
        %v2618 = vpop.permute.xlu0 %2617
        %v2635 = vsel %vm1174, %v2524, %v2588
        %v2636 = vsel %vm1174, %v2526, %v2590
        %v2637 = vsel %vm1174, %v2528, %v2592
        %v2638 = vsel %vm1174, %v2530, %v2594
        %v2639 = vsel %vm1174, %v2532, %v2596
        %v2640 = vsel %vm1174, %v2534, %v2598
        %v2641 = vsel %vm1174, %v2536, %v2600
        %v2642 = vsel %vm1174, %v2538, %v2602
        %v2643 = vsel %vm1174, %v2540, %v2604
        %v2644 = vsel %vm1174, %v2542, %v2606
        %v2645 = vsel %vm1174, %v2544, %v2608
        %v2646 = vsel %vm1174, %v2546, %v2610
        %v2647 = vsel %vm1174, %v2548, %v2612
        %v2648 = vsel %vm1174, %v2550, %v2614
        %v2649 = vsel %vm1174, %v2552, %v2616
        %v2650 = vsel %vm1174, %v2554, %v2618
        %v2651 = vmul.f32 %v823, %v998
        %v2652 = vmul.f32 %v826, %v999
        %v2653 = vmul.f32 %v831, %v1000
        %v2654 = vmul.f32 %v834, %v1001
        %v2655 = vmul.f32 %v839, %v1002
        %v2656 = vmul.f32 %v842, %v1003
        %v2657 = vmul.f32 %v847, %v1004
        %v2658 = vmul.f32 %v850, %v1005
        %v2659 = vmul.f32 %v855, %v1006
        %v2660 = vmul.f32 %v858, %v1007
        %v2661 = vmul.f32 %v863, %v1008
        %v2662 = vmul.f32 %v866, %v1009
        %v2663 = vmul.f32 %v871, %v1010
        %v2664 = vmul.f32 %v874, %v1011
        %v2665 = vmul.f32 %v879, %v1012
        %v2666 = vmul.f32 %v882, %v1013
        %v2667 = vmul.f32 %v2635, %v1014
        %v2668 = vmul.f32 %v2636, %v1015
        %v2669 = vmul.f32 %v2637, %v1016
        %v2670 = vmul.f32 %v2638, %v1017
        %v2671 = vmul.f32 %v2639, %v1018
        %v2672 = vmul.f32 %v2640, %v1019
        %v2673 = vmul.f32 %v2641, %v1020
        %v2674 = vmul.f32 %v2642, %v1021
        %v2675 = vmul.f32 %v2643, %v1022
        %v2676 = vmul.f32 %v2644, %v1023
        %v2677 = vmul.f32 %v2645, %v1024
        %v2678 = vmul.f32 %v2646, %v1025
        %v2679 = vmul.f32 %v2647, %v1026
        %v2680 = vmul.f32 %v2648, %v1027
        %v2681 = vmul.f32 %v2649, %v1028
        %v2682 = vmul.f32 %v2650, %v1029
        %v2683 = vadd.f32 %v2651, %v2667
        %v2684 = vadd.f32 %v2652, %v2668
        %v2685 = vadd.f32 %v2653, %v2669
        %v2686 = vadd.f32 %v2654, %v2670
        %v2687 = vadd.f32 %v2655, %v2671
        %v2688 = vadd.f32 %v2656, %v2672
        %v2689 = vadd.f32 %v2657, %v2673
        %v2690 = vadd.f32 %v2658, %v2674
        %v2691 = vadd.f32 %v2659, %v2675
        %v2692 = vadd.f32 %v2660, %v2676
        %v2693 = vadd.f32 %v2661, %v2677
        %v2694 = vadd.f32 %v2662, %v2678
        %v2695 = vadd.f32 %v2663, %v2679
        %v2696 = vadd.f32 %v2664, %v2680
        %v2697 = vadd.f32 %v2665, %v2681
        %v2698 = vadd.f32 %v2666, %v2682
        %vm2699 = vcmask 64512
        %2700 = vst.msk [vmem:[%s415] sm:$0xff] %vm2699, %v2683
        %2701 = vst.msk [vmem:[%s415 + $0x8] sm:$0xff] %vm2699, %v2684
        %2702 = vst.msk [vmem:[%s415 + $0x10] sm:$0xff] %vm2699, %v2685
        %2703 = vst.msk [vmem:[%s415 + $0x18] sm:$0xff] %vm2699, %v2686
        %2704 = vst.msk [vmem:[%s415 + $0x20] sm:$0xff] %vm2699, %v2687
        %2705 = vst.msk [vmem:[%s415 + $0x28] sm:$0xff] %vm2699, %v2688
        %2706 = vst.msk [vmem:[%s415 + $0x30] sm:$0xff] %vm2699, %v2689
        %2707 = vst.msk [vmem:[%s415 + $0x38] sm:$0xff] %vm2699, %v2690
        %2708 = vst.msk [vmem:[%s415 + $0x40] sm:$0xff] %vm2699, %v2691
        %2709 = vst.msk [vmem:[%s415 + $0x48] sm:$0xff] %vm2699, %v2692
        %2710 = vst.msk [vmem:[%s415 + $0x50] sm:$0xff] %vm2699, %v2693
        %2711 = vst.msk [vmem:[%s415 + $0x58] sm:$0xff] %vm2699, %v2694
        %2712 = vst.msk [vmem:[%s415 + $0x60] sm:$0xff] %vm2699, %v2695
        %2713 = vst.msk [vmem:[%s415 + $0x68] sm:$0xff] %vm2699, %v2696
        %2714 = vst.msk [vmem:[%s415 + $0x70] sm:$0xff] %vm2699, %v2697
        %2715 = vst.msk [vmem:[%s415 + $0x78] sm:$0xff] %vm2699, %v2698
        %2716 = vst.msk [vmem:[%s421] sm:$0xff] %vm2699, %v936
        %2717 = vst.msk [vmem:[%s421 + $0x8] sm:$0xff] %vm2699, %v939
        %2718 = vst.msk [vmem:[%s421 + $0x10] sm:$0xff] %vm2699, %v944
        %2719 = vst.msk [vmem:[%s421 + $0x18] sm:$0xff] %vm2699, %v947
        %2720 = vst.msk [vmem:[%s421 + $0x20] sm:$0xff] %vm2699, %v952
        %2721 = vst.msk [vmem:[%s421 + $0x28] sm:$0xff] %vm2699, %v955
        %2722 = vst.msk [vmem:[%s421 + $0x30] sm:$0xff] %vm2699, %v960
        %2723 = vst.msk [vmem:[%s421 + $0x38] sm:$0xff] %vm2699, %v963
        %2724 = vst.msk [vmem:[%s421 + $0x40] sm:$0xff] %vm2699, %v968
        %2725 = vst.msk [vmem:[%s421 + $0x48] sm:$0xff] %vm2699, %v971
        %2726 = vst.msk [vmem:[%s421 + $0x50] sm:$0xff] %vm2699, %v976
        %2727 = vst.msk [vmem:[%s421 + $0x58] sm:$0xff] %vm2699, %v979
        %2728 = vst.msk [vmem:[%s421 + $0x60] sm:$0xff] %vm2699, %v984
        %2729 = vst.msk [vmem:[%s421 + $0x68] sm:$0xff] %vm2699, %v987
        %2730 = vst.msk [vmem:[%s421 + $0x70] sm:$0xff] %vm2699, %v992
        %2731 = vst.msk [vmem:[%s421 + $0x78] sm:$0xff] %vm2699, %v995
        %v2732 = vpack.c.bf16 %v2684, %v2683
        %v2733 = vpack.c.bf16 %v2686, %v2685
        %v2734 = vpack.c.bf16 %v2688, %v2687
        %v2735 = vpack.c.bf16 %v2690, %v2689
        %v2736 = vpack.c.bf16 %v2692, %v2691
        %v2737 = vpack.c.bf16 %v2694, %v2693
        %v2738 = vpack.c.bf16 %v2696, %v2695
        %v2739 = vpack.c.bf16 %v2698, %v2697
        %v2748 = vunpack.c.l.b16 %v2732
        %v2749 = vunpack.c.h.b16 %v2732
        %v2750 = vunpack.c.l.b16 %v2733
        %v2751 = vunpack.c.h.b16 %v2733
        %v2752 = vunpack.c.l.b16 %v2734
        %v2753 = vunpack.c.h.b16 %v2734
        %v2754 = vunpack.c.l.b16 %v2735
        %v2755 = vunpack.c.h.b16 %v2735
        %v2756 = vunpack.c.l.b16 %v2736
        %v2757 = vunpack.c.h.b16 %v2736
        %v2758 = vunpack.c.l.b16 %v2737
        %v2759 = vunpack.c.h.b16 %v2737
        %v2760 = vunpack.c.l.b16 %v2738
        %v2761 = vunpack.c.h.b16 %v2738
        %v2762 = vunpack.c.l.b16 %v2739
        %v2763 = vunpack.c.h.b16 %v2739
        %v2764 = vpack.c.b16 %v2748, %v2748
        %v2765 = vpack.c.b16 %v2749, %v2749
        %v2766 = vpack.c.b16 %v2750, %v2750
        %v2767 = vpack.c.b16 %v2751, %v2751
        %v2768 = vpack.c.b16 %v2752, %v2752
        %v2769 = vpack.c.b16 %v2753, %v2753
        %v2770 = vpack.c.b16 %v2754, %v2754
        %v2771 = vpack.c.b16 %v2755, %v2755
        %v2772 = vpack.c.b16 %v2756, %v2756
        %v2773 = vpack.c.b16 %v2757, %v2757
        %v2774 = vpack.c.b16 %v2758, %v2758
        %v2775 = vpack.c.b16 %v2759, %v2759
        %v2776 = vpack.c.b16 %v2760, %v2760
        %v2777 = vpack.c.b16 %v2761, %v2761
        %v2778 = vpack.c.b16 %v2762, %v2762
        %v2779 = vpack.c.b16 %v2763, %v2763
        %2796 = vst.msk [vmem:[%s427] sm:$0xf] %vm1303, %v2764
        %2797 = vst.msk [vmem:[%s427 + $0x4] sm:$0xf] %vm1303, %v2765
        %2798 = vst.msk [vmem:[%s427 + $0x8] sm:$0xf] %vm1303, %v2766
        %2799 = vst.msk [vmem:[%s427 + $0xc] sm:$0xf] %vm1303, %v2767
        %2800 = vst.msk [vmem:[%s427 + $0x10] sm:$0xf] %vm1303, %v2768
        %2801 = vst.msk [vmem:[%s427 + $0x14] sm:$0xf] %vm1303, %v2769
        %2802 = vst.msk [vmem:[%s427 + $0x18] sm:$0xf] %vm1303, %v2770
        %2803 = vst.msk [vmem:[%s427 + $0x1c] sm:$0xf] %vm1303, %v2771
        %2804 = vst.msk [vmem:[%s427 + $0x20] sm:$0xf] %vm1303, %v2772
        %2805 = vst.msk [vmem:[%s427 + $0x24] sm:$0xf] %vm1303, %v2773
        %2806 = vst.msk [vmem:[%s427 + $0x28] sm:$0xf] %vm1303, %v2774
        %2807 = vst.msk [vmem:[%s427 + $0x2c] sm:$0xf] %vm1303, %v2775
        %2808 = vst.msk [vmem:[%s427 + $0x30] sm:$0xf] %vm1303, %v2776
        %2809 = vst.msk [vmem:[%s427 + $0x34] sm:$0xf] %vm1303, %v2777
        %2810 = vst.msk [vmem:[%s427 + $0x38] sm:$0xf] %vm1303, %v2778
        %2811 = vst.msk [vmem:[%s427 + $0x3c] sm:$0xf] %vm1303, %v2779
        %v2812 = vpack.c.bf16 %v939, %v936
        %v2813 = vpack.c.bf16 %v947, %v944
        %v2814 = vpack.c.bf16 %v955, %v952
        %v2815 = vpack.c.bf16 %v963, %v960
        %v2816 = vpack.c.bf16 %v971, %v968
        %v2817 = vpack.c.bf16 %v979, %v976
        %v2818 = vpack.c.bf16 %v987, %v984
        %v2819 = vpack.c.bf16 %v995, %v992
        %v2828 = vunpack.c.l.b16 %v2812
        %v2829 = vunpack.c.h.b16 %v2812
        %v2830 = vunpack.c.l.b16 %v2813
        %v2831 = vunpack.c.h.b16 %v2813
        %v2832 = vunpack.c.l.b16 %v2814
        %v2833 = vunpack.c.h.b16 %v2814
        %v2834 = vunpack.c.l.b16 %v2815
        %v2835 = vunpack.c.h.b16 %v2815
        %v2836 = vunpack.c.l.b16 %v2816
        %v2837 = vunpack.c.h.b16 %v2816
        %v2838 = vunpack.c.l.b16 %v2817
        %v2839 = vunpack.c.h.b16 %v2817
        %v2840 = vunpack.c.l.b16 %v2818
        %v2841 = vunpack.c.h.b16 %v2818
        %v2842 = vunpack.c.l.b16 %v2819
        %v2843 = vunpack.c.h.b16 %v2819
        %v2844 = vpack.c.b16 %v2828, %v2828
        %v2845 = vpack.c.b16 %v2829, %v2829
        %v2846 = vpack.c.b16 %v2830, %v2830
        %v2847 = vpack.c.b16 %v2831, %v2831
        %v2848 = vpack.c.b16 %v2832, %v2832
        %v2849 = vpack.c.b16 %v2833, %v2833
        %v2850 = vpack.c.b16 %v2834, %v2834
        %v2851 = vpack.c.b16 %v2835, %v2835
        %v2852 = vpack.c.b16 %v2836, %v2836
        %v2853 = vpack.c.b16 %v2837, %v2837
        %v2854 = vpack.c.b16 %v2838, %v2838
        %v2855 = vpack.c.b16 %v2839, %v2839
        %v2856 = vpack.c.b16 %v2840, %v2840
        %v2857 = vpack.c.b16 %v2841, %v2841
        %v2858 = vpack.c.b16 %v2842, %v2842
        %v2859 = vpack.c.b16 %v2843, %v2843
        %2876 = vst.msk [vmem:[%s433] sm:$0xf] %vm1303, %v2844
        %2877 = vst.msk [vmem:[%s433 + $0x4] sm:$0xf] %vm1303, %v2845
        %2878 = vst.msk [vmem:[%s433 + $0x8] sm:$0xf] %vm1303, %v2846
        %2879 = vst.msk [vmem:[%s433 + $0xc] sm:$0xf] %vm1303, %v2847
        %2880 = vst.msk [vmem:[%s433 + $0x10] sm:$0xf] %vm1303, %v2848
        %2881 = vst.msk [vmem:[%s433 + $0x14] sm:$0xf] %vm1303, %v2849
        %2882 = vst.msk [vmem:[%s433 + $0x18] sm:$0xf] %vm1303, %v2850
        %2883 = vst.msk [vmem:[%s433 + $0x1c] sm:$0xf] %vm1303, %v2851
        %2884 = vst.msk [vmem:[%s433 + $0x20] sm:$0xf] %vm1303, %v2852
        %2885 = vst.msk [vmem:[%s433 + $0x24] sm:$0xf] %vm1303, %v2853
        %2886 = vst.msk [vmem:[%s433 + $0x28] sm:$0xf] %vm1303, %v2854
        %2887 = vst.msk [vmem:[%s433 + $0x2c] sm:$0xf] %vm1303, %v2855
        %2888 = vst.msk [vmem:[%s433 + $0x30] sm:$0xf] %vm1303, %v2856
        %2889 = vst.msk [vmem:[%s433 + $0x34] sm:$0xf] %vm1303, %v2857
        %2890 = vst.msk [vmem:[%s433 + $0x38] sm:$0xf] %vm1303, %v2858
        %2891 = vst.msk [vmem:[%s433 + $0x3c] sm:$0xf] %vm1303, %v2859
        %2892 = vrot.lane.b32.xlu0 %v2491, 116
        %v2893 = vpop.permute.xlu0 %2892
        %2894 = vrot.lane.b32.xlu0 %v2492, 116
        %v2895 = vpop.permute.xlu0 %2894
        %2896 = vrot.lane.b32.xlu0 %v2493, 116
        %v2897 = vpop.permute.xlu0 %2896
        %2898 = vrot.lane.b32.xlu0 %v2494, 116
        %v2899 = vpop.permute.xlu0 %2898
        %2900 = vrot.lane.b32.xlu0 %v2495, 116
        %v2901 = vpop.permute.xlu0 %2900
        %2902 = vrot.lane.b32.xlu0 %v2496, 116
        %v2903 = vpop.permute.xlu0 %2902
        %2904 = vrot.lane.b32.xlu0 %v2497, 116
        %v2905 = vpop.permute.xlu0 %2904
        %2906 = vrot.lane.b32.xlu0 %v2498, 116
        %v2907 = vpop.permute.xlu0 %2906
        %2908 = vrot.lane.b32.xlu0 %v2499, 116
        %v2909 = vpop.permute.xlu0 %2908
        %2910 = vrot.lane.b32.xlu0 %v2500, 116
        %v2911 = vpop.permute.xlu0 %2910
        %2912 = vrot.lane.b32.xlu0 %v2501, 116
        %v2913 = vpop.permute.xlu0 %2912
        %2914 = vrot.lane.b32.xlu0 %v2502, 116
        %v2915 = vpop.permute.xlu0 %2914
        %2916 = vrot.lane.b32.xlu0 %v2503, 116
        %v2917 = vpop.permute.xlu0 %2916
        %2918 = vrot.lane.b32.xlu0 %v2504, 116
        %v2919 = vpop.permute.xlu0 %2918
        %2920 = vrot.lane.b32.xlu0 %v2505, 116
        %v2921 = vpop.permute.xlu0 %2920
        %2922 = vrot.lane.b32.xlu0 %v2506, 116
        %v2923 = vpop.permute.xlu0 %2922
        %2940 = vrot.lane.b32.xlu0 %v823, 124
        %v2941 = vpop.permute.xlu0 %2940
        %2942 = vrot.lane.b32.xlu0 %v826, 124
        %v2943 = vpop.permute.xlu0 %2942
        %2944 = vrot.lane.b32.xlu0 %v831, 124
        %v2945 = vpop.permute.xlu0 %2944
        %2946 = vrot.lane.b32.xlu0 %v834, 124
        %v2947 = vpop.permute.xlu0 %2946
        %2948 = vrot.lane.b32.xlu0 %v839, 124
        %v2949 = vpop.permute.xlu0 %2948
        %2950 = vrot.lane.b32.xlu0 %v842, 124
        %v2951 = vpop.permute.xlu0 %2950
        %2952 = vrot.lane.b32.xlu0 %v847, 124
        %v2953 = vpop.permute.xlu0 %2952
        %2954 = vrot.lane.b32.xlu0 %v850, 124
        %v2955 = vpop.permute.xlu0 %2954
        %2956 = vrot.lane.b32.xlu0 %v855, 124
        %v2957 = vpop.permute.xlu0 %2956
        %2958 = vrot.lane.b32.xlu0 %v858, 124
        %v2959 = vpop.permute.xlu0 %2958
        %2960 = vrot.lane.b32.xlu0 %v863, 124
        %v2961 = vpop.permute.xlu0 %2960
        %2962 = vrot.lane.b32.xlu0 %v866, 124
        %v2963 = vpop.permute.xlu0 %2962
        %2964 = vrot.lane.b32.xlu0 %v871, 124
        %v2965 = vpop.permute.xlu0 %2964
        %2966 = vrot.lane.b32.xlu0 %v874, 124
        %v2967 = vpop.permute.xlu0 %2966
        %2968 = vrot.lane.b32.xlu0 %v879, 124
        %v2969 = vpop.permute.xlu0 %2968
        %2970 = vrot.lane.b32.xlu0 %v882, 124
        %v2971 = vpop.permute.xlu0 %2970
        %v2988 = vsel %vm1174, %v2893, %v2941
        %v2989 = vsel %vm1174, %v2895, %v2943
        %v2990 = vsel %vm1174, %v2897, %v2945
        %v2991 = vsel %vm1174, %v2899, %v2947
        %v2992 = vsel %vm1174, %v2901, %v2949
        %v2993 = vsel %vm1174, %v2903, %v2951
        %v2994 = vsel %vm1174, %v2905, %v2953
        %v2995 = vsel %vm1174, %v2907, %v2955
        %v2996 = vsel %vm1174, %v2909, %v2957
        %v2997 = vsel %vm1174, %v2911, %v2959
        %v2998 = vsel %vm1174, %v2913, %v2961
        %v2999 = vsel %vm1174, %v2915, %v2963
        %v3000 = vsel %vm1174, %v2917, %v2965
        %v3001 = vsel %vm1174, %v2919, %v2967
        %v3002 = vsel %vm1174, %v2921, %v2969
        %v3003 = vsel %vm1174, %v2923, %v2971
        %v3004 = vmul.f32 %v823, %v1449
        %v3005 = vmul.f32 %v826, %v1451
        %v3006 = vmul.f32 %v831, %v1453
        %v3007 = vmul.f32 %v834, %v1455
        %v3008 = vmul.f32 %v839, %v1457
        %v3009 = vmul.f32 %v842, %v1459
        %v3010 = vmul.f32 %v847, %v1461
        %v3011 = vmul.f32 %v850, %v1463
        %v3012 = vmul.f32 %v855, %v1465
        %v3013 = vmul.f32 %v858, %v1467
        %v3014 = vmul.f32 %v863, %v1469
        %v3015 = vmul.f32 %v866, %v1471
        %v3016 = vmul.f32 %v871, %v1473
        %v3017 = vmul.f32 %v874, %v1475
        %v3018 = vmul.f32 %v879, %v1477
        %v3019 = vmul.f32 %v882, %v1479
        %v3020 = vmul.f32 %v2988, %v1014
        %v3021 = vmul.f32 %v2989, %v1015
        %v3022 = vmul.f32 %v2990, %v1016
        %v3023 = vmul.f32 %v2991, %v1017
        %v3024 = vmul.f32 %v2992, %v1018
        %v3025 = vmul.f32 %v2993, %v1019
        %v3026 = vmul.f32 %v2994, %v1020
        %v3027 = vmul.f32 %v2995, %v1021
        %v3028 = vmul.f32 %v2996, %v1022
        %v3029 = vmul.f32 %v2997, %v1023
        %v3030 = vmul.f32 %v2998, %v1024
        %v3031 = vmul.f32 %v2999, %v1025
        %v3032 = vmul.f32 %v3000, %v1026
        %v3033 = vmul.f32 %v3001, %v1027
        %v3034 = vmul.f32 %v3002, %v1028
        %v3035 = vmul.f32 %v3003, %v1029
        %3052 = vrot.lane.b32.xlu0 %v3020, 8
        %v3053 = vpop.permute.xlu0 %3052
        %3054 = vrot.lane.b32.xlu0 %v3021, 8
        %v3055 = vpop.permute.xlu0 %3054
        %3056 = vrot.lane.b32.xlu0 %v3022, 8
        %v3057 = vpop.permute.xlu0 %3056
        %3058 = vrot.lane.b32.xlu0 %v3023, 8
        %v3059 = vpop.permute.xlu0 %3058
        %3060 = vrot.lane.b32.xlu0 %v3024, 8
        %v3061 = vpop.permute.xlu0 %3060
        %3062 = vrot.lane.b32.xlu0 %v3025, 8
        %v3063 = vpop.permute.xlu0 %3062
        %3064 = vrot.lane.b32.xlu0 %v3026, 8
        %v3065 = vpop.permute.xlu0 %3064
        %3066 = vrot.lane.b32.xlu0 %v3027, 8
        %v3067 = vpop.permute.xlu0 %3066
        %3068 = vrot.lane.b32.xlu0 %v3028, 8
        %v3069 = vpop.permute.xlu0 %3068
        %3070 = vrot.lane.b32.xlu0 %v3029, 8
        %v3071 = vpop.permute.xlu0 %3070
        %3072 = vrot.lane.b32.xlu0 %v3030, 8
        %v3073 = vpop.permute.xlu0 %3072
        %3074 = vrot.lane.b32.xlu0 %v3031, 8
        %v3075 = vpop.permute.xlu0 %3074
        %3076 = vrot.lane.b32.xlu0 %v3032, 8
        %v3077 = vpop.permute.xlu0 %3076
        %3078 = vrot.lane.b32.xlu0 %v3033, 8
        %v3079 = vpop.permute.xlu0 %3078
        %3080 = vrot.lane.b32.xlu0 %v3034, 8
        %v3081 = vpop.permute.xlu0 %3080
        %3082 = vrot.lane.b32.xlu0 %v3035, 8
        %v3083 = vpop.permute.xlu0 %3082
        %v3100 = vadd.f32 %v3004, %v3053
        %v3101 = vadd.f32 %v3005, %v3055
        %v3102 = vadd.f32 %v3006, %v3057
        %v3103 = vadd.f32 %v3007, %v3059
        %v3104 = vadd.f32 %v3008, %v3061
        %v3105 = vadd.f32 %v3009, %v3063
        %v3106 = vadd.f32 %v3010, %v3065
        %v3107 = vadd.f32 %v3011, %v3067
        %v3108 = vadd.f32 %v3012, %v3069
        %v3109 = vadd.f32 %v3013, %v3071
        %v3110 = vadd.f32 %v3014, %v3073
        %v3111 = vadd.f32 %v3015, %v3075
        %v3112 = vadd.f32 %v3016, %v3077
        %v3113 = vadd.f32 %v3017, %v3079
        %v3114 = vadd.f32 %v3018, %v3081
        %v3115 = vadd.f32 %v3019, %v3083
        %3132 = vrot.lane.b32.xlu0 %v3100, 120
        %v3133 = vpop.permute.xlu0 %3132
        %3134 = vrot.lane.b32.xlu0 %v3101, 120
        %v3135 = vpop.permute.xlu0 %3134
        %3136 = vrot.lane.b32.xlu0 %v3102, 120
        %v3137 = vpop.permute.xlu0 %3136
        %3138 = vrot.lane.b32.xlu0 %v3103, 120
        %v3139 = vpop.permute.xlu0 %3138
        %3140 = vrot.lane.b32.xlu0 %v3104, 120
        %v3141 = vpop.permute.xlu0 %3140
        %3142 = vrot.lane.b32.xlu0 %v3105, 120
        %v3143 = vpop.permute.xlu0 %3142
        %3144 = vrot.lane.b32.xlu0 %v3106, 120
        %v3145 = vpop.permute.xlu0 %3144
        %3146 = vrot.lane.b32.xlu0 %v3107, 120
        %v3147 = vpop.permute.xlu0 %3146
        %3148 = vrot.lane.b32.xlu0 %v3108, 120
        %v3149 = vpop.permute.xlu0 %3148
        %3150 = vrot.lane.b32.xlu0 %v3109, 120
        %v3151 = vpop.permute.xlu0 %3150
        %3152 = vrot.lane.b32.xlu0 %v3110, 120
        %v3153 = vpop.permute.xlu0 %3152
        %3154 = vrot.lane.b32.xlu0 %v3111, 120
        %v3155 = vpop.permute.xlu0 %3154
        %3156 = vrot.lane.b32.xlu0 %v3112, 120
        %v3157 = vpop.permute.xlu0 %3156
        %3158 = vrot.lane.b32.xlu0 %v3113, 120
        %v3159 = vpop.permute.xlu0 %3158
        %3160 = vrot.lane.b32.xlu0 %v3114, 120
        %v3161 = vpop.permute.xlu0 %3160
        %3162 = vrot.lane.b32.xlu0 %v3115, 120
        %v3163 = vpop.permute.xlu0 %3162
        %s3180 = scalar_lea.vmem %s415, 128 [#allocation3]
        %3181 = vst.msk [vmem:[%s3180] sm:$0xff] %vm2699, %v3133
        %3182 = vst.msk [vmem:[%s3180 + $0x8] sm:$0xff] %vm2699, %v3135
        %3183 = vst.msk [vmem:[%s3180 + $0x10] sm:$0xff] %vm2699, %v3137
        %3184 = vst.msk [vmem:[%s3180 + $0x18] sm:$0xff] %vm2699, %v3139
        %3185 = vst.msk [vmem:[%s3180 + $0x20] sm:$0xff] %vm2699, %v3141
        %3186 = vst.msk [vmem:[%s3180 + $0x28] sm:$0xff] %vm2699, %v3143
        %3187 = vst.msk [vmem:[%s3180 + $0x30] sm:$0xff] %vm2699, %v3145
        %3188 = vst.msk [vmem:[%s3180 + $0x38] sm:$0xff] %vm2699, %v3147
        %3189 = vst.msk [vmem:[%s3180 + $0x40] sm:$0xff] %vm2699, %v3149
        %3190 = vst.msk [vmem:[%s3180 + $0x48] sm:$0xff] %vm2699, %v3151
        %3191 = vst.msk [vmem:[%s3180 + $0x50] sm:$0xff] %vm2699, %v3153
        %3192 = vst.msk [vmem:[%s3180 + $0x58] sm:$0xff] %vm2699, %v3155
        %3193 = vst.msk [vmem:[%s3180 + $0x60] sm:$0xff] %vm2699, %v3157
        %3194 = vst.msk [vmem:[%s3180 + $0x68] sm:$0xff] %vm2699, %v3159
        %3195 = vst.msk [vmem:[%s3180 + $0x70] sm:$0xff] %vm2699, %v3161
        %3196 = vst.msk [vmem:[%s3180 + $0x78] sm:$0xff] %vm2699, %v3163
        %3213 = vrot.lane.b32.xlu0 %v936, 120
        %v3214 = vpop.permute.xlu0 %3213
        %3215 = vrot.lane.b32.xlu0 %v939, 120
        %v3216 = vpop.permute.xlu0 %3215
        %3217 = vrot.lane.b32.xlu0 %v944, 120
        %v3218 = vpop.permute.xlu0 %3217
        %3219 = vrot.lane.b32.xlu0 %v947, 120
        %v3220 = vpop.permute.xlu0 %3219
        %3221 = vrot.lane.b32.xlu0 %v952, 120
        %v3222 = vpop.permute.xlu0 %3221
        %3223 = vrot.lane.b32.xlu0 %v955, 120
        %v3224 = vpop.permute.xlu0 %3223
        %3225 = vrot.lane.b32.xlu0 %v960, 120
        %v3226 = vpop.permute.xlu0 %3225
        %3227 = vrot.lane.b32.xlu0 %v963, 120
        %v3228 = vpop.permute.xlu0 %3227
        %3229 = vrot.lane.b32.xlu0 %v968, 120
        %v3230 = vpop.permute.xlu0 %3229
        %3231 = vrot.lane.b32.xlu0 %v971, 120
        %v3232 = vpop.permute.xlu0 %3231
        %3233 = vrot.lane.b32.xlu0 %v976, 120
        %v3234 = vpop.permute.xlu0 %3233
        %3235 = vrot.lane.b32.xlu0 %v979, 120
        %v3236 = vpop.permute.xlu0 %3235
        %3237 = vrot.lane.b32.xlu0 %v984, 120
        %v3238 = vpop.permute.xlu0 %3237
        %3239 = vrot.lane.b32.xlu0 %v987, 120
        %v3240 = vpop.permute.xlu0 %3239
        %3241 = vrot.lane.b32.xlu0 %v992, 120
        %v3242 = vpop.permute.xlu0 %3241
        %3243 = vrot.lane.b32.xlu0 %v995, 120
        %v3244 = vpop.permute.xlu0 %3243
        %s3261 = scalar_lea.vmem %s421, 128 [#allocation4]
        %3262 = vst.msk [vmem:[%s3261] sm:$0xff] %vm2699, %v3214
        %3263 = vst.msk [vmem:[%s3261 + $0x8] sm:$0xff] %vm2699, %v3216
        %3264 = vst.msk [vmem:[%s3261 + $0x10] sm:$0xff] %vm2699, %v3218
        %3265 = vst.msk [vmem:[%s3261 + $0x18] sm:$0xff] %vm2699, %v3220
        %3266 = vst.msk [vmem:[%s3261 + $0x20] sm:$0xff] %vm2699, %v3222
        %3267 = vst.msk [vmem:[%s3261 + $0x28] sm:$0xff] %vm2699, %v3224
        %3268 = vst.msk [vmem:[%s3261 + $0x30] sm:$0xff] %vm2699, %v3226
        %3269 = vst.msk [vmem:[%s3261 + $0x38] sm:$0xff] %vm2699, %v3228
        %3270 = vst.msk [vmem:[%s3261 + $0x40] sm:$0xff] %vm2699, %v3230
        %3271 = vst.msk [vmem:[%s3261 + $0x48] sm:$0xff] %vm2699, %v3232
        %3272 = vst.msk [vmem:[%s3261 + $0x50] sm:$0xff] %vm2699, %v3234
        %3273 = vst.msk [vmem:[%s3261 + $0x58] sm:$0xff] %vm2699, %v3236
        %3274 = vst.msk [vmem:[%s3261 + $0x60] sm:$0xff] %vm2699, %v3238
        %3275 = vst.msk [vmem:[%s3261 + $0x68] sm:$0xff] %vm2699, %v3240
        %3276 = vst.msk [vmem:[%s3261 + $0x70] sm:$0xff] %vm2699, %v3242
        %3277 = vst.msk [vmem:[%s3261 + $0x78] sm:$0xff] %vm2699, %v3244
        %v3278 = vpack.c.bf16 %v3101, %v3100
        %v3279 = vpack.c.bf16 %v3103, %v3102
        %v3280 = vpack.c.bf16 %v3105, %v3104
        %v3281 = vpack.c.bf16 %v3107, %v3106
        %v3282 = vpack.c.bf16 %v3109, %v3108
        %v3283 = vpack.c.bf16 %v3111, %v3110
        %v3284 = vpack.c.bf16 %v3113, %v3112
        %v3285 = vpack.c.bf16 %v3115, %v3114
        %v3294 = vunpack.c.l.b16 %v3278
        %v3295 = vunpack.c.h.b16 %v3278
        %v3296 = vunpack.c.l.b16 %v3279
        %v3297 = vunpack.c.h.b16 %v3279
        %v3298 = vunpack.c.l.b16 %v3280
        %v3299 = vunpack.c.h.b16 %v3280
        %v3300 = vunpack.c.l.b16 %v3281
        %v3301 = vunpack.c.h.b16 %v3281
        %v3302 = vunpack.c.l.b16 %v3282
        %v3303 = vunpack.c.h.b16 %v3282
        %v3304 = vunpack.c.l.b16 %v3283
        %v3305 = vunpack.c.h.b16 %v3283
        %v3306 = vunpack.c.l.b16 %v3284
        %v3307 = vunpack.c.h.b16 %v3284
        %v3308 = vunpack.c.l.b16 %v3285
        %v3309 = vunpack.c.h.b16 %v3285
        %v3310 = vpack.c.b16 %v3294, %v3294
        %v3311 = vpack.c.b16 %v3295, %v3295
        %v3312 = vpack.c.b16 %v3296, %v3296
        %v3313 = vpack.c.b16 %v3297, %v3297
        %v3314 = vpack.c.b16 %v3298, %v3298
        %v3315 = vpack.c.b16 %v3299, %v3299
        %v3316 = vpack.c.b16 %v3300, %v3300
        %v3317 = vpack.c.b16 %v3301, %v3301
        %v3318 = vpack.c.b16 %v3302, %v3302
        %v3319 = vpack.c.b16 %v3303, %v3303
        %v3320 = vpack.c.b16 %v3304, %v3304
        %v3321 = vpack.c.b16 %v3305, %v3305
        %v3322 = vpack.c.b16 %v3306, %v3306
        %v3323 = vpack.c.b16 %v3307, %v3307
        %v3324 = vpack.c.b16 %v3308, %v3308
        %v3325 = vpack.c.b16 %v3309, %v3309
        %3326 = vrot.lane.b32.xlu0 %v3310, 120
        %v3327 = vpop.permute.xlu0 %3326
        %3328 = vrot.lane.b32.xlu0 %v3311, 120
        %v3329 = vpop.permute.xlu0 %3328
        %3330 = vrot.lane.b32.xlu0 %v3312, 120
        %v3331 = vpop.permute.xlu0 %3330
        %3332 = vrot.lane.b32.xlu0 %v3313, 120
        %v3333 = vpop.permute.xlu0 %3332
        %3334 = vrot.lane.b32.xlu0 %v3314, 120
        %v3335 = vpop.permute.xlu0 %3334
        %3336 = vrot.lane.b32.xlu0 %v3315, 120
        %v3337 = vpop.permute.xlu0 %3336
        %3338 = vrot.lane.b32.xlu0 %v3316, 120
        %v3339 = vpop.permute.xlu0 %3338
        %3340 = vrot.lane.b32.xlu0 %v3317, 120
        %v3341 = vpop.permute.xlu0 %3340
        %3342 = vrot.lane.b32.xlu0 %v3318, 120
        %v3343 = vpop.permute.xlu0 %3342
        %3344 = vrot.lane.b32.xlu0 %v3319, 120
        %v3345 = vpop.permute.xlu0 %3344
        %3346 = vrot.lane.b32.xlu0 %v3320, 120
        %v3347 = vpop.permute.xlu0 %3346
        %3348 = vrot.lane.b32.xlu0 %v3321, 120
        %v3349 = vpop.permute.xlu0 %3348
        %3350 = vrot.lane.b32.xlu0 %v3322, 120
        %v3351 = vpop.permute.xlu0 %3350
        %3352 = vrot.lane.b32.xlu0 %v3323, 120
        %v3353 = vpop.permute.xlu0 %3352
        %3354 = vrot.lane.b32.xlu0 %v3324, 120
        %v3355 = vpop.permute.xlu0 %3354
        %3356 = vrot.lane.b32.xlu0 %v3325, 120
        %v3357 = vpop.permute.xlu0 %3356
        %s3374 = scalar_lea.vmem %s427, 64 [#allocation5]
        %3375 = vst.msk [vmem:[%s3374] sm:$0xf] %vm1303, %v3327
        %3376 = vst.msk [vmem:[%s3374 + $0x4] sm:$0xf] %vm1303, %v3329
        %3377 = vst.msk [vmem:[%s3374 + $0x8] sm:$0xf] %vm1303, %v3331
        %3378 = vst.msk [vmem:[%s3374 + $0xc] sm:$0xf] %vm1303, %v3333
        %3379 = vst.msk [vmem:[%s3374 + $0x10] sm:$0xf] %vm1303, %v3335
        %3380 = vst.msk [vmem:[%s3374 + $0x14] sm:$0xf] %vm1303, %v3337
        %3381 = vst.msk [vmem:[%s3374 + $0x18] sm:$0xf] %vm1303, %v3339
        %3382 = vst.msk [vmem:[%s3374 + $0x1c] sm:$0xf] %vm1303, %v3341
        %3383 = vst.msk [vmem:[%s3374 + $0x20] sm:$0xf] %vm1303, %v3343
        %3384 = vst.msk [vmem:[%s3374 + $0x24] sm:$0xf] %vm1303, %v3345
        %3385 = vst.msk [vmem:[%s3374 + $0x28] sm:$0xf] %vm1303, %v3347
        %3386 = vst.msk [vmem:[%s3374 + $0x2c] sm:$0xf] %vm1303, %v3349
        %3387 = vst.msk [vmem:[%s3374 + $0x30] sm:$0xf] %vm1303, %v3351
        %3388 = vst.msk [vmem:[%s3374 + $0x34] sm:$0xf] %vm1303, %v3353
        %3389 = vst.msk [vmem:[%s3374 + $0x38] sm:$0xf] %vm1303, %v3355
        %3390 = vst.msk [vmem:[%s3374 + $0x3c] sm:$0xf] %vm1303, %v3357
        %3391 = vrot.lane.b32.xlu0 %v2844, 120
        %v3392 = vpop.permute.xlu0 %3391
        %3393 = vrot.lane.b32.xlu0 %v2845, 120
        %v3394 = vpop.permute.xlu0 %3393
        %3395 = vrot.lane.b32.xlu0 %v2846, 120
        %v3396 = vpop.permute.xlu0 %3395
        %3397 = vrot.lane.b32.xlu0 %v2847, 120
        %v3398 = vpop.permute.xlu0 %3397
        %3399 = vrot.lane.b32.xlu0 %v2848, 120
        %v3400 = vpop.permute.xlu0 %3399
        %3401 = vrot.lane.b32.xlu0 %v2849, 120
        %v3402 = vpop.permute.xlu0 %3401
        %3403 = vrot.lane.b32.xlu0 %v2850, 120
        %v3404 = vpop.permute.xlu0 %3403
        %3405 = vrot.lane.b32.xlu0 %v2851, 120
        %v3406 = vpop.permute.xlu0 %3405
        %3407 = vrot.lane.b32.xlu0 %v2852, 120
        %v3408 = vpop.permute.xlu0 %3407
        %3409 = vrot.lane.b32.xlu0 %v2853, 120
        %v3410 = vpop.permute.xlu0 %3409
        %3411 = vrot.lane.b32.xlu0 %v2854, 120
        %v3412 = vpop.permute.xlu0 %3411
        %3413 = vrot.lane.b32.xlu0 %v2855, 120
        %v3414 = vpop.permute.xlu0 %3413
        %3415 = vrot.lane.b32.xlu0 %v2856, 120
        %v3416 = vpop.permute.xlu0 %3415
        %3417 = vrot.lane.b32.xlu0 %v2857, 120
        %v3418 = vpop.permute.xlu0 %3417
        %3419 = vrot.lane.b32.xlu0 %v2858, 120
        %v3420 = vpop.permute.xlu0 %3419
        %3421 = vrot.lane.b32.xlu0 %v2859, 120
        %v3422 = vpop.permute.xlu0 %3421
        %s3439 = scalar_lea.vmem %s433, 64 [#allocation6]
        %3440 = vst.msk [vmem:[%s3439] sm:$0xf] %vm1303, %v3392
        %3441 = vst.msk [vmem:[%s3439 + $0x4] sm:$0xf] %vm1303, %v3394
        %3442 = vst.msk [vmem:[%s3439 + $0x8] sm:$0xf] %vm1303, %v3396
        %3443 = vst.msk [vmem:[%s3439 + $0xc] sm:$0xf] %vm1303, %v3398
        %3444 = vst.msk [vmem:[%s3439 + $0x10] sm:$0xf] %vm1303, %v3400
        %3445 = vst.msk [vmem:[%s3439 + $0x14] sm:$0xf] %vm1303, %v3402
        %3446 = vst.msk [vmem:[%s3439 + $0x18] sm:$0xf] %vm1303, %v3404
        %3447 = vst.msk [vmem:[%s3439 + $0x1c] sm:$0xf] %vm1303, %v3406
        %3448 = vst.msk [vmem:[%s3439 + $0x20] sm:$0xf] %vm1303, %v3408
        %3449 = vst.msk [vmem:[%s3439 + $0x24] sm:$0xf] %vm1303, %v3410
        %3450 = vst.msk [vmem:[%s3439 + $0x28] sm:$0xf] %vm1303, %v3412
        %3451 = vst.msk [vmem:[%s3439 + $0x2c] sm:$0xf] %vm1303, %v3414
        %3452 = vst.msk [vmem:[%s3439 + $0x30] sm:$0xf] %vm1303, %v3416
        %3453 = vst.msk [vmem:[%s3439 + $0x34] sm:$0xf] %vm1303, %v3418
        %3454 = vst.msk [vmem:[%s3439 + $0x38] sm:$0xf] %vm1303, %v3420
        %3455 = vst.msk [vmem:[%s3439 + $0x3c] sm:$0xf] %vm1303, %v3422
        %s3456 = sand.u32 %s193, 1
        %s3457 = sand.u32 %s193, 1
        %s3458 = smul.addr %s3457, 256
        %s3459 = scalar_lea.vmem [#allocation2], %s3458
        %s3460 = sand.u32 %s219, 1
        %s3461 = sand.u32 %s219, 1
        %s3462 = smul.addr %s3461, 256
        %s3463 = scalar_lea.vmem [#allocation3], %s3462
        %s3464 = sand.u32 %s245, 1
        %s3465 = sand.u32 %s245, 1
        %s3466 = smul.addr %s3465, 256
        %s3467 = scalar_lea.vmem [#allocation4], %s3466
        %s3468 = sand.u32 %s271, 1
        %s3469 = sand.u32 %s271, 1
        %s3470 = smul.addr %s3469, 128
        %s3471 = scalar_lea.vmem [#allocation5], %s3470
        %s3472 = sand.u32 %s297, 1
        %s3473 = sand.u32 %s297, 1
        %s3474 = smul.addr %s3473, 128
        %s3475 = scalar_lea.vmem [#allocation6], %s3474
        // Predicated region
        $region49: #{tpu_custom_call.1} parent=47 // pred_check
          %p3476 = pneg %p203
        $region50: #{tpu_custom_call.1} parent=47 // pred_check_branch
          %3478 = sbr.rel (%p3476) target = $region52
        $region51: #{tpu_custom_call.1} parent=47 // pred_region
          %s3479 = smul.u32 16, %s23
          %s3480 = smul.addr %s3479, 4
          %s3481 = scalar_lea.vmem %s7, %s3480
          // Predicated region
          $region53: #{tpu_custom_call.1} parent=51 // pred_check
            _
          $region54: #{tpu_custom_call.1} parent=51 // pred_check_branch
            %3483 = sbr.rel (0) target = $region56
          $region55: #{tpu_custom_call.1} parent=51 // pred_region
            // Predicated region
            $region57: #{tpu_custom_call.1} parent=55 // pred_check
              _
            $region58: #{tpu_custom_call.1} parent=55 // pred_check_branch
              %3485 = sbr.rel target = $region60
            $region59: #{tpu_custom_call.1} parent=55 // pred_region
              // Predicated region
              $region72: #{tpu_custom_call.1} parent=59 // pred_check
                _
              $region73: #{tpu_custom_call.1} parent=59 // pred_check_branch
                %3626 = sbr.rel (0) target = $region75
              $region74: #{tpu_custom_call.1} parent=59 // pred_region
                loop: start=0, step=1, limit=1
                $region76: #{tpu_custom_call.1} parent=74 // loop_pre_header
                  _
                $region77: #{tpu_custom_call.1} parent=74 // loop_header
                  %s3628 = sphi 0, %s3632
                  %p3629 = scmp.ge.s32.totalorder %s3628, 1
                  %s3633 = sphi %s3459, %s3459
                  %s3634 = sphi %s3481, %s3481
                $region78: #{tpu_custom_call.1} parent=74 // loop_header_branch
                  %3631 = sbr.rel (%p3629) target = $region82
                $region79: #{tpu_custom_call.1} parent=74 // loop_body
                  _
                $region80: #{tpu_custom_call.1} parent=74 // loop_footer
                  %s3632 = sadd.s32 1, %s3628
                $region81: #{tpu_custom_call.1} parent=74 // loop_footer_branch
                  %3627 = sbr.rel target = $region77
                $region82: #{tpu_custom_call.1} parent=74 // loop_exit
                  _
                loop: start=0, step=1, limit=1
                $region83: #{tpu_custom_call.1} parent=74 // loop_pre_header
                  _
                $region84: #{tpu_custom_call.1} parent=74 // loop_header
                  %s3637 = sphi 0, %s3641
                  %p3638 = scmp.ge.s32.totalorder %s3637, 1
                  %s3642 = sphi %s3459, %s3459
                  %s3643 = sphi %s3481, %s3481
                $region85: #{tpu_custom_call.1} parent=74 // loop_header_branch
                  %3640 = sbr.rel (%p3638) target = $region89
                $region86: #{tpu_custom_call.1} parent=74 // loop_body
                  %v3644 = vld [vmem:[%s3642] sm:$0xf]
                  %3645 = vst [vmem:[%s3643] sm:$0xf] %v3644
                  %v3646 = vld [vmem:[%s3642 + $0x4] sm:$0xf]
                  %3647 = vst [vmem:[%s3643 + $0x4] sm:$0xf] %v3646
                  %v3648 = vld [vmem:[%s3642 + $0x8] sm:$0xf]
                  %3649 = vst [vmem:[%s3643 + $0x8] sm:$0xf] %v3648
                  %v3650 = vld [vmem:[%s3642 + $0xc] sm:$0xf]
                  %3651 = vst [vmem:[%s3643 + $0xc] sm:$0xf] %v3650
                  %v3652 = vld [vmem:[%s3642 + $0x10] sm:$0xf]
                  %3653 = vst [vmem:[%s3643 + $0x10] sm:$0xf] %v3652
                  %v3654 = vld [vmem:[%s3642 + $0x14] sm:$0xf]
                  %3655 = vst [vmem:[%s3643 + $0x14] sm:$0xf] %v3654
                  %v3656 = vld [vmem:[%s3642 + $0x18] sm:$0xf]
                  %3657 = vst [vmem:[%s3643 + $0x18] sm:$0xf] %v3656
                  %v3658 = vld [vmem:[%s3642 + $0x1c] sm:$0xf]
                  %3659 = vst [vmem:[%s3643 + $0x1c] sm:$0xf] %v3658
                  %v3660 = vld [vmem:[%s3642 + $0x20] sm:$0xf]
                  %3661 = vst [vmem:[%s3643 + $0x20] sm:$0xf] %v3660
                  %v3662 = vld [vmem:[%s3642 + $0x24] sm:$0xf]
                  %3663 = vst [vmem:[%s3643 + $0x24] sm:$0xf] %v3662
                  %v3664 = vld [vmem:[%s3642 + $0x28] sm:$0xf]
                  %3665 = vst [vmem:[%s3643 + $0x28] sm:$0xf] %v3664
                  %v3666 = vld [vmem:[%s3642 + $0x2c] sm:$0xf]
                  %3667 = vst [vmem:[%s3643 + $0x2c] sm:$0xf] %v3666
                  %v3668 = vld [vmem:[%s3642 + $0x30] sm:$0xf]
                  %3669 = vst [vmem:[%s3643 + $0x30] sm:$0xf] %v3668
                  %v3670 = vld [vmem:[%s3642 + $0x34] sm:$0xf]
                  %3671 = vst [vmem:[%s3643 + $0x34] sm:$0xf] %v3670
                  %v3672 = vld [vmem:[%s3642 + $0x38] sm:$0xf]
                  %3673 = vst [vmem:[%s3643 + $0x38] sm:$0xf] %v3672
                  %v3674 = vld [vmem:[%s3642 + $0x3c] sm:$0xf]
                  %3675 = vst [vmem:[%s3643 + $0x3c] sm:$0xf] %v3674
                  %v3676 = vld [vmem:[%s3642 + $0x40] sm:$0xf]
                  %3677 = vst [vmem:[%s3643 + $0x80] sm:$0xf] %v3676
                  %v3678 = vld [vmem:[%s3642 + $0x44] sm:$0xf]
                  %3679 = vst [vmem:[%s3643 + $0x84] sm:$0xf] %v3678
                  %v3680 = vld [vmem:[%s3642 + $0x48] sm:$0xf]
                  %3681 = vst [vmem:[%s3643 + $0x88] sm:$0xf] %v3680
                  %v3682 = vld [vmem:[%s3642 + $0x4c] sm:$0xf]
                  %3683 = vst [vmem:[%s3643 + $0x8c] sm:$0xf] %v3682
                  %v3684 = vld [vmem:[%s3642 + $0x50] sm:$0xf]
                  %3685 = vst [vmem:[%s3643 + $0x90] sm:$0xf] %v3684
                  %v3686 = vld [vmem:[%s3642 + $0x54] sm:$0xf]
                  %3687 = vst [vmem:[%s3643 + $0x94] sm:$0xf] %v3686
                  %v3688 = vld [vmem:[%s3642 + $0x58] sm:$0xf]
                  %3689 = vst [vmem:[%s3643 + $0x98] sm:$0xf] %v3688
                  %v3690 = vld [vmem:[%s3642 + $0x5c] sm:$0xf]
                  %3691 = vst [vmem:[%s3643 + $0x9c] sm:$0xf] %v3690
                  %v3692 = vld [vmem:[%s3642 + $0x60] sm:$0xf]
                  %3693 = vst [vmem:[%s3643 + $0xa0] sm:$0xf] %v3692
                  %v3694 = vld [vmem:[%s3642 + $0x64] sm:$0xf]
                  %3695 = vst [vmem:[%s3643 + $0xa4] sm:$0xf] %v3694
                  %v3696 = vld [vmem:[%s3642 + $0x68] sm:$0xf]
                  %3697 = vst [vmem:[%s3643 + $0xa8] sm:$0xf] %v3696
                  %v3698 = vld [vmem:[%s3642 + $0x6c] sm:$0xf]
                  %3699 = vst [vmem:[%s3643 + $0xac] sm:$0xf] %v3698
                  %v3700 = vld [vmem:[%s3642 + $0x70] sm:$0xf]
                  %3701 = vst [vmem:[%s3643 + $0xb0] sm:$0xf] %v3700
                  %v3702 = vld [vmem:[%s3642 + $0x74] sm:$0xf]
                  %3703 = vst [vmem:[%s3643 + $0xb4] sm:$0xf] %v3702
                  %v3704 = vld [vmem:[%s3642 + $0x78] sm:$0xf]
                  %3705 = vst [vmem:[%s3643 + $0xb8] sm:$0xf] %v3704
                  %v3706 = vld [vmem:[%s3642 + $0x7c] sm:$0xf]
                  %3707 = vst [vmem:[%s3643 + $0xbc] sm:$0xf] %v3706
                  %v3708 = vld [vmem:[%s3642 + $0x80] sm:$0xf]
                  %3709 = vst [vmem:[%s3643 + $0x100] sm:$0xf] %v3708
                  %v3710 = vld [vmem:[%s3642 + $0x84] sm:$0xf]
                  %3711 = vst [vmem:[%s3643 + $0x104] sm:$0xf] %v3710
                  %v3712 = vld [vmem:[%s3642 + $0x88] sm:$0xf]
                  %3713 = vst [vmem:[%s3643 + $0x108] sm:$0xf] %v3712
                  %v3714 = vld [vmem:[%s3642 + $0x8c] sm:$0xf]
                  %3715 = vst [vmem:[%s3643 + $0x10c] sm:$0xf] %v3714
                  %v3716 = vld [vmem:[%s3642 + $0x90] sm:$0xf]
                  %3717 = vst [vmem:[%s3643 + $0x110] sm:$0xf] %v3716
                  %v3718 = vld [vmem:[%s3642 + $0x94] sm:$0xf]
                  %3719 = vst [vmem:[%s3643 + $0x114] sm:$0xf] %v3718
                  %v3720 = vld [vmem:[%s3642 + $0x98] sm:$0xf]
                  %3721 = vst [vmem:[%s3643 + $0x118] sm:$0xf] %v3720
                  %v3722 = vld [vmem:[%s3642 + $0x9c] sm:$0xf]
                  %3723 = vst [vmem:[%s3643 + $0x11c] sm:$0xf] %v3722
                  %v3724 = vld [vmem:[%s3642 + $0xa0] sm:$0xf]
                  %3725 = vst [vmem:[%s3643 + $0x120] sm:$0xf] %v3724
                  %v3726 = vld [vmem:[%s3642 + $0xa4] sm:$0xf]
                  %3727 = vst [vmem:[%s3643 + $0x124] sm:$0xf] %v3726
                  %v3728 = vld [vmem:[%s3642 + $0xa8] sm:$0xf]
                  %3729 = vst [vmem:[%s3643 + $0x128] sm:$0xf] %v3728
                  %v3730 = vld [vmem:[%s3642 + $0xac] sm:$0xf]
                  %3731 = vst [vmem:[%s3643 + $0x12c] sm:$0xf] %v3730
                  %v3732 = vld [vmem:[%s3642 + $0xb0] sm:$0xf]
                  %3733 = vst [vmem:[%s3643 + $0x130] sm:$0xf] %v3732
                  %v3734 = vld [vmem:[%s3642 + $0xb4] sm:$0xf]
                  %3735 = vst [vmem:[%s3643 + $0x134] sm:$0xf] %v3734
                  %v3736 = vld [vmem:[%s3642 + $0xb8] sm:$0xf]
                  %3737 = vst [vmem:[%s3643 + $0x138] sm:$0xf] %v3736
                  %v3738 = vld [vmem:[%s3642 + $0xbc] sm:$0xf]
                  %3739 = vst [vmem:[%s3643 + $0x13c] sm:$0xf] %v3738
                  %v3740 = vld [vmem:[%s3642 + $0xc0] sm:$0xf]
                  %3741 = vst [vmem:[%s3643 + $0x180] sm:$0xf] %v3740
                  %v3742 = vld [vmem:[%s3642 + $0xc4] sm:$0xf]
                  %3743 = vst [vmem:[%s3643 + $0x184] sm:$0xf] %v3742
                  %v3744 = vld [vmem:[%s3642 + $0xc8] sm:$0xf]
                  %3745 = vst [vmem:[%s3643 + $0x188] sm:$0xf] %v3744
                  %v3746 = vld [vmem:[%s3642 + $0xcc] sm:$0xf]
                  %3747 = vst [vmem:[%s3643 + $0x18c] sm:$0xf] %v3746
                  %v3748 = vld [vmem:[%s3642 + $0xd0] sm:$0xf]
                  %3749 = vst [vmem:[%s3643 + $0x190] sm:$0xf] %v3748
                  %v3750 = vld [vmem:[%s3642 + $0xd4] sm:$0xf]
                  %3751 = vst [vmem:[%s3643 + $0x194] sm:$0xf] %v3750
                  %v3752 = vld [vmem:[%s3642 + $0xd8] sm:$0xf]
                  %3753 = vst [vmem:[%s3643 + $0x198] sm:$0xf] %v3752
                  %v3754 = vld [vmem:[%s3642 + $0xdc] sm:$0xf]
                  %3755 = vst [vmem:[%s3643 + $0x19c] sm:$0xf] %v3754
                  %v3756 = vld [vmem:[%s3642 + $0xe0] sm:$0xf]
                  %3757 = vst [vmem:[%s3643 + $0x1a0] sm:$0xf] %v3756
                  %v3758 = vld [vmem:[%s3642 + $0xe4] sm:$0xf]
                  %3759 = vst [vmem:[%s3643 + $0x1a4] sm:$0xf] %v3758
                  %v3760 = vld [vmem:[%s3642 + $0xe8] sm:$0xf]
                  %3761 = vst [vmem:[%s3643 + $0x1a8] sm:$0xf] %v3760
                  %v3762 = vld [vmem:[%s3642 + $0xec] sm:$0xf]
                  %3763 = vst [vmem:[%s3643 + $0x1ac] sm:$0xf] %v3762
                  %v3764 = vld [vmem:[%s3642 + $0xf0] sm:$0xf]
                  %3765 = vst [vmem:[%s3643 + $0x1b0] sm:$0xf] %v3764
                  %v3766 = vld [vmem:[%s3642 + $0xf4] sm:$0xf]
                  %3767 = vst [vmem:[%s3643 + $0x1b4] sm:$0xf] %v3766
                  %v3768 = vld [vmem:[%s3642 + $0xf8] sm:$0xf]
                  %3769 = vst [vmem:[%s3643 + $0x1b8] sm:$0xf] %v3768
                  %v3770 = vld [vmem:[%s3642 + $0xfc] sm:$0xf]
                  %3771 = vst [vmem:[%s3643 + $0x1bc] sm:$0xf] %v3770
                $region87: #{tpu_custom_call.1} parent=74 // loop_footer
                  %s3641 = sadd.s32 1, %s3637
                $region88: #{tpu_custom_call.1} parent=74 // loop_footer_branch
                  %3636 = sbr.rel target = $region84
                $region89: #{tpu_custom_call.1} parent=74 // loop_exit
                  _
              $region75: #{tpu_custom_call.1} parent=59 // pred_fallthru
                _
            $region60: #{tpu_custom_call.1} parent=55 // pred_fallthru
              _
            // Predicated region
            $region61: #{tpu_custom_call.1} parent=55 // pred_check
              _
            $region62: #{tpu_custom_call.1} parent=55 // pred_check_branch
              %3487 = sbr.rel (0) target = $region64
            $region63: #{tpu_custom_call.1} parent=55 // pred_region
              loop: start=0, step=1, limit=1
              $region65: #{tpu_custom_call.1} parent=63 // loop_pre_header
                _
              $region66: #{tpu_custom_call.1} parent=63 // loop_header
                %s3490 = sphi 0, %s3494
                %p3491 = scmp.ge.s32.totalorder %s3490, 1
                %s3495 = sphi %s3459, %s3459
                %s3496 = sphi %s3481, %s3481
              $region67: #{tpu_custom_call.1} parent=63 // loop_header_branch
                %3493 = sbr.rel (%p3491) target = $region71
              $region68: #{tpu_custom_call.1} parent=63 // loop_body
                %v3497 = vld [vmem:[%s3495] sm:$0xf]
                %3498 = vst [vmem:[%s3496] sm:$0xf] %v3497
                %v3499 = vld [vmem:[%s3495 + $0x4] sm:$0xf]
                %3500 = vst [vmem:[%s3496 + $0x4] sm:$0xf] %v3499
                %v3501 = vld [vmem:[%s3495 + $0x8] sm:$0xf]
                %3502 = vst [vmem:[%s3496 + $0x8] sm:$0xf] %v3501
                %v3503 = vld [vmem:[%s3495 + $0xc] sm:$0xf]
                %3504 = vst [vmem:[%s3496 + $0xc] sm:$0xf] %v3503
                %v3505 = vld [vmem:[%s3495 + $0x10] sm:$0xf]
                %3506 = vst [vmem:[%s3496 + $0x10] sm:$0xf] %v3505
                %v3507 = vld [vmem:[%s3495 + $0x14] sm:$0xf]
                %3508 = vst [vmem:[%s3496 + $0x14] sm:$0xf] %v3507
                %v3509 = vld [vmem:[%s3495 + $0x18] sm:$0xf]
                %3510 = vst [vmem:[%s3496 + $0x18] sm:$0xf] %v3509
                %v3511 = vld [vmem:[%s3495 + $0x1c] sm:$0xf]
                %3512 = vst [vmem:[%s3496 + $0x1c] sm:$0xf] %v3511
                %v3513 = vld [vmem:[%s3495 + $0x20] sm:$0xf]
                %3514 = vst [vmem:[%s3496 + $0x20] sm:$0xf] %v3513
                %v3515 = vld [vmem:[%s3495 + $0x24] sm:$0xf]
                %3516 = vst [vmem:[%s3496 + $0x24] sm:$0xf] %v3515
                %v3517 = vld [vmem:[%s3495 + $0x28] sm:$0xf]
                %3518 = vst [vmem:[%s3496 + $0x28] sm:$0xf] %v3517
                %v3519 = vld [vmem:[%s3495 + $0x2c] sm:$0xf]
                %3520 = vst [vmem:[%s3496 + $0x2c] sm:$0xf] %v3519
                %v3521 = vld [vmem:[%s3495 + $0x30] sm:$0xf]
                %3522 = vst [vmem:[%s3496 + $0x30] sm:$0xf] %v3521
                %v3523 = vld [vmem:[%s3495 + $0x34] sm:$0xf]
                %3524 = vst [vmem:[%s3496 + $0x34] sm:$0xf] %v3523
                %v3525 = vld [vmem:[%s3495 + $0x38] sm:$0xf]
                %3526 = vst [vmem:[%s3496 + $0x38] sm:$0xf] %v3525
                %v3527 = vld [vmem:[%s3495 + $0x3c] sm:$0xf]
                %3528 = vst [vmem:[%s3496 + $0x3c] sm:$0xf] %v3527
                %v3529 = vld [vmem:[%s3495 + $0x40] sm:$0xf]
                %3530 = vst [vmem:[%s3496 + $0x80] sm:$0xf] %v3529
                %v3531 = vld [vmem:[%s3495 + $0x44] sm:$0xf]
                %3532 = vst [vmem:[%s3496 + $0x84] sm:$0xf] %v3531
                %v3533 = vld [vmem:[%s3495 + $0x48] sm:$0xf]
                %3534 = vst [vmem:[%s3496 + $0x88] sm:$0xf] %v3533
                %v3535 = vld [vmem:[%s3495 + $0x4c] sm:$0xf]
                %3536 = vst [vmem:[%s3496 + $0x8c] sm:$0xf] %v3535
                %v3537 = vld [vmem:[%s3495 + $0x50] sm:$0xf]
                %3538 = vst [vmem:[%s3496 + $0x90] sm:$0xf] %v3537
                %v3539 = vld [vmem:[%s3495 + $0x54] sm:$0xf]
                %3540 = vst [vmem:[%s3496 + $0x94] sm:$0xf] %v3539
                %v3541 = vld [vmem:[%s3495 + $0x58] sm:$0xf]
                %3542 = vst [vmem:[%s3496 + $0x98] sm:$0xf] %v3541
                %v3543 = vld [vmem:[%s3495 + $0x5c] sm:$0xf]
                %3544 = vst [vmem:[%s3496 + $0x9c] sm:$0xf] %v3543
                %v3545 = vld [vmem:[%s3495 + $0x60] sm:$0xf]
                %3546 = vst [vmem:[%s3496 + $0xa0] sm:$0xf] %v3545
                %v3547 = vld [vmem:[%s3495 + $0x64] sm:$0xf]
                %3548 = vst [vmem:[%s3496 + $0xa4] sm:$0xf] %v3547
                %v3549 = vld [vmem:[%s3495 + $0x68] sm:$0xf]
                %3550 = vst [vmem:[%s3496 + $0xa8] sm:$0xf] %v3549
                %v3551 = vld [vmem:[%s3495 + $0x6c] sm:$0xf]
                %3552 = vst [vmem:[%s3496 + $0xac] sm:$0xf] %v3551
                %v3553 = vld [vmem:[%s3495 + $0x70] sm:$0xf]
                %3554 = vst [vmem:[%s3496 + $0xb0] sm:$0xf] %v3553
                %v3555 = vld [vmem:[%s3495 + $0x74] sm:$0xf]
                %3556 = vst [vmem:[%s3496 + $0xb4] sm:$0xf] %v3555
                %v3557 = vld [vmem:[%s3495 + $0x78] sm:$0xf]
                %3558 = vst [vmem:[%s3496 + $0xb8] sm:$0xf] %v3557
                %v3559 = vld [vmem:[%s3495 + $0x7c] sm:$0xf]
                %3560 = vst [vmem:[%s3496 + $0xbc] sm:$0xf] %v3559
                %v3561 = vld [vmem:[%s3495 + $0x80] sm:$0xf]
                %3562 = vst [vmem:[%s3496 + $0x100] sm:$0xf] %v3561
                %v3563 = vld [vmem:[%s3495 + $0x84] sm:$0xf]
                %3564 = vst [vmem:[%s3496 + $0x104] sm:$0xf] %v3563
                %v3565 = vld [vmem:[%s3495 + $0x88] sm:$0xf]
                %3566 = vst [vmem:[%s3496 + $0x108] sm:$0xf] %v3565
                %v3567 = vld [vmem:[%s3495 + $0x8c] sm:$0xf]
                %3568 = vst [vmem:[%s3496 + $0x10c] sm:$0xf] %v3567
                %v3569 = vld [vmem:[%s3495 + $0x90] sm:$0xf]
                %3570 = vst [vmem:[%s3496 + $0x110] sm:$0xf] %v3569
                %v3571 = vld [vmem:[%s3495 + $0x94] sm:$0xf]
                %3572 = vst [vmem:[%s3496 + $0x114] sm:$0xf] %v3571
                %v3573 = vld [vmem:[%s3495 + $0x98] sm:$0xf]
                %3574 = vst [vmem:[%s3496 + $0x118] sm:$0xf] %v3573
                %v3575 = vld [vmem:[%s3495 + $0x9c] sm:$0xf]
                %3576 = vst [vmem:[%s3496 + $0x11c] sm:$0xf] %v3575
                %v3577 = vld [vmem:[%s3495 + $0xa0] sm:$0xf]
                %3578 = vst [vmem:[%s3496 + $0x120] sm:$0xf] %v3577
                %v3579 = vld [vmem:[%s3495 + $0xa4] sm:$0xf]
                %3580 = vst [vmem:[%s3496 + $0x124] sm:$0xf] %v3579
                %v3581 = vld [vmem:[%s3495 + $0xa8] sm:$0xf]
                %3582 = vst [vmem:[%s3496 + $0x128] sm:$0xf] %v3581
                %v3583 = vld [vmem:[%s3495 + $0xac] sm:$0xf]
                %3584 = vst [vmem:[%s3496 + $0x12c] sm:$0xf] %v3583
                %v3585 = vld [vmem:[%s3495 + $0xb0] sm:$0xf]
                %3586 = vst [vmem:[%s3496 + $0x130] sm:$0xf] %v3585
                %v3587 = vld [vmem:[%s3495 + $0xb4] sm:$0xf]
                %3588 = vst [vmem:[%s3496 + $0x134] sm:$0xf] %v3587
                %v3589 = vld [vmem:[%s3495 + $0xb8] sm:$0xf]
                %3590 = vst [vmem:[%s3496 + $0x138] sm:$0xf] %v3589
                %v3591 = vld [vmem:[%s3495 + $0xbc] sm:$0xf]
                %3592 = vst [vmem:[%s3496 + $0x13c] sm:$0xf] %v3591
                %v3593 = vld [vmem:[%s3495 + $0xc0] sm:$0xf]
                %3594 = vst [vmem:[%s3496 + $0x180] sm:$0xf] %v3593
                %v3595 = vld [vmem:[%s3495 + $0xc4] sm:$0xf]
                %3596 = vst [vmem:[%s3496 + $0x184] sm:$0xf] %v3595
                %v3597 = vld [vmem:[%s3495 + $0xc8] sm:$0xf]
                %3598 = vst [vmem:[%s3496 + $0x188] sm:$0xf] %v3597
                %v3599 = vld [vmem:[%s3495 + $0xcc] sm:$0xf]
                %3600 = vst [vmem:[%s3496 + $0x18c] sm:$0xf] %v3599
                %v3601 = vld [vmem:[%s3495 + $0xd0] sm:$0xf]
                %3602 = vst [vmem:[%s3496 + $0x190] sm:$0xf] %v3601
                %v3603 = vld [vmem:[%s3495 + $0xd4] sm:$0xf]
                %3604 = vst [vmem:[%s3496 + $0x194] sm:$0xf] %v3603
                %v3605 = vld [vmem:[%s3495 + $0xd8] sm:$0xf]
                %3606 = vst [vmem:[%s3496 + $0x198] sm:$0xf] %v3605
                %v3607 = vld [vmem:[%s3495 + $0xdc] sm:$0xf]
                %3608 = vst [vmem:[%s3496 + $0x19c] sm:$0xf] %v3607
                %v3609 = vld [vmem:[%s3495 + $0xe0] sm:$0xf]
                %3610 = vst [vmem:[%s3496 + $0x1a0] sm:$0xf] %v3609
                %v3611 = vld [vmem:[%s3495 + $0xe4] sm:$0xf]
                %3612 = vst [vmem:[%s3496 + $0x1a4] sm:$0xf] %v3611
                %v3613 = vld [vmem:[%s3495 + $0xe8] sm:$0xf]
                %3614 = vst [vmem:[%s3496 + $0x1a8] sm:$0xf] %v3613
                %v3615 = vld [vmem:[%s3495 + $0xec] sm:$0xf]
                %3616 = vst [vmem:[%s3496 + $0x1ac] sm:$0xf] %v3615
                %v3617 = vld [vmem:[%s3495 + $0xf0] sm:$0xf]
                %3618 = vst [vmem:[%s3496 + $0x1b0] sm:$0xf] %v3617
                %v3619 = vld [vmem:[%s3495 + $0xf4] sm:$0xf]
                %3620 = vst [vmem:[%s3496 + $0x1b4] sm:$0xf] %v3619
                %v3621 = vld [vmem:[%s3495 + $0xf8] sm:$0xf]
                %3622 = vst [vmem:[%s3496 + $0x1b8] sm:$0xf] %v3621
                %v3623 = vld [vmem:[%s3495 + $0xfc] sm:$0xf]
                %3624 = vst [vmem:[%s3496 + $0x1bc] sm:$0xf] %v3623
              $region69: #{tpu_custom_call.1} parent=63 // loop_footer
                %s3494 = sadd.s32 1, %s3490
              $region70: #{tpu_custom_call.1} parent=63 // loop_footer_branch
                %3489 = sbr.rel target = $region66
              $region71: #{tpu_custom_call.1} parent=63 // loop_exit
                _
            $region64: #{tpu_custom_call.1} parent=55 // pred_fallthru
              _
          $region56: #{tpu_custom_call.1} parent=51 // pred_fallthru
            _
          %3772 = vnop
        $region52: #{tpu_custom_call.1} parent=47 // pred_fallthru
          _
        // Predicated region
        $region90: #{tpu_custom_call.1} parent=47 // pred_check
          %p3773 = pneg %p229
        $region91: #{tpu_custom_call.1} parent=47 // pred_check_branch
          %3775 = sbr.rel (%p3773) target = $region93
        $region92: #{tpu_custom_call.1} parent=47 // pred_region
          %s3776 = smul.u32 16, %s23
          %s3777 = smul.addr %s3776, 8
          %s3778 = scalar_lea.vmem %s8, %s3777
          // Predicated region
          $region94: #{tpu_custom_call.1} parent=92 // pred_check
            _
          $region95: #{tpu_custom_call.1} parent=92 // pred_check_branch
            %3780 = sbr.rel (0) target = $region97
          $region96: #{tpu_custom_call.1} parent=92 // pred_region
            // Predicated region
            $region98: #{tpu_custom_call.1} parent=96 // pred_check
              _
            $region99: #{tpu_custom_call.1} parent=96 // pred_check_branch
              %3782 = sbr.rel (0) target = $region101
            $region100: #{tpu_custom_call.1} parent=96 // pred_region
              // Predicated region
              $region113: #{tpu_custom_call.1} parent=100 // pred_check
                _
              $region114: #{tpu_custom_call.1} parent=100 // pred_check_branch
                %3859 = sbr.rel (0) target = $region116
              $region115: #{tpu_custom_call.1} parent=100 // pred_region
                loop: start=0, step=1, limit=1
                $region117: #{tpu_custom_call.1} parent=115 // loop_pre_header
                  _
                $region118: #{tpu_custom_call.1} parent=115 // loop_header
                  %s3861 = sphi 0, %s3865
                  %p3862 = scmp.ge.s32.totalorder %s3861, 1
                  %s3866 = sphi %s3463, %s3463
                  %s3867 = sphi %s3778, %s3778
                $region119: #{tpu_custom_call.1} parent=115 // loop_header_branch
                  %3864 = sbr.rel (%p3862) target = $region123
                $region120: #{tpu_custom_call.1} parent=115 // loop_body
                  %v3868 = vld [vmem:[%s3866] sm:$0xff]
                  %3869 = vst [vmem:[%s3867] sm:$0xff] %v3868
                  %v3870 = vld [vmem:[%s3866 + $0x8] sm:$0xff]
                  %3871 = vst [vmem:[%s3867 + $0x8] sm:$0xff] %v3870
                  %v3872 = vld [vmem:[%s3866 + $0x10] sm:$0xff]
                  %3873 = vst [vmem:[%s3867 + $0x10] sm:$0xff] %v3872
                  %v3874 = vld [vmem:[%s3866 + $0x18] sm:$0xff]
                  %3875 = vst [vmem:[%s3867 + $0x18] sm:$0xff] %v3874
                  %v3876 = vld [vmem:[%s3866 + $0x20] sm:$0xff]
                  %3877 = vst [vmem:[%s3867 + $0x20] sm:$0xff] %v3876
                  %v3878 = vld [vmem:[%s3866 + $0x28] sm:$0xff]
                  %3879 = vst [vmem:[%s3867 + $0x28] sm:$0xff] %v3878
                  %v3880 = vld [vmem:[%s3866 + $0x30] sm:$0xff]
                  %3881 = vst [vmem:[%s3867 + $0x30] sm:$0xff] %v3880
                  %v3882 = vld [vmem:[%s3866 + $0x38] sm:$0xff]
                  %3883 = vst [vmem:[%s3867 + $0x38] sm:$0xff] %v3882
                  %v3884 = vld [vmem:[%s3866 + $0x40] sm:$0xff]
                  %3885 = vst [vmem:[%s3867 + $0x40] sm:$0xff] %v3884
                  %v3886 = vld [vmem:[%s3866 + $0x48] sm:$0xff]
                  %3887 = vst [vmem:[%s3867 + $0x48] sm:$0xff] %v3886
                  %v3888 = vld [vmem:[%s3866 + $0x50] sm:$0xff]
                  %3889 = vst [vmem:[%s3867 + $0x50] sm:$0xff] %v3888
                  %v3890 = vld [vmem:[%s3866 + $0x58] sm:$0xff]
                  %3891 = vst [vmem:[%s3867 + $0x58] sm:$0xff] %v3890
                  %v3892 = vld [vmem:[%s3866 + $0x60] sm:$0xff]
                  %3893 = vst [vmem:[%s3867 + $0x60] sm:$0xff] %v3892
                  %v3894 = vld [vmem:[%s3866 + $0x68] sm:$0xff]
                  %3895 = vst [vmem:[%s3867 + $0x68] sm:$0xff] %v3894
                  %v3896 = vld [vmem:[%s3866 + $0x70] sm:$0xff]
                  %3897 = vst [vmem:[%s3867 + $0x70] sm:$0xff] %v3896
                  %v3898 = vld [vmem:[%s3866 + $0x78] sm:$0xff]
                  %3899 = vst [vmem:[%s3867 + $0x78] sm:$0xff] %v3898
                  %v3900 = vld [vmem:[%s3866 + $0x80] sm:$0xff]
                  %3901 = vst [vmem:[%s3867 + $0x100] sm:$0xff] %v3900
                  %v3902 = vld [vmem:[%s3866 + $0x88] sm:$0xff]
                  %3903 = vst [vmem:[%s3867 + $0x108] sm:$0xff] %v3902
                  %v3904 = vld [vmem:[%s3866 + $0x90] sm:$0xff]
                  %3905 = vst [vmem:[%s3867 + $0x110] sm:$0xff] %v3904
                  %v3906 = vld [vmem:[%s3866 + $0x98] sm:$0xff]
                  %3907 = vst [vmem:[%s3867 + $0x118] sm:$0xff] %v3906
                  %v3908 = vld [vmem:[%s3866 + $0xa0] sm:$0xff]
                  %3909 = vst [vmem:[%s3867 + $0x120] sm:$0xff] %v3908
                  %v3910 = vld [vmem:[%s3866 + $0xa8] sm:$0xff]
                  %3911 = vst [vmem:[%s3867 + $0x128] sm:$0xff] %v3910
                  %v3912 = vld [vmem:[%s3866 + $0xb0] sm:$0xff]
                  %3913 = vst [vmem:[%s3867 + $0x130] sm:$0xff] %v3912
                  %v3914 = vld [vmem:[%s3866 + $0xb8] sm:$0xff]
                  %3915 = vst [vmem:[%s3867 + $0x138] sm:$0xff] %v3914
                  %v3916 = vld [vmem:[%s3866 + $0xc0] sm:$0xff]
                  %3917 = vst [vmem:[%s3867 + $0x140] sm:$0xff] %v3916
                  %v3918 = vld [vmem:[%s3866 + $0xc8] sm:$0xff]
                  %3919 = vst [vmem:[%s3867 + $0x148] sm:$0xff] %v3918
                  %v3920 = vld [vmem:[%s3866 + $0xd0] sm:$0xff]
                  %3921 = vst [vmem:[%s3867 + $0x150] sm:$0xff] %v3920
                  %v3922 = vld [vmem:[%s3866 + $0xd8] sm:$0xff]
                  %3923 = vst [vmem:[%s3867 + $0x158] sm:$0xff] %v3922
                  %v3924 = vld [vmem:[%s3866 + $0xe0] sm:$0xff]
                  %3925 = vst [vmem:[%s3867 + $0x160] sm:$0xff] %v3924
                  %v3926 = vld [vmem:[%s3866 + $0xe8] sm:$0xff]
                  %3927 = vst [vmem:[%s3867 + $0x168] sm:$0xff] %v3926
                  %v3928 = vld [vmem:[%s3866 + $0xf0] sm:$0xff]
                  %3929 = vst [vmem:[%s3867 + $0x170] sm:$0xff] %v3928
                  %v3930 = vld [vmem:[%s3866 + $0xf8] sm:$0xff]
                  %3931 = vst [vmem:[%s3867 + $0x178] sm:$0xff] %v3930
                $region121: #{tpu_custom_call.1} parent=115 // loop_footer
                  %s3865 = sadd.s32 1, %s3861
                $region122: #{tpu_custom_call.1} parent=115 // loop_footer_branch
                  %3860 = sbr.rel target = $region118
                $region123: #{tpu_custom_call.1} parent=115 // loop_exit
                  _
              $region116: #{tpu_custom_call.1} parent=100 // pred_fallthru
                _
              // Predicated region
              $region124: #{tpu_custom_call.1} parent=100 // pred_check
                _
              $region125: #{tpu_custom_call.1} parent=100 // pred_check_branch
                %3933 = sbr.rel target = $region127
              $region126: #{tpu_custom_call.1} parent=100 // pred_region
                _
              $region127: #{tpu_custom_call.1} parent=100 // pred_fallthru
                _
            $region101: #{tpu_custom_call.1} parent=96 // pred_fallthru
              _
            // Predicated region
            $region102: #{tpu_custom_call.1} parent=96 // pred_check
              _
            $region103: #{tpu_custom_call.1} parent=96 // pred_check_branch
              %3784 = sbr.rel target = $region105
            $region104: #{tpu_custom_call.1} parent=96 // pred_region
              loop: start=0, step=1, limit=1
              $region106: #{tpu_custom_call.1} parent=104 // loop_pre_header
                _
              $region107: #{tpu_custom_call.1} parent=104 // loop_header
                %s3787 = sphi 0, %s3791
                %p3788 = scmp.ge.s32.totalorder %s3787, 1
                %s3792 = sphi %s3463, %s3463
                %s3793 = sphi %s3778, %s3778
              $region108: #{tpu_custom_call.1} parent=104 // loop_header_branch
                %3790 = sbr.rel (%p3788) target = $region112
              $region109: #{tpu_custom_call.1} parent=104 // loop_body
                %v3794 = vld [vmem:[%s3792] sm:$0xff]
                %3795 = vst [vmem:[%s3793] sm:$0xff] %v3794
                %v3796 = vld [vmem:[%s3792 + $0x8] sm:$0xff]
                %3797 = vst [vmem:[%s3793 + $0x8] sm:$0xff] %v3796
                %v3798 = vld [vmem:[%s3792 + $0x10] sm:$0xff]
                %3799 = vst [vmem:[%s3793 + $0x10] sm:$0xff] %v3798
                %v3800 = vld [vmem:[%s3792 + $0x18] sm:$0xff]
                %3801 = vst [vmem:[%s3793 + $0x18] sm:$0xff] %v3800
                %v3802 = vld [vmem:[%s3792 + $0x20] sm:$0xff]
                %3803 = vst [vmem:[%s3793 + $0x20] sm:$0xff] %v3802
                %v3804 = vld [vmem:[%s3792 + $0x28] sm:$0xff]
                %3805 = vst [vmem:[%s3793 + $0x28] sm:$0xff] %v3804
                %v3806 = vld [vmem:[%s3792 + $0x30] sm:$0xff]
                %3807 = vst [vmem:[%s3793 + $0x30] sm:$0xff] %v3806
                %v3808 = vld [vmem:[%s3792 + $0x38] sm:$0xff]
                %3809 = vst [vmem:[%s3793 + $0x38] sm:$0xff] %v3808
                %v3810 = vld [vmem:[%s3792 + $0x40] sm:$0xff]
                %3811 = vst [vmem:[%s3793 + $0x40] sm:$0xff] %v3810
                %v3812 = vld [vmem:[%s3792 + $0x48] sm:$0xff]
                %3813 = vst [vmem:[%s3793 + $0x48] sm:$0xff] %v3812
                %v3814 = vld [vmem:[%s3792 + $0x50] sm:$0xff]
                %3815 = vst [vmem:[%s3793 + $0x50] sm:$0xff] %v3814
                %v3816 = vld [vmem:[%s3792 + $0x58] sm:$0xff]
                %3817 = vst [vmem:[%s3793 + $0x58] sm:$0xff] %v3816
                %v3818 = vld [vmem:[%s3792 + $0x60] sm:$0xff]
                %3819 = vst [vmem:[%s3793 + $0x60] sm:$0xff] %v3818
                %v3820 = vld [vmem:[%s3792 + $0x68] sm:$0xff]
                %3821 = vst [vmem:[%s3793 + $0x68] sm:$0xff] %v3820
                %v3822 = vld [vmem:[%s3792 + $0x70] sm:$0xff]
                %3823 = vst [vmem:[%s3793 + $0x70] sm:$0xff] %v3822
                %v3824 = vld [vmem:[%s3792 + $0x78] sm:$0xff]
                %3825 = vst [vmem:[%s3793 + $0x78] sm:$0xff] %v3824
                %v3826 = vld [vmem:[%s3792 + $0x80] sm:$0xff]
                %3827 = vst [vmem:[%s3793 + $0x100] sm:$0xff] %v3826
                %v3828 = vld [vmem:[%s3792 + $0x88] sm:$0xff]
                %3829 = vst [vmem:[%s3793 + $0x108] sm:$0xff] %v3828
                %v3830 = vld [vmem:[%s3792 + $0x90] sm:$0xff]
                %3831 = vst [vmem:[%s3793 + $0x110] sm:$0xff] %v3830
                %v3832 = vld [vmem:[%s3792 + $0x98] sm:$0xff]
                %3833 = vst [vmem:[%s3793 + $0x118] sm:$0xff] %v3832
                %v3834 = vld [vmem:[%s3792 + $0xa0] sm:$0xff]
                %3835 = vst [vmem:[%s3793 + $0x120] sm:$0xff] %v3834
                %v3836 = vld [vmem:[%s3792 + $0xa8] sm:$0xff]
                %3837 = vst [vmem:[%s3793 + $0x128] sm:$0xff] %v3836
                %v3838 = vld [vmem:[%s3792 + $0xb0] sm:$0xff]
                %3839 = vst [vmem:[%s3793 + $0x130] sm:$0xff] %v3838
                %v3840 = vld [vmem:[%s3792 + $0xb8] sm:$0xff]
                %3841 = vst [vmem:[%s3793 + $0x138] sm:$0xff] %v3840
                %v3842 = vld [vmem:[%s3792 + $0xc0] sm:$0xff]
                %3843 = vst [vmem:[%s3793 + $0x140] sm:$0xff] %v3842
                %v3844 = vld [vmem:[%s3792 + $0xc8] sm:$0xff]
                %3845 = vst [vmem:[%s3793 + $0x148] sm:$0xff] %v3844
                %v3846 = vld [vmem:[%s3792 + $0xd0] sm:$0xff]
                %3847 = vst [vmem:[%s3793 + $0x150] sm:$0xff] %v3846
                %v3848 = vld [vmem:[%s3792 + $0xd8] sm:$0xff]
                %3849 = vst [vmem:[%s3793 + $0x158] sm:$0xff] %v3848
                %v3850 = vld [vmem:[%s3792 + $0xe0] sm:$0xff]
                %3851 = vst [vmem:[%s3793 + $0x160] sm:$0xff] %v3850
                %v3852 = vld [vmem:[%s3792 + $0xe8] sm:$0xff]
                %3853 = vst [vmem:[%s3793 + $0x168] sm:$0xff] %v3852
                %v3854 = vld [vmem:[%s3792 + $0xf0] sm:$0xff]
                %3855 = vst [vmem:[%s3793 + $0x170] sm:$0xff] %v3854
                %v3856 = vld [vmem:[%s3792 + $0xf8] sm:$0xff]
                %3857 = vst [vmem:[%s3793 + $0x178] sm:$0xff] %v3856
              $region110: #{tpu_custom_call.1} parent=104 // loop_footer
                %s3791 = sadd.s32 1, %s3787
              $region111: #{tpu_custom_call.1} parent=104 // loop_footer_branch
                %3786 = sbr.rel target = $region107
              $region112: #{tpu_custom_call.1} parent=104 // loop_exit
                _
            $region105: #{tpu_custom_call.1} parent=96 // pred_fallthru
              _
          $region97: #{tpu_custom_call.1} parent=92 // pred_fallthru
            _
          %3934 = vnop
        $region93: #{tpu_custom_call.1} parent=47 // pred_fallthru
          _
        // Predicated region
        $region128: #{tpu_custom_call.1} parent=47 // pred_check
          %p3935 = pneg %p255
        $region129: #{tpu_custom_call.1} parent=47 // pred_check_branch
          %3937 = sbr.rel (%p3935) target = $region131
        $region130: #{tpu_custom_call.1} parent=47 // pred_region
          %s3938 = smul.u32 16, %s23
          %s3939 = smul.addr %s3938, 8
          %s3940 = scalar_lea.vmem %s9, %s3939
          // Predicated region
          $region132: #{tpu_custom_call.1} parent=130 // pred_check
            _
          $region133: #{tpu_custom_call.1} parent=130 // pred_check_branch
            %3942 = sbr.rel (0) target = $region135
          $region134: #{tpu_custom_call.1} parent=130 // pred_region
            // Predicated region
            $region136: #{tpu_custom_call.1} parent=134 // pred_check
              _
            $region137: #{tpu_custom_call.1} parent=134 // pred_check_branch
              %3944 = sbr.rel (0) target = $region139
            $region138: #{tpu_custom_call.1} parent=134 // pred_region
              // Predicated region
              $region151: #{tpu_custom_call.1} parent=138 // pred_check
                _
              $region152: #{tpu_custom_call.1} parent=138 // pred_check_branch
                %4021 = sbr.rel (0) target = $region154
              $region153: #{tpu_custom_call.1} parent=138 // pred_region
                loop: start=0, step=1, limit=1
                $region155: #{tpu_custom_call.1} parent=153 // loop_pre_header
                  _
                $region156: #{tpu_custom_call.1} parent=153 // loop_header
                  %s4023 = sphi 0, %s4027
                  %p4024 = scmp.ge.s32.totalorder %s4023, 1
                  %s4028 = sphi %s3467, %s3467
                  %s4029 = sphi %s3940, %s3940
                $region157: #{tpu_custom_call.1} parent=153 // loop_header_branch
                  %4026 = sbr.rel (%p4024) target = $region161
                $region158: #{tpu_custom_call.1} parent=153 // loop_body
                  %v4030 = vld [vmem:[%s4028] sm:$0xff]
                  %4031 = vst [vmem:[%s4029] sm:$0xff] %v4030
                  %v4032 = vld [vmem:[%s4028 + $0x8] sm:$0xff]
                  %4033 = vst [vmem:[%s4029 + $0x8] sm:$0xff] %v4032
                  %v4034 = vld [vmem:[%s4028 + $0x10] sm:$0xff]
                  %4035 = vst [vmem:[%s4029 + $0x10] sm:$0xff] %v4034
                  %v4036 = vld [vmem:[%s4028 + $0x18] sm:$0xff]
                  %4037 = vst [vmem:[%s4029 + $0x18] sm:$0xff] %v4036
                  %v4038 = vld [vmem:[%s4028 + $0x20] sm:$0xff]
                  %4039 = vst [vmem:[%s4029 + $0x20] sm:$0xff] %v4038
                  %v4040 = vld [vmem:[%s4028 + $0x28] sm:$0xff]
                  %4041 = vst [vmem:[%s4029 + $0x28] sm:$0xff] %v4040
                  %v4042 = vld [vmem:[%s4028 + $0x30] sm:$0xff]
                  %4043 = vst [vmem:[%s4029 + $0x30] sm:$0xff] %v4042
                  %v4044 = vld [vmem:[%s4028 + $0x38] sm:$0xff]
                  %4045 = vst [vmem:[%s4029 + $0x38] sm:$0xff] %v4044
                  %v4046 = vld [vmem:[%s4028 + $0x40] sm:$0xff]
                  %4047 = vst [vmem:[%s4029 + $0x40] sm:$0xff] %v4046
                  %v4048 = vld [vmem:[%s4028 + $0x48] sm:$0xff]
                  %4049 = vst [vmem:[%s4029 + $0x48] sm:$0xff] %v4048
                  %v4050 = vld [vmem:[%s4028 + $0x50] sm:$0xff]
                  %4051 = vst [vmem:[%s4029 + $0x50] sm:$0xff] %v4050
                  %v4052 = vld [vmem:[%s4028 + $0x58] sm:$0xff]
                  %4053 = vst [vmem:[%s4029 + $0x58] sm:$0xff] %v4052
                  %v4054 = vld [vmem:[%s4028 + $0x60] sm:$0xff]
                  %4055 = vst [vmem:[%s4029 + $0x60] sm:$0xff] %v4054
                  %v4056 = vld [vmem:[%s4028 + $0x68] sm:$0xff]
                  %4057 = vst [vmem:[%s4029 + $0x68] sm:$0xff] %v4056
                  %v4058 = vld [vmem:[%s4028 + $0x70] sm:$0xff]
                  %4059 = vst [vmem:[%s4029 + $0x70] sm:$0xff] %v4058
                  %v4060 = vld [vmem:[%s4028 + $0x78] sm:$0xff]
                  %4061 = vst [vmem:[%s4029 + $0x78] sm:$0xff] %v4060
                  %v4062 = vld [vmem:[%s4028 + $0x80] sm:$0xff]
                  %4063 = vst [vmem:[%s4029 + $0x100] sm:$0xff] %v4062
                  %v4064 = vld [vmem:[%s4028 + $0x88] sm:$0xff]
                  %4065 = vst [vmem:[%s4029 + $0x108] sm:$0xff] %v4064
                  %v4066 = vld [vmem:[%s4028 + $0x90] sm:$0xff]
                  %4067 = vst [vmem:[%s4029 + $0x110] sm:$0xff] %v4066
                  %v4068 = vld [vmem:[%s4028 + $0x98] sm:$0xff]
                  %4069 = vst [vmem:[%s4029 + $0x118] sm:$0xff] %v4068
                  %v4070 = vld [vmem:[%s4028 + $0xa0] sm:$0xff]
                  %4071 = vst [vmem:[%s4029 + $0x120] sm:$0xff] %v4070
                  %v4072 = vld [vmem:[%s4028 + $0xa8] sm:$0xff]
                  %4073 = vst [vmem:[%s4029 + $0x128] sm:$0xff] %v4072
                  %v4074 = vld [vmem:[%s4028 + $0xb0] sm:$0xff]
                  %4075 = vst [vmem:[%s4029 + $0x130] sm:$0xff] %v4074
                  %v4076 = vld [vmem:[%s4028 + $0xb8] sm:$0xff]
                  %4077 = vst [vmem:[%s4029 + $0x138] sm:$0xff] %v4076
                  %v4078 = vld [vmem:[%s4028 + $0xc0] sm:$0xff]
                  %4079 = vst [vmem:[%s4029 + $0x140] sm:$0xff] %v4078
                  %v4080 = vld [vmem:[%s4028 + $0xc8] sm:$0xff]
                  %4081 = vst [vmem:[%s4029 + $0x148] sm:$0xff] %v4080
                  %v4082 = vld [vmem:[%s4028 + $0xd0] sm:$0xff]
                  %4083 = vst [vmem:[%s4029 + $0x150] sm:$0xff] %v4082
                  %v4084 = vld [vmem:[%s4028 + $0xd8] sm:$0xff]
                  %4085 = vst [vmem:[%s4029 + $0x158] sm:$0xff] %v4084
                  %v4086 = vld [vmem:[%s4028 + $0xe0] sm:$0xff]
                  %4087 = vst [vmem:[%s4029 + $0x160] sm:$0xff] %v4086
                  %v4088 = vld [vmem:[%s4028 + $0xe8] sm:$0xff]
                  %4089 = vst [vmem:[%s4029 + $0x168] sm:$0xff] %v4088
                  %v4090 = vld [vmem:[%s4028 + $0xf0] sm:$0xff]
                  %4091 = vst [vmem:[%s4029 + $0x170] sm:$0xff] %v4090
                  %v4092 = vld [vmem:[%s4028 + $0xf8] sm:$0xff]
                  %4093 = vst [vmem:[%s4029 + $0x178] sm:$0xff] %v4092
                $region159: #{tpu_custom_call.1} parent=153 // loop_footer
                  %s4027 = sadd.s32 1, %s4023
                $region160: #{tpu_custom_call.1} parent=153 // loop_footer_branch
                  %4022 = sbr.rel target = $region156
                $region161: #{tpu_custom_call.1} parent=153 // loop_exit
                  _
              $region154: #{tpu_custom_call.1} parent=138 // pred_fallthru
                _
              // Predicated region
              $region162: #{tpu_custom_call.1} parent=138 // pred_check
                _
              $region163: #{tpu_custom_call.1} parent=138 // pred_check_branch
                %4095 = sbr.rel target = $region165
              $region164: #{tpu_custom_call.1} parent=138 // pred_region
                _
              $region165: #{tpu_custom_call.1} parent=138 // pred_fallthru
                _
            $region139: #{tpu_custom_call.1} parent=134 // pred_fallthru
              _
            // Predicated region
            $region140: #{tpu_custom_call.1} parent=134 // pred_check
              _
            $region141: #{tpu_custom_call.1} parent=134 // pred_check_branch
              %3946 = sbr.rel target = $region143
            $region142: #{tpu_custom_call.1} parent=134 // pred_region
              loop: start=0, step=1, limit=1
              $region144: #{tpu_custom_call.1} parent=142 // loop_pre_header
                _
              $region145: #{tpu_custom_call.1} parent=142 // loop_header
                %s3949 = sphi 0, %s3953
                %p3950 = scmp.ge.s32.totalorder %s3949, 1
                %s3954 = sphi %s3467, %s3467
                %s3955 = sphi %s3940, %s3940
              $region146: #{tpu_custom_call.1} parent=142 // loop_header_branch
                %3952 = sbr.rel (%p3950) target = $region150
              $region147: #{tpu_custom_call.1} parent=142 // loop_body
                %v3956 = vld [vmem:[%s3954] sm:$0xff]
                %3957 = vst [vmem:[%s3955] sm:$0xff] %v3956
                %v3958 = vld [vmem:[%s3954 + $0x8] sm:$0xff]
                %3959 = vst [vmem:[%s3955 + $0x8] sm:$0xff] %v3958
                %v3960 = vld [vmem:[%s3954 + $0x10] sm:$0xff]
                %3961 = vst [vmem:[%s3955 + $0x10] sm:$0xff] %v3960
                %v3962 = vld [vmem:[%s3954 + $0x18] sm:$0xff]
                %3963 = vst [vmem:[%s3955 + $0x18] sm:$0xff] %v3962
                %v3964 = vld [vmem:[%s3954 + $0x20] sm:$0xff]
                %3965 = vst [vmem:[%s3955 + $0x20] sm:$0xff] %v3964
                %v3966 = vld [vmem:[%s3954 + $0x28] sm:$0xff]
                %3967 = vst [vmem:[%s3955 + $0x28] sm:$0xff] %v3966
                %v3968 = vld [vmem:[%s3954 + $0x30] sm:$0xff]
                %3969 = vst [vmem:[%s3955 + $0x30] sm:$0xff] %v3968
                %v3970 = vld [vmem:[%s3954 + $0x38] sm:$0xff]
                %3971 = vst [vmem:[%s3955 + $0x38] sm:$0xff] %v3970
                %v3972 = vld [vmem:[%s3954 + $0x40] sm:$0xff]
                %3973 = vst [vmem:[%s3955 + $0x40] sm:$0xff] %v3972
                %v3974 = vld [vmem:[%s3954 + $0x48] sm:$0xff]
                %3975 = vst [vmem:[%s3955 + $0x48] sm:$0xff] %v3974
                %v3976 = vld [vmem:[%s3954 + $0x50] sm:$0xff]
                %3977 = vst [vmem:[%s3955 + $0x50] sm:$0xff] %v3976
                %v3978 = vld [vmem:[%s3954 + $0x58] sm:$0xff]
                %3979 = vst [vmem:[%s3955 + $0x58] sm:$0xff] %v3978
                %v3980 = vld [vmem:[%s3954 + $0x60] sm:$0xff]
                %3981 = vst [vmem:[%s3955 + $0x60] sm:$0xff] %v3980
                %v3982 = vld [vmem:[%s3954 + $0x68] sm:$0xff]
                %3983 = vst [vmem:[%s3955 + $0x68] sm:$0xff] %v3982
                %v3984 = vld [vmem:[%s3954 + $0x70] sm:$0xff]
                %3985 = vst [vmem:[%s3955 + $0x70] sm:$0xff] %v3984
                %v3986 = vld [vmem:[%s3954 + $0x78] sm:$0xff]
                %3987 = vst [vmem:[%s3955 + $0x78] sm:$0xff] %v3986
                %v3988 = vld [vmem:[%s3954 + $0x80] sm:$0xff]
                %3989 = vst [vmem:[%s3955 + $0x100] sm:$0xff] %v3988
                %v3990 = vld [vmem:[%s3954 + $0x88] sm:$0xff]
                %3991 = vst [vmem:[%s3955 + $0x108] sm:$0xff] %v3990
                %v3992 = vld [vmem:[%s3954 + $0x90] sm:$0xff]
                %3993 = vst [vmem:[%s3955 + $0x110] sm:$0xff] %v3992
                %v3994 = vld [vmem:[%s3954 + $0x98] sm:$0xff]
                %3995 = vst [vmem:[%s3955 + $0x118] sm:$0xff] %v3994
                %v3996 = vld [vmem:[%s3954 + $0xa0] sm:$0xff]
                %3997 = vst [vmem:[%s3955 + $0x120] sm:$0xff] %v3996
                %v3998 = vld [vmem:[%s3954 + $0xa8] sm:$0xff]
                %3999 = vst [vmem:[%s3955 + $0x128] sm:$0xff] %v3998
                %v4000 = vld [vmem:[%s3954 + $0xb0] sm:$0xff]
                %4001 = vst [vmem:[%s3955 + $0x130] sm:$0xff] %v4000
                %v4002 = vld [vmem:[%s3954 + $0xb8] sm:$0xff]
                %4003 = vst [vmem:[%s3955 + $0x138] sm:$0xff] %v4002
                %v4004 = vld [vmem:[%s3954 + $0xc0] sm:$0xff]
                %4005 = vst [vmem:[%s3955 + $0x140] sm:$0xff] %v4004
                %v4006 = vld [vmem:[%s3954 + $0xc8] sm:$0xff]
                %4007 = vst [vmem:[%s3955 + $0x148] sm:$0xff] %v4006
                %v4008 = vld [vmem:[%s3954 + $0xd0] sm:$0xff]
                %4009 = vst [vmem:[%s3955 + $0x150] sm:$0xff] %v4008
                %v4010 = vld [vmem:[%s3954 + $0xd8] sm:$0xff]
                %4011 = vst [vmem:[%s3955 + $0x158] sm:$0xff] %v4010
                %v4012 = vld [vmem:[%s3954 + $0xe0] sm:$0xff]
                %4013 = vst [vmem:[%s3955 + $0x160] sm:$0xff] %v4012
                %v4014 = vld [vmem:[%s3954 + $0xe8] sm:$0xff]
                %4015 = vst [vmem:[%s3955 + $0x168] sm:$0xff] %v4014
                %v4016 = vld [vmem:[%s3954 + $0xf0] sm:$0xff]
                %4017 = vst [vmem:[%s3955 + $0x170] sm:$0xff] %v4016
                %v4018 = vld [vmem:[%s3954 + $0xf8] sm:$0xff]
                %4019 = vst [vmem:[%s3955 + $0x178] sm:$0xff] %v4018
              $region148: #{tpu_custom_call.1} parent=142 // loop_footer
                %s3953 = sadd.s32 1, %s3949
              $region149: #{tpu_custom_call.1} parent=142 // loop_footer_branch
                %3948 = sbr.rel target = $region145
              $region150: #{tpu_custom_call.1} parent=142 // loop_exit
                _
            $region143: #{tpu_custom_call.1} parent=134 // pred_fallthru
              _
          $region135: #{tpu_custom_call.1} parent=130 // pred_fallthru
            _
          %4096 = vnop
        $region131: #{tpu_custom_call.1} parent=47 // pred_fallthru
          _
        // Predicated region
        $region166: #{tpu_custom_call.1} parent=47 // pred_check
          %p4097 = pneg %p281
        $region167: #{tpu_custom_call.1} parent=47 // pred_check_branch
          %4099 = sbr.rel (%p4097) target = $region169
        $region168: #{tpu_custom_call.1} parent=47 // pred_region
          %s4100 = smul.u32 16, %s23
          %s4101 = smul.addr %s4100, 4
          %s4102 = scalar_lea.vmem %s10, %s4101
          // Predicated region
          $region170: #{tpu_custom_call.1} parent=168 // pred_check
            _
          $region171: #{tpu_custom_call.1} parent=168 // pred_check_branch
            %4104 = sbr.rel (0) target = $region173
          $region172: #{tpu_custom_call.1} parent=168 // pred_region
            // Predicated region
            $region174: #{tpu_custom_call.1} parent=172 // pred_check
              _
            $region175: #{tpu_custom_call.1} parent=172 // pred_check_branch
              %4106 = sbr.rel target = $region177
            $region176: #{tpu_custom_call.1} parent=172 // pred_region
              // Predicated region
              $region189: #{tpu_custom_call.1} parent=176 // pred_check
                _
              $region190: #{tpu_custom_call.1} parent=176 // pred_check_branch
                %4183 = sbr.rel (0) target = $region192
              $region191: #{tpu_custom_call.1} parent=176 // pred_region
                loop: start=0, step=1, limit=1
                $region193: #{tpu_custom_call.1} parent=191 // loop_pre_header
                  _
                $region194: #{tpu_custom_call.1} parent=191 // loop_header
                  %s4185 = sphi 0, %s4189
                  %p4186 = scmp.ge.s32.totalorder %s4185, 1
                  %s4190 = sphi %s3471, %s3471
                  %s4191 = sphi %s4102, %s4102
                $region195: #{tpu_custom_call.1} parent=191 // loop_header_branch
                  %4188 = sbr.rel (%p4186) target = $region199
                $region196: #{tpu_custom_call.1} parent=191 // loop_body
                  _
                $region197: #{tpu_custom_call.1} parent=191 // loop_footer
                  %s4189 = sadd.s32 1, %s4185
                $region198: #{tpu_custom_call.1} parent=191 // loop_footer_branch
                  %4184 = sbr.rel target = $region194
                $region199: #{tpu_custom_call.1} parent=191 // loop_exit
                  _
                loop: start=0, step=1, limit=1
                $region200: #{tpu_custom_call.1} parent=191 // loop_pre_header
                  _
                $region201: #{tpu_custom_call.1} parent=191 // loop_header
                  %s4194 = sphi 0, %s4198
                  %p4195 = scmp.ge.s32.totalorder %s4194, 1
                  %s4199 = sphi %s3471, %s3471
                  %s4200 = sphi %s4102, %s4102
                $region202: #{tpu_custom_call.1} parent=191 // loop_header_branch
                  %4197 = sbr.rel (%p4195) target = $region206
                $region203: #{tpu_custom_call.1} parent=191 // loop_body
                  %v4201 = vld [vmem:[%s4199] sm:$0xf]
                  %4202 = vst [vmem:[%s4200] sm:$0xf] %v4201
                  %v4203 = vld [vmem:[%s4199 + $0x4] sm:$0xf]
                  %4204 = vst [vmem:[%s4200 + $0x4] sm:$0xf] %v4203
                  %v4205 = vld [vmem:[%s4199 + $0x8] sm:$0xf]
                  %4206 = vst [vmem:[%s4200 + $0x8] sm:$0xf] %v4205
                  %v4207 = vld [vmem:[%s4199 + $0xc] sm:$0xf]
                  %4208 = vst [vmem:[%s4200 + $0xc] sm:$0xf] %v4207
                  %v4209 = vld [vmem:[%s4199 + $0x10] sm:$0xf]
                  %4210 = vst [vmem:[%s4200 + $0x10] sm:$0xf] %v4209
                  %v4211 = vld [vmem:[%s4199 + $0x14] sm:$0xf]
                  %4212 = vst [vmem:[%s4200 + $0x14] sm:$0xf] %v4211
                  %v4213 = vld [vmem:[%s4199 + $0x18] sm:$0xf]
                  %4214 = vst [vmem:[%s4200 + $0x18] sm:$0xf] %v4213
                  %v4215 = vld [vmem:[%s4199 + $0x1c] sm:$0xf]
                  %4216 = vst [vmem:[%s4200 + $0x1c] sm:$0xf] %v4215
                  %v4217 = vld [vmem:[%s4199 + $0x20] sm:$0xf]
                  %4218 = vst [vmem:[%s4200 + $0x20] sm:$0xf] %v4217
                  %v4219 = vld [vmem:[%s4199 + $0x24] sm:$0xf]
                  %4220 = vst [vmem:[%s4200 + $0x24] sm:$0xf] %v4219
                  %v4221 = vld [vmem:[%s4199 + $0x28] sm:$0xf]
                  %4222 = vst [vmem:[%s4200 + $0x28] sm:$0xf] %v4221
                  %v4223 = vld [vmem:[%s4199 + $0x2c] sm:$0xf]
                  %4224 = vst [vmem:[%s4200 + $0x2c] sm:$0xf] %v4223
                  %v4225 = vld [vmem:[%s4199 + $0x30] sm:$0xf]
                  %4226 = vst [vmem:[%s4200 + $0x30] sm:$0xf] %v4225
                  %v4227 = vld [vmem:[%s4199 + $0x34] sm:$0xf]
                  %4228 = vst [vmem:[%s4200 + $0x34] sm:$0xf] %v4227
                  %v4229 = vld [vmem:[%s4199 + $0x38] sm:$0xf]
                  %4230 = vst [vmem:[%s4200 + $0x38] sm:$0xf] %v4229
                  %v4231 = vld [vmem:[%s4199 + $0x3c] sm:$0xf]
                  %4232 = vst [vmem:[%s4200 + $0x3c] sm:$0xf] %v4231
                  %v4233 = vld [vmem:[%s4199 + $0x40] sm:$0xf]
                  %4234 = vst [vmem:[%s4200 + $0x80] sm:$0xf] %v4233
                  %v4235 = vld [vmem:[%s4199 + $0x44] sm:$0xf]
                  %4236 = vst [vmem:[%s4200 + $0x84] sm:$0xf] %v4235
                  %v4237 = vld [vmem:[%s4199 + $0x48] sm:$0xf]
                  %4238 = vst [vmem:[%s4200 + $0x88] sm:$0xf] %v4237
                  %v4239 = vld [vmem:[%s4199 + $0x4c] sm:$0xf]
                  %4240 = vst [vmem:[%s4200 + $0x8c] sm:$0xf] %v4239
                  %v4241 = vld [vmem:[%s4199 + $0x50] sm:$0xf]
                  %4242 = vst [vmem:[%s4200 + $0x90] sm:$0xf] %v4241
                  %v4243 = vld [vmem:[%s4199 + $0x54] sm:$0xf]
                  %4244 = vst [vmem:[%s4200 + $0x94] sm:$0xf] %v4243
                  %v4245 = vld [vmem:[%s4199 + $0x58] sm:$0xf]
                  %4246 = vst [vmem:[%s4200 + $0x98] sm:$0xf] %v4245
                  %v4247 = vld [vmem:[%s4199 + $0x5c] sm:$0xf]
                  %4248 = vst [vmem:[%s4200 + $0x9c] sm:$0xf] %v4247
                  %v4249 = vld [vmem:[%s4199 + $0x60] sm:$0xf]
                  %4250 = vst [vmem:[%s4200 + $0xa0] sm:$0xf] %v4249
                  %v4251 = vld [vmem:[%s4199 + $0x64] sm:$0xf]
                  %4252 = vst [vmem:[%s4200 + $0xa4] sm:$0xf] %v4251
                  %v4253 = vld [vmem:[%s4199 + $0x68] sm:$0xf]
                  %4254 = vst [vmem:[%s4200 + $0xa8] sm:$0xf] %v4253
                  %v4255 = vld [vmem:[%s4199 + $0x6c] sm:$0xf]
                  %4256 = vst [vmem:[%s4200 + $0xac] sm:$0xf] %v4255
                  %v4257 = vld [vmem:[%s4199 + $0x70] sm:$0xf]
                  %4258 = vst [vmem:[%s4200 + $0xb0] sm:$0xf] %v4257
                  %v4259 = vld [vmem:[%s4199 + $0x74] sm:$0xf]
                  %4260 = vst [vmem:[%s4200 + $0xb4] sm:$0xf] %v4259
                  %v4261 = vld [vmem:[%s4199 + $0x78] sm:$0xf]
                  %4262 = vst [vmem:[%s4200 + $0xb8] sm:$0xf] %v4261
                  %v4263 = vld [vmem:[%s4199 + $0x7c] sm:$0xf]
                  %4264 = vst [vmem:[%s4200 + $0xbc] sm:$0xf] %v4263
                $region204: #{tpu_custom_call.1} parent=191 // loop_footer
                  %s4198 = sadd.s32 1, %s4194
                $region205: #{tpu_custom_call.1} parent=191 // loop_footer_branch
                  %4193 = sbr.rel target = $region201
                $region206: #{tpu_custom_call.1} parent=191 // loop_exit
                  _
              $region192: #{tpu_custom_call.1} parent=176 // pred_fallthru
                _
            $region177: #{tpu_custom_call.1} parent=172 // pred_fallthru
              _
            // Predicated region
            $region178: #{tpu_custom_call.1} parent=172 // pred_check
              _
            $region179: #{tpu_custom_call.1} parent=172 // pred_check_branch
              %4108 = sbr.rel (0) target = $region181
            $region180: #{tpu_custom_call.1} parent=172 // pred_region
              loop: start=0, step=1, limit=1
              $region182: #{tpu_custom_call.1} parent=180 // loop_pre_header
                _
              $region183: #{tpu_custom_call.1} parent=180 // loop_header
                %s4111 = sphi 0, %s4115
                %p4112 = scmp.ge.s32.totalorder %s4111, 1
                %s4116 = sphi %s3471, %s3471
                %s4117 = sphi %s4102, %s4102
              $region184: #{tpu_custom_call.1} parent=180 // loop_header_branch
                %4114 = sbr.rel (%p4112) target = $region188
              $region185: #{tpu_custom_call.1} parent=180 // loop_body
                %v4118 = vld [vmem:[%s4116] sm:$0xf]
                %4119 = vst [vmem:[%s4117] sm:$0xf] %v4118
                %v4120 = vld [vmem:[%s4116 + $0x4] sm:$0xf]
                %4121 = vst [vmem:[%s4117 + $0x4] sm:$0xf] %v4120
                %v4122 = vld [vmem:[%s4116 + $0x8] sm:$0xf]
                %4123 = vst [vmem:[%s4117 + $0x8] sm:$0xf] %v4122
                %v4124 = vld [vmem:[%s4116 + $0xc] sm:$0xf]
                %4125 = vst [vmem:[%s4117 + $0xc] sm:$0xf] %v4124
                %v4126 = vld [vmem:[%s4116 + $0x10] sm:$0xf]
                %4127 = vst [vmem:[%s4117 + $0x10] sm:$0xf] %v4126
                %v4128 = vld [vmem:[%s4116 + $0x14] sm:$0xf]
                %4129 = vst [vmem:[%s4117 + $0x14] sm:$0xf] %v4128
                %v4130 = vld [vmem:[%s4116 + $0x18] sm:$0xf]
                %4131 = vst [vmem:[%s4117 + $0x18] sm:$0xf] %v4130
                %v4132 = vld [vmem:[%s4116 + $0x1c] sm:$0xf]
                %4133 = vst [vmem:[%s4117 + $0x1c] sm:$0xf] %v4132
                %v4134 = vld [vmem:[%s4116 + $0x20] sm:$0xf]
                %4135 = vst [vmem:[%s4117 + $0x20] sm:$0xf] %v4134
                %v4136 = vld [vmem:[%s4116 + $0x24] sm:$0xf]
                %4137 = vst [vmem:[%s4117 + $0x24] sm:$0xf] %v4136
                %v4138 = vld [vmem:[%s4116 + $0x28] sm:$0xf]
                %4139 = vst [vmem:[%s4117 + $0x28] sm:$0xf] %v4138
                %v4140 = vld [vmem:[%s4116 + $0x2c] sm:$0xf]
                %4141 = vst [vmem:[%s4117 + $0x2c] sm:$0xf] %v4140
                %v4142 = vld [vmem:[%s4116 + $0x30] sm:$0xf]
                %4143 = vst [vmem:[%s4117 + $0x30] sm:$0xf] %v4142
                %v4144 = vld [vmem:[%s4116 + $0x34] sm:$0xf]
                %4145 = vst [vmem:[%s4117 + $0x34] sm:$0xf] %v4144
                %v4146 = vld [vmem:[%s4116 + $0x38] sm:$0xf]
                %4147 = vst [vmem:[%s4117 + $0x38] sm:$0xf] %v4146
                %v4148 = vld [vmem:[%s4116 + $0x3c] sm:$0xf]
                %4149 = vst [vmem:[%s4117 + $0x3c] sm:$0xf] %v4148
                %v4150 = vld [vmem:[%s4116 + $0x40] sm:$0xf]
                %4151 = vst [vmem:[%s4117 + $0x80] sm:$0xf] %v4150
                %v4152 = vld [vmem:[%s4116 + $0x44] sm:$0xf]
                %4153 = vst [vmem:[%s4117 + $0x84] sm:$0xf] %v4152
                %v4154 = vld [vmem:[%s4116 + $0x48] sm:$0xf]
                %4155 = vst [vmem:[%s4117 + $0x88] sm:$0xf] %v4154
                %v4156 = vld [vmem:[%s4116 + $0x4c] sm:$0xf]
                %4157 = vst [vmem:[%s4117 + $0x8c] sm:$0xf] %v4156
                %v4158 = vld [vmem:[%s4116 + $0x50] sm:$0xf]
                %4159 = vst [vmem:[%s4117 + $0x90] sm:$0xf] %v4158
                %v4160 = vld [vmem:[%s4116 + $0x54] sm:$0xf]
                %4161 = vst [vmem:[%s4117 + $0x94] sm:$0xf] %v4160
                %v4162 = vld [vmem:[%s4116 + $0x58] sm:$0xf]
                %4163 = vst [vmem:[%s4117 + $0x98] sm:$0xf] %v4162
                %v4164 = vld [vmem:[%s4116 + $0x5c] sm:$0xf]
                %4165 = vst [vmem:[%s4117 + $0x9c] sm:$0xf] %v4164
                %v4166 = vld [vmem:[%s4116 + $0x60] sm:$0xf]
                %4167 = vst [vmem:[%s4117 + $0xa0] sm:$0xf] %v4166
                %v4168 = vld [vmem:[%s4116 + $0x64] sm:$0xf]
                %4169 = vst [vmem:[%s4117 + $0xa4] sm:$0xf] %v4168
                %v4170 = vld [vmem:[%s4116 + $0x68] sm:$0xf]
                %4171 = vst [vmem:[%s4117 + $0xa8] sm:$0xf] %v4170
                %v4172 = vld [vmem:[%s4116 + $0x6c] sm:$0xf]
                %4173 = vst [vmem:[%s4117 + $0xac] sm:$0xf] %v4172
                %v4174 = vld [vmem:[%s4116 + $0x70] sm:$0xf]
                %4175 = vst [vmem:[%s4117 + $0xb0] sm:$0xf] %v4174
                %v4176 = vld [vmem:[%s4116 + $0x74] sm:$0xf]
                %4177 = vst [vmem:[%s4117 + $0xb4] sm:$0xf] %v4176
                %v4178 = vld [vmem:[%s4116 + $0x78] sm:$0xf]
                %4179 = vst [vmem:[%s4117 + $0xb8] sm:$0xf] %v4178
                %v4180 = vld [vmem:[%s4116 + $0x7c] sm:$0xf]
                %4181 = vst [vmem:[%s4117 + $0xbc] sm:$0xf] %v4180
              $region186: #{tpu_custom_call.1} parent=180 // loop_footer
                %s4115 = sadd.s32 1, %s4111
              $region187: #{tpu_custom_call.1} parent=180 // loop_footer_branch
                %4110 = sbr.rel target = $region183
              $region188: #{tpu_custom_call.1} parent=180 // loop_exit
                _
            $region181: #{tpu_custom_call.1} parent=172 // pred_fallthru
              _
          $region173: #{tpu_custom_call.1} parent=168 // pred_fallthru
            _
          %4265 = vnop
        $region169: #{tpu_custom_call.1} parent=47 // pred_fallthru
          _
        // Predicated region
        $region207: #{tpu_custom_call.1} parent=47 // pred_check
          %p4266 = pneg %p307
        $region208: #{tpu_custom_call.1} parent=47 // pred_check_branch
          %4268 = sbr.rel (%p4266) target = $region210
        $region209: #{tpu_custom_call.1} parent=47 // pred_region
          %s4269 = smul.u32 16, %s23
          %s4270 = smul.addr %s4269, 4
          %s4271 = scalar_lea.vmem %s11, %s4270
          // Predicated region
          $region211: #{tpu_custom_call.1} parent=209 // pred_check
            _
          $region212: #{tpu_custom_call.1} parent=209 // pred_check_branch
            %4273 = sbr.rel (0) target = $region214
          $region213: #{tpu_custom_call.1} parent=209 // pred_region
            // Predicated region
            $region215: #{tpu_custom_call.1} parent=213 // pred_check
              _
            $region216: #{tpu_custom_call.1} parent=213 // pred_check_branch
              %4275 = sbr.rel target = $region218
            $region217: #{tpu_custom_call.1} parent=213 // pred_region
              // Predicated region
              $region230: #{tpu_custom_call.1} parent=217 // pred_check
                _
              $region231: #{tpu_custom_call.1} parent=217 // pred_check_branch
                %4352 = sbr.rel (0) target = $region233
              $region232: #{tpu_custom_call.1} parent=217 // pred_region
                loop: start=0, step=1, limit=1
                $region234: #{tpu_custom_call.1} parent=232 // loop_pre_header
                  _
                $region235: #{tpu_custom_call.1} parent=232 // loop_header
                  %s4354 = sphi 0, %s4358
                  %p4355 = scmp.ge.s32.totalorder %s4354, 1
                  %s4359 = sphi %s3475, %s3475
                  %s4360 = sphi %s4271, %s4271
                $region236: #{tpu_custom_call.1} parent=232 // loop_header_branch
                  %4357 = sbr.rel (%p4355) target = $region240
                $region237: #{tpu_custom_call.1} parent=232 // loop_body
                  _
                $region238: #{tpu_custom_call.1} parent=232 // loop_footer
                  %s4358 = sadd.s32 1, %s4354
                $region239: #{tpu_custom_call.1} parent=232 // loop_footer_branch
                  %4353 = sbr.rel target = $region235
                $region240: #{tpu_custom_call.1} parent=232 // loop_exit
                  _
                loop: start=0, step=1, limit=1
                $region241: #{tpu_custom_call.1} parent=232 // loop_pre_header
                  _
                $region242: #{tpu_custom_call.1} parent=232 // loop_header
                  %s4363 = sphi 0, %s4367
                  %p4364 = scmp.ge.s32.totalorder %s4363, 1
                  %s4368 = sphi %s3475, %s3475
                  %s4369 = sphi %s4271, %s4271
                $region243: #{tpu_custom_call.1} parent=232 // loop_header_branch
                  %4366 = sbr.rel (%p4364) target = $region247
                $region244: #{tpu_custom_call.1} parent=232 // loop_body
                  %v4370 = vld [vmem:[%s4368] sm:$0xf]
                  %4371 = vst [vmem:[%s4369] sm:$0xf] %v4370
                  %v4372 = vld [vmem:[%s4368 + $0x4] sm:$0xf]
                  %4373 = vst [vmem:[%s4369 + $0x4] sm:$0xf] %v4372
                  %v4374 = vld [vmem:[%s4368 + $0x8] sm:$0xf]
                  %4375 = vst [vmem:[%s4369 + $0x8] sm:$0xf] %v4374
                  %v4376 = vld [vmem:[%s4368 + $0xc] sm:$0xf]
                  %4377 = vst [vmem:[%s4369 + $0xc] sm:$0xf] %v4376
                  %v4378 = vld [vmem:[%s4368 + $0x10] sm:$0xf]
                  %4379 = vst [vmem:[%s4369 + $0x10] sm:$0xf] %v4378
                  %v4380 = vld [vmem:[%s4368 + $0x14] sm:$0xf]
                  %4381 = vst [vmem:[%s4369 + $0x14] sm:$0xf] %v4380
                  %v4382 = vld [vmem:[%s4368 + $0x18] sm:$0xf]
                  %4383 = vst [vmem:[%s4369 + $0x18] sm:$0xf] %v4382
                  %v4384 = vld [vmem:[%s4368 + $0x1c] sm:$0xf]
                  %4385 = vst [vmem:[%s4369 + $0x1c] sm:$0xf] %v4384
                  %v4386 = vld [vmem:[%s4368 + $0x20] sm:$0xf]
                  %4387 = vst [vmem:[%s4369 + $0x20] sm:$0xf] %v4386
                  %v4388 = vld [vmem:[%s4368 + $0x24] sm:$0xf]
                  %4389 = vst [vmem:[%s4369 + $0x24] sm:$0xf] %v4388
                  %v4390 = vld [vmem:[%s4368 + $0x28] sm:$0xf]
                  %4391 = vst [vmem:[%s4369 + $0x28] sm:$0xf] %v4390
                  %v4392 = vld [vmem:[%s4368 + $0x2c] sm:$0xf]
                  %4393 = vst [vmem:[%s4369 + $0x2c] sm:$0xf] %v4392
                  %v4394 = vld [vmem:[%s4368 + $0x30] sm:$0xf]
                  %4395 = vst [vmem:[%s4369 + $0x30] sm:$0xf] %v4394
                  %v4396 = vld [vmem:[%s4368 + $0x34] sm:$0xf]
                  %4397 = vst [vmem:[%s4369 + $0x34] sm:$0xf] %v4396
                  %v4398 = vld [vmem:[%s4368 + $0x38] sm:$0xf]
                  %4399 = vst [vmem:[%s4369 + $0x38] sm:$0xf] %v4398
                  %v4400 = vld [vmem:[%s4368 + $0x3c] sm:$0xf]
                  %4401 = vst [vmem:[%s4369 + $0x3c] sm:$0xf] %v4400
                  %v4402 = vld [vmem:[%s4368 + $0x40] sm:$0xf]
                  %4403 = vst [vmem:[%s4369 + $0x80] sm:$0xf] %v4402
                  %v4404 = vld [vmem:[%s4368 + $0x44] sm:$0xf]
                  %4405 = vst [vmem:[%s4369 + $0x84] sm:$0xf] %v4404
                  %v4406 = vld [vmem:[%s4368 + $0x48] sm:$0xf]
                  %4407 = vst [vmem:[%s4369 + $0x88] sm:$0xf] %v4406
                  %v4408 = vld [vmem:[%s4368 + $0x4c] sm:$0xf]
                  %4409 = vst [vmem:[%s4369 + $0x8c] sm:$0xf] %v4408
                  %v4410 = vld [vmem:[%s4368 + $0x50] sm:$0xf]
                  %4411 = vst [vmem:[%s4369 + $0x90] sm:$0xf] %v4410
                  %v4412 = vld [vmem:[%s4368 + $0x54] sm:$0xf]
                  %4413 = vst [vmem:[%s4369 + $0x94] sm:$0xf] %v4412
                  %v4414 = vld [vmem:[%s4368 + $0x58] sm:$0xf]
                  %4415 = vst [vmem:[%s4369 + $0x98] sm:$0xf] %v4414
                  %v4416 = vld [vmem:[%s4368 + $0x5c] sm:$0xf]
                  %4417 = vst [vmem:[%s4369 + $0x9c] sm:$0xf] %v4416
                  %v4418 = vld [vmem:[%s4368 + $0x60] sm:$0xf]
                  %4419 = vst [vmem:[%s4369 + $0xa0] sm:$0xf] %v4418
                  %v4420 = vld [vmem:[%s4368 + $0x64] sm:$0xf]
                  %4421 = vst [vmem:[%s4369 + $0xa4] sm:$0xf] %v4420
                  %v4422 = vld [vmem:[%s4368 + $0x68] sm:$0xf]
                  %4423 = vst [vmem:[%s4369 + $0xa8] sm:$0xf] %v4422
                  %v4424 = vld [vmem:[%s4368 + $0x6c] sm:$0xf]
                  %4425 = vst [vmem:[%s4369 + $0xac] sm:$0xf] %v4424
                  %v4426 = vld [vmem:[%s4368 + $0x70] sm:$0xf]
                  %4427 = vst [vmem:[%s4369 + $0xb0] sm:$0xf] %v4426
                  %v4428 = vld [vmem:[%s4368 + $0x74] sm:$0xf]
                  %4429 = vst [vmem:[%s4369 + $0xb4] sm:$0xf] %v4428
                  %v4430 = vld [vmem:[%s4368 + $0x78] sm:$0xf]
                  %4431 = vst [vmem:[%s4369 + $0xb8] sm:$0xf] %v4430
                  %v4432 = vld [vmem:[%s4368 + $0x7c] sm:$0xf]
                  %4433 = vst [vmem:[%s4369 + $0xbc] sm:$0xf] %v4432
                $region245: #{tpu_custom_call.1} parent=232 // loop_footer
                  %s4367 = sadd.s32 1, %s4363
                $region246: #{tpu_custom_call.1} parent=232 // loop_footer_branch
                  %4362 = sbr.rel target = $region242
                $region247: #{tpu_custom_call.1} parent=232 // loop_exit
                  _
              $region233: #{tpu_custom_call.1} parent=217 // pred_fallthru
                _
            $region218: #{tpu_custom_call.1} parent=213 // pred_fallthru
              _
            // Predicated region
            $region219: #{tpu_custom_call.1} parent=213 // pred_check
              _
            $region220: #{tpu_custom_call.1} parent=213 // pred_check_branch
              %4277 = sbr.rel (0) target = $region222
            $region221: #{tpu_custom_call.1} parent=213 // pred_region
              loop: start=0, step=1, limit=1
              $region223: #{tpu_custom_call.1} parent=221 // loop_pre_header
                _
              $region224: #{tpu_custom_call.1} parent=221 // loop_header
                %s4280 = sphi 0, %s4284
                %p4281 = scmp.ge.s32.totalorder %s4280, 1
                %s4285 = sphi %s3475, %s3475
                %s4286 = sphi %s4271, %s4271
              $region225: #{tpu_custom_call.1} parent=221 // loop_header_branch
                %4283 = sbr.rel (%p4281) target = $region229
              $region226: #{tpu_custom_call.1} parent=221 // loop_body
                %v4287 = vld [vmem:[%s4285] sm:$0xf]
                %4288 = vst [vmem:[%s4286] sm:$0xf] %v4287
                %v4289 = vld [vmem:[%s4285 + $0x4] sm:$0xf]
                %4290 = vst [vmem:[%s4286 + $0x4] sm:$0xf] %v4289
                %v4291 = vld [vmem:[%s4285 + $0x8] sm:$0xf]
                %4292 = vst [vmem:[%s4286 + $0x8] sm:$0xf] %v4291
                %v4293 = vld [vmem:[%s4285 + $0xc] sm:$0xf]
                %4294 = vst [vmem:[%s4286 + $0xc] sm:$0xf] %v4293
                %v4295 = vld [vmem:[%s4285 + $0x10] sm:$0xf]
                %4296 = vst [vmem:[%s4286 + $0x10] sm:$0xf] %v4295
                %v4297 = vld [vmem:[%s4285 + $0x14] sm:$0xf]
                %4298 = vst [vmem:[%s4286 + $0x14] sm:$0xf] %v4297
                %v4299 = vld [vmem:[%s4285 + $0x18] sm:$0xf]
                %4300 = vst [vmem:[%s4286 + $0x18] sm:$0xf] %v4299
                %v4301 = vld [vmem:[%s4285 + $0x1c] sm:$0xf]
                %4302 = vst [vmem:[%s4286 + $0x1c] sm:$0xf] %v4301
                %v4303 = vld [vmem:[%s4285 + $0x20] sm:$0xf]
                %4304 = vst [vmem:[%s4286 + $0x20] sm:$0xf] %v4303
                %v4305 = vld [vmem:[%s4285 + $0x24] sm:$0xf]
                %4306 = vst [vmem:[%s4286 + $0x24] sm:$0xf] %v4305
                %v4307 = vld [vmem:[%s4285 + $0x28] sm:$0xf]
                %4308 = vst [vmem:[%s4286 + $0x28] sm:$0xf] %v4307
                %v4309 = vld [vmem:[%s4285 + $0x2c] sm:$0xf]
                %4310 = vst [vmem:[%s4286 + $0x2c] sm:$0xf] %v4309
                %v4311 = vld [vmem:[%s4285 + $0x30] sm:$0xf]
                %4312 = vst [vmem:[%s4286 + $0x30] sm:$0xf] %v4311
                %v4313 = vld [vmem:[%s4285 + $0x34] sm:$0xf]
                %4314 = vst [vmem:[%s4286 + $0x34] sm:$0xf] %v4313
                %v4315 = vld [vmem:[%s4285 + $0x38] sm:$0xf]
                %4316 = vst [vmem:[%s4286 + $0x38] sm:$0xf] %v4315
                %v4317 = vld [vmem:[%s4285 + $0x3c] sm:$0xf]
                %4318 = vst [vmem:[%s4286 + $0x3c] sm:$0xf] %v4317
                %v4319 = vld [vmem:[%s4285 + $0x40] sm:$0xf]
                %4320 = vst [vmem:[%s4286 + $0x80] sm:$0xf] %v4319
                %v4321 = vld [vmem:[%s4285 + $0x44] sm:$0xf]
                %4322 = vst [vmem:[%s4286 + $0x84] sm:$0xf] %v4321
                %v4323 = vld [vmem:[%s4285 + $0x48] sm:$0xf]
                %4324 = vst [vmem:[%s4286 + $0x88] sm:$0xf] %v4323
                %v4325 = vld [vmem:[%s4285 + $0x4c] sm:$0xf]
                %4326 = vst [vmem:[%s4286 + $0x8c] sm:$0xf] %v4325
                %v4327 = vld [vmem:[%s4285 + $0x50] sm:$0xf]
                %4328 = vst [vmem:[%s4286 + $0x90] sm:$0xf] %v4327
                %v4329 = vld [vmem:[%s4285 + $0x54] sm:$0xf]
                %4330 = vst [vmem:[%s4286 + $0x94] sm:$0xf] %v4329
                %v4331 = vld [vmem:[%s4285 + $0x58] sm:$0xf]
                %4332 = vst [vmem:[%s4286 + $0x98] sm:$0xf] %v4331
                %v4333 = vld [vmem:[%s4285 + $0x5c] sm:$0xf]
                %4334 = vst [vmem:[%s4286 + $0x9c] sm:$0xf] %v4333
                %v4335 = vld [vmem:[%s4285 + $0x60] sm:$0xf]
                %4336 = vst [vmem:[%s4286 + $0xa0] sm:$0xf] %v4335
                %v4337 = vld [vmem:[%s4285 + $0x64] sm:$0xf]
                %4338 = vst [vmem:[%s4286 + $0xa4] sm:$0xf] %v4337
                %v4339 = vld [vmem:[%s4285 + $0x68] sm:$0xf]
                %4340 = vst [vmem:[%s4286 + $0xa8] sm:$0xf] %v4339
                %v4341 = vld [vmem:[%s4285 + $0x6c] sm:$0xf]
                %4342 = vst [vmem:[%s4286 + $0xac] sm:$0xf] %v4341
                %v4343 = vld [vmem:[%s4285 + $0x70] sm:$0xf]
                %4344 = vst [vmem:[%s4286 + $0xb0] sm:$0xf] %v4343
                %v4345 = vld [vmem:[%s4285 + $0x74] sm:$0xf]
                %4346 = vst [vmem:[%s4286 + $0xb4] sm:$0xf] %v4345
                %v4347 = vld [vmem:[%s4285 + $0x78] sm:$0xf]
                %4348 = vst [vmem:[%s4286 + $0xb8] sm:$0xf] %v4347
                %v4349 = vld [vmem:[%s4285 + $0x7c] sm:$0xf]
                %4350 = vst [vmem:[%s4286 + $0xbc] sm:$0xf] %v4349
              $region227: #{tpu_custom_call.1} parent=221 // loop_footer
                %s4284 = sadd.s32 1, %s4280
              $region228: #{tpu_custom_call.1} parent=221 // loop_footer_branch
                %4279 = sbr.rel target = $region224
              $region229: #{tpu_custom_call.1} parent=221 // loop_exit
                _
            $region222: #{tpu_custom_call.1} parent=213 // pred_fallthru
              _
          $region214: #{tpu_custom_call.1} parent=209 // pred_fallthru
            _
          %4434 = vnop
        $region210: #{tpu_custom_call.1} parent=47 // pred_fallthru
          _
      $region48: #{tpu_custom_call.1} parent=5 // pred_fallthru
        _
      %p4435 = scmp.le.s32.totalorder 2, %s18
      // Predicated region
      $region248: #{tpu_custom_call.1} parent=5 // pred_check
        %p4436 = pneg %p4435
      $region249: #{tpu_custom_call.1} parent=5 // pred_check_branch
        %4438 = sbr.rel (%p4436) target = $region251
      $region250: #{tpu_custom_call.1} parent=5 // pred_region
        %s4439 = ssub.s32 %s18, 2
        // Predicated region
        $region252: #{tpu_custom_call.1} parent=250 // pred_check
          %p4440 = pneg %p209
        $region253: #{tpu_custom_call.1} parent=250 // pred_check_branch
          %4442 = sbr.rel (%p4440) target = $region255
        $region254: #{tpu_custom_call.1} parent=250 // pred_region
          %s4443 = sand.u32 %s194, 1
          %s4444 = sand.u32 %s194, 1
          %s4445 = smul.addr %s4444, 256
          %s4446 = scalar_lea.vmem [#allocation2], %s4445
        $region255: #{tpu_custom_call.1} parent=250 // pred_fallthru
          _
        // Predicated region
        $region256: #{tpu_custom_call.1} parent=250 // pred_check
          %p4447 = pneg %p235
        $region257: #{tpu_custom_call.1} parent=250 // pred_check_branch
          %4449 = sbr.rel (%p4447) target = $region259
        $region258: #{tpu_custom_call.1} parent=250 // pred_region
          %s4450 = sand.u32 %s220, 1
          %s4451 = sand.u32 %s220, 1
          %s4452 = smul.addr %s4451, 256
          %s4453 = scalar_lea.vmem [#allocation3], %s4452
        $region259: #{tpu_custom_call.1} parent=250 // pred_fallthru
          _
        // Predicated region
        $region260: #{tpu_custom_call.1} parent=250 // pred_check
          %p4454 = pneg %p261
        $region261: #{tpu_custom_call.1} parent=250 // pred_check_branch
          %4456 = sbr.rel (%p4454) target = $region263
        $region262: #{tpu_custom_call.1} parent=250 // pred_region
          %s4457 = sand.u32 %s246, 1
          %s4458 = sand.u32 %s246, 1
          %s4459 = smul.addr %s4458, 256
          %s4460 = scalar_lea.vmem [#allocation4], %s4459
        $region263: #{tpu_custom_call.1} parent=250 // pred_fallthru
          _
        // Predicated region
        $region264: #{tpu_custom_call.1} parent=250 // pred_check
          %p4461 = pneg %p287
        $region265: #{tpu_custom_call.1} parent=250 // pred_check_branch
          %4463 = sbr.rel (%p4461) target = $region267
        $region266: #{tpu_custom_call.1} parent=250 // pred_region
          %s4464 = sand.u32 %s272, 1
          %s4465 = sand.u32 %s272, 1
          %s4466 = smul.addr %s4465, 128
          %s4467 = scalar_lea.vmem [#allocation5], %s4466
        $region267: #{tpu_custom_call.1} parent=250 // pred_fallthru
          _
        // Predicated region
        $region268: #{tpu_custom_call.1} parent=250 // pred_check
          %p4468 = pneg %p313
        $region269: #{tpu_custom_call.1} parent=250 // pred_check_branch
          %4470 = sbr.rel (%p4468) target = $region271
        $region270: #{tpu_custom_call.1} parent=250 // pred_region
          %s4471 = sand.u32 %s298, 1
          %s4472 = sand.u32 %s298, 1
          %s4473 = smul.addr %s4472, 128
          %s4474 = scalar_lea.vmem [#allocation6], %s4473
        $region271: #{tpu_custom_call.1} parent=250 // pred_fallthru
          _
      $region251: #{tpu_custom_call.1} parent=5 // pred_fallthru
        _
    $region6: #{tpu_custom_call.1} parent=1 // loop_footer
      %s22 = sadd.s32 1, %s18
    $region7: #{tpu_custom_call.1} parent=1 // loop_footer_branch
      %17 = sbr.rel target = $region3
    $region8: #{tpu_custom_call.1} parent=1 // loop_exit
      _

</llo_original>
